<compile_context>
chip_gen: v5e
topology: v5e:2x2
jax: 0.10.0
libtpu: 0.0.40
codegen_flags: <defaults>
</compile_context>

<pallas_src>
import functools

import jax
import jax.numpy as jnp
import numpy as np
from jax.experimental import pallas as pl
from jax.experimental.pallas import tpu as pltpu


# --------------------------------------------------------------------------- #
# Kernel
# --------------------------------------------------------------------------- #
def _fused_conv_kernel(x_ref, w_ref, b_ref, o_ref, *, tile_h, W, KH, KW):
    """One (tile_h, W) output tile of the fused conv.

    x_ref: (1, 1, tile_h + KH - 1, W + KW - 1, C)  padded/halo'd input tile
    w_ref: (KH, KW, C, 4*O)                        fused weights (resident)
    b_ref: (1, 4*O)                                fused bias    (resident)
    o_ref: (1, tile_h, W, 4*O)                     output tile
    """
    C = x_ref.shape[-1]
    O4 = o_ref.shape[-1]

    x = x_ref[0, 0]                                   # (tile_h+KH-1, W+KW-1, C)
    acc = jnp.zeros((tile_h * W, O4), jnp.float32)    # f32 accumulator, no bias seed

    # One MXU matmul per kernel tap: (tile_h*W, C) @ (C, 4*O).
    for kh in range(KH):
        for kw in range(KW):
            win = x[kh:kh + tile_h, kw:kw + W, :]     # (tile_h, W, C)
            lhs = win.reshape(tile_h * W, C)
            acc = acc + jnp.dot(lhs, w_ref[kh, kw],
                                preferred_element_type=jnp.float32)

    acc = acc + b_ref[...]                            # bias added once at the end
    # Single lane-dense store (width 4*O) for the whole tile.
    o_ref[0] = acc.reshape(tile_h, W, O4).astype(o_ref.dtype)


# --------------------------------------------------------------------------- #
# Weight fusion (trace-time, tiny tensors)
# --------------------------------------------------------------------------- #
def _embed_branch_weight(w, KH, KW, C, quarters):
    """Zero-embed a branch HWIO weight (kh, kw, C//2, O) into (KH, KW, C, O).

    Spatially centered (matches each branch's own 'same' padding, odd sizes);
    the branch's C//2 input channels are scattered into its two channel quarters.
    """
    kh, kw, _, O = (int(s) for s in w.shape)
    c4 = C // 4
    qa, qb = quarters
    oh, ow = (KH - kh) // 2, (KW - kw) // 2
    full = jnp.zeros((KH, KW, C, O), jnp.float32)
    full = full.at[oh:oh + kh, ow:ow + kw, qa * c4:(qa + 1) * c4, :].set(w[:, :, :c4, :])
    full = full.at[oh:oh + kh, ow:ow + kw, qb * c4:(qb + 1) * c4, :].set(w[:, :, c4:, :])
    return full


def _build_fused_params(params, in_channels, out_channels, KH, KW):
    """Fold channel selection, spatial centering and the 0.5/0.5 mixing into a
    single (KH, KW, C, 4*O) weight and (1, 4*O) bias."""
    C, O = in_channels, out_channels
    # Branch input-channel quarters (see MfA_Conv.forward):
    w_hh = _embed_branch_weight(params['w_hh'], KH, KW, C, (0, 3))  # Hori_high
    w_vh = _embed_branch_weight(params['w_vh'], KH, KW, C, (0, 2))  # Vert_high
    w_hl = _embed_branch_weight(params['w_hl'], KH, KW, C, (1, 2))  # Hori_low
    w_vl = _embed_branch_weight(params['w_vl'], KH, KW, C, (1, 3))  # Vert_low
    b_hh, b_vh = params['b_hh'], params['b_vh']
    b_hl, b_vl = params['b_hl'], params['b_vl']

    # out = cat([0.5*vh+0.5*hh, 0.5*vl+0.5*hl, 0.5*vh+0.5*hl, 0.5*vl+0.5*hh], C)
    w_fused = jnp.concatenate([
        0.5 * (w_vh + w_hh),
        0.5 * (w_vl + w_hl),
        0.5 * (w_vh + w_hl),
        0.5 * (w_vl + w_hh),
    ], axis=-1)
    b_fused = jnp.concatenate([
        0.5 * (b_vh + b_hh),
        0.5 * (b_vl + b_hl),
        0.5 * (b_vh + b_hl),
        0.5 * (b_vl + b_hh),
    ], axis=-1).reshape(1, 4 * O)
    return w_fused.astype(jnp.float32), b_fused.astype(jnp.float32)


# --------------------------------------------------------------------------- #
# Wrapper
# --------------------------------------------------------------------------- #
def _pick_tile_h(H, requested):
    t = max(1, min(requested, H))
    while H % t != 0:
        t -= 1
    return t


def _branch_inputs(x_nhwc, C):
    c4 = C // 4
    x_hh = jnp.concatenate([x_nhwc[..., 0:c4],      x_nhwc[..., 3 * c4:4 * c4]], axis=-1)
    x_vh = jnp.concatenate([x_nhwc[..., 0:c4],      x_nhwc[..., 2 * c4:3 * c4]], axis=-1)
    x_hl = jnp.concatenate([x_nhwc[..., c4:2 * c4], x_nhwc[..., 2 * c4:3 * c4]], axis=-1)
    x_vl = jnp.concatenate([x_nhwc[..., c4:2 * c4], x_nhwc[..., 3 * c4:4 * c4]], axis=-1)
    return x_hh, x_vh, x_hl, x_vl


def mfa_conv(x_nchw, params, out_channels,
             high_L=3, high_S=1, low_L=5, low_S=3, tile_h=8):
    # TODO(synk): only the module-default unit strides (high/low/basic_stride=1)
    # are implemented; non-unit strides change output spatial shapes.
    N, C, H, W = x_nchw.shape
    O = out_channels
    O4 = 4 * O
    sizes = (high_S, high_L, low_S, low_L)
    assert all(k % 2 == 1 for k in sizes), "odd kernel sizes required for fused centering"
    assert C % 4 == 0, "in_channels must be divisible by 4"
    KH = KW = max(sizes)        # branch heights and widths draw from the same set
    ph, pw = KH // 2, KW // 2

    w_fused, b_fused = _build_fused_params(params, C, O, KH, KW)

    # NHWC, 'same' padding for the fused KHxKW kernel (input is read ONCE).
    x = jnp.transpose(x_nchw, (0, 2, 3, 1)).astype(jnp.float32)
    x_pad = jnp.pad(x, ((0, 0), (ph, ph), (pw, pw), (0, 0)))
    Wp = W + 2 * pw

    # H tiles with (KH-1)-row halo.  tile_h bounds the per-step VMEM footprint:
    # roughly 2*((tile_h+KH-1)*Wp*C + tile_h*W*4*O)*4 bytes of double-buffered
    # blocks -- keep this comfortably under the scoped VMEM limit (v7x has the
    # smallest budget).  Only the halo rows get duplicated here, vs. the old 4x
    # padded half-channel branch copies.
    th = _pick_tile_h(H, tile_h)
    n_h = H // th
    thp = th + 2 * ph
    rows = jnp.arange(n_h)[:, None] * th + jnp.arange(thp)[None, :]
    x_tiles = x_pad[:, rows]                     # (N, n_h, thp, Wp, C)

    kernel = functools.partial(_fused_conv_kernel, tile_h=th, W=W, KH=KH, KW=KW)

    out_nhwc = pl.pallas_call(
        kernel,
        out_shape=jax.ShapeDtypeStruct((N, H, W, O4), jnp.float32),
        grid=(N, n_h),
        in_specs=[
            pl.BlockSpec((1, 1, thp, Wp, C), lambda n, h: (n, h, 0, 0, 0)),
            pl.BlockSpec((KH, KW, C, O4), lambda n, h: (0, 0, 0, 0)),   # resident
            pl.BlockSpec((1, O4), lambda n, h: (0, 0)),                 # resident
        ],
        out_specs=pl.BlockSpec((1, th, W, O4), lambda n, h: (n, h, 0, 0)),
        compiler_params=pltpu.CompilerParams(
            dimension_semantics=("parallel", "parallel")),
    )(x_tiles, w_fused, b_fused)

    return jnp.transpose(out_nhwc, (0, 3, 1, 2))  # NCHW: [N, 4*O, H, W]


# --------------------------------------------------------------------------- #
# Pure-JAX reference (mirrors the torch forward: 4 convs + mixing)
# --------------------------------------------------------------------------- #
def mfa_conv_reference(x_nchw, params, out_channels,
                       high_L=3, high_S=1, low_L=5, low_S=3):
    N, C, H, W = x_nchw.shape
    pad_hl, pad_hs = high_L // 2, high_S // 2
    pad_ll, pad_ls = low_L // 2, low_S // 2
    x = jnp.transpose(x_nchw, (0, 2, 3, 1)).astype(jnp.float32)
    x_hh, x_vh, x_hl, x_vl = _branch_inputs(x, C)

    def conv(xi, w, b, ph, pw):
        y = jax.lax.conv_general_dilated(
            xi, w, window_strides=(1, 1), padding=[(ph, ph), (pw, pw)],
            dimension_numbers=('NHWC', 'HWIO', 'NHWC'))
        return y + b

    o_hh = conv(x_hh, params['w_hh'], params['b_hh'], pad_hs, pad_hl)
    o_vh = conv(x_vh, params['w_vh'], params['b_vh'], pad_hl, pad_hs)
    o_hl = conv(x_hl, params['w_hl'], params['b_hl'], pad_ls, pad_ll)
    o_vl = conv(x_vl, params['w_vl'], params['b_vl'], pad_ll, pad_ls)

    out_hh = 0.5 * o_vh + 0.5 * o_hh
    out_ll = 0.5 * o_vl + 0.5 * o_hl
    out_hl = 0.5 * o_vh + 0.5 * o_hl
    out_lh = 0.5 * o_vl + 0.5 * o_hh
    out = jnp.concatenate([out_hh, out_ll, out_hl, out_lh], axis=-1)
    return jnp.transpose(out, (0, 3, 1, 2))


# --------------------------------------------------------------------------- #
# Params
# --------------------------------------------------------------------------- #
def init_params(key, in_channels, out_channels,
                high_L=3, high_S=1, low_L=5, low_S=3):
    """Deterministic synthetic weights; HWIO layout (KH, KW, C_in//2, O)."""
    C_half = in_channels // 2
    O = out_channels
    ks = jax.random.split(key, 8)

    def w(k, kh, kw):
        bound = 1.0 / np.sqrt(C_half * kh * kw)
        return jax.random.uniform(k, (kh, kw, C_half, O), jnp.float32, -bound, bound)

    def b(k, kh, kw):
        bound = 1.0 / np.sqrt(C_half * kh * kw)
        return jax.random.uniform(k, (O,), jnp.float32, -bound, bound)

    return {
        'w_hh': w(ks[0], high_S, high_L), 'b_hh': b(ks[1], high_S, high_L),  # Hori_high
        'w_vh': w(ks[2], high_L, high_S), 'b_vh': b(ks[3], high_L, high_S),  # Vert_high
        'w_hl': w(ks[4], low_S,  low_L),  'b_hl': b(ks[5], low_S,  low_L),   # Hori_low
        'w_vl': w(ks[6], low_L,  low_S),  'b_vl': b(ks[7], low_L,  low_S),   # Vert_low
    }


if __name__ == "__main__":
    key = jax.random.PRNGKey(0)
    in_channels, out_channels = 4, 8
    N, H, W = 2, 16, 16

    kx, kp = jax.random.split(key)
    x = jax.random.normal(kx, (N, in_channels, H, W), jnp.float32)
    params = init_params(kp, in_channels, out_channels)

    out = mfa_conv(x, params, out_channels, tile_h=8)   # 2 batch x 2 H-tiles grid
    out = jax.block_until_ready(out)

    assert out.shape == (N, 4 * out_channels, H, W), out.shape
    ref = mfa_conv_reference(x, params, out_channels)
    np.testing.assert_allclose(np.asarray(out), np.asarray(ref), rtol=1e-4, atol=1e-4)

    print("KERNEL_OK")
</pallas_src>

<mosaic_0001>
module attributes {stable_mosaic.version = 11 : i64} {
  func.func @_fused_conv_kernel(%arg0: i32, %arg1: i32, %arg2: memref<1x1x12x20x4xf32, #tpu.memory_space<vmem>>, %arg3: memref<5x5x4x32xf32, #tpu.memory_space<vmem>>, %arg4: memref<1x32xf32, #tpu.memory_space<vmem>>, %arg5: memref<1x8x16x32xf32, #tpu.memory_space<vmem>>) attributes {dimension_semantics = [#tpu.dimension_semantics<parallel>, #tpu.dimension_semantics<parallel>], iteration_bounds = array<i64: 2, 2>, scalar_prefetch = 0 : i64, scratch_operands = 0 : i64, tpu.core_type = #tpu.core_type<tc>, window_params = [{transform_indices = @transform_0, window_bounds = array<i64: 1, 1, 12, 20, 4>}, {pipeline_mode = #tpu.pipeline_mode<synchronous>, transform_indices = @transform_1, window_bounds = array<i64: 5, 5, 4, 32>}, {pipeline_mode = #tpu.pipeline_mode<synchronous>, transform_indices = @transform_2, window_bounds = array<i64: 1, 32>}, {transform_indices = @transform_3, window_bounds = array<i64: 1, 8, 16, 32>}]} {
    %c0 = arith.constant 0 : index
    %c0_0 = arith.constant 0 : index
    %c0_1 = arith.constant 0 : index
    %c0_2 = arith.constant 0 : index
    %c0_3 = arith.constant 0 : index
    %0 = vector.load %arg2[%c0, %c0_0, %c0_1, %c0_2, %c0_3] : memref<1x1x12x20x4xf32, #tpu.memory_space<vmem>>, vector<1x1x12x20x4xf32>
    %1 = vector.shape_cast %0 : vector<1x1x12x20x4xf32> to vector<12x20x4xf32>
    %cst = arith.constant 0.000000e+00 : f32
    %2 = vector.broadcast %cst : f32 to vector<128x32xf32>
    %3 = vector.extract_strided_slice %1 {offsets = [0, 0, 0], sizes = [8, 16, 4], strides = [1, 1, 1]} : vector<12x20x4xf32> to vector<8x16x4xf32>
    %4 = vector.shape_cast %3 : vector<8x16x4xf32> to vector<128x4xf32>
    %c0_4 = arith.constant 0 : index
    %c0_5 = arith.constant 0 : index
    %c0_6 = arith.constant 0 : index
    %c0_7 = arith.constant 0 : index
    %5 = vector.load %arg3[%c0_4, %c0_5, %c0_6, %c0_7] : memref<5x5x4x32xf32, #tpu.memory_space<vmem>>, vector<1x1x4x32xf32>
    %6 = vector.shape_cast %5 : vector<1x1x4x32xf32> to vector<4x32xf32>
    %cst_8 = arith.constant dense<0.000000e+00> : vector<128x32xf32>
    %7 = tpu.matmul %4, %6, %cst_8 {dimension_numbers = #tpu.dot_dimension_numbers<[1], [0], [0], [1], [0, 0, 1, 1], [], []>} : vector<128x4xf32>, vector<4x32xf32>, vector<128x32xf32> -> vector<128x32xf32>
    %8 = arith.addf %2, %7 : vector<128x32xf32>
    %9 = vector.extract_strided_slice %1 {offsets = [0, 1, 0], sizes = [8, 16, 4], strides = [1, 1, 1]} : vector<12x20x4xf32> to vector<8x16x4xf32>
    %10 = vector.shape_cast %9 : vector<8x16x4xf32> to vector<128x4xf32>
    %c0_9 = arith.constant 0 : index
    %c1 = arith.constant 1 : index
    %c0_10 = arith.constant 0 : index
    %c0_11 = arith.constant 0 : index
    %11 = vector.load %arg3[%c0_9, %c1, %c0_10, %c0_11] : memref<5x5x4x32xf32, #tpu.memory_space<vmem>>, vector<1x1x4x32xf32>
    %12 = vector.shape_cast %11 : vector<1x1x4x32xf32> to vector<4x32xf32>
    %cst_12 = arith.constant dense<0.000000e+00> : vector<128x32xf32>
    %13 = tpu.matmul %10, %12, %cst_12 {dimension_numbers = #tpu.dot_dimension_numbers<[1], [0], [0], [1], [0, 0, 1, 1], [], []>} : vector<128x4xf32>, vector<4x32xf32>, vector<128x32xf32> -> vector<128x32xf32>
    %14 = arith.addf %8, %13 : vector<128x32xf32>
    %15 = vector.extract_strided_slice %1 {offsets = [0, 2, 0], sizes = [8, 16, 4], strides = [1, 1, 1]} : vector<12x20x4xf32> to vector<8x16x4xf32>
    %16 = vector.shape_cast %15 : vector<8x16x4xf32> to vector<128x4xf32>
    %c0_13 = arith.constant 0 : index
    %c2 = arith.constant 2 : index
    %c0_14 = arith.constant 0 : index
    %c0_15 = arith.constant 0 : index
    %17 = vector.load %arg3[%c0_13, %c2, %c0_14, %c0_15] : memref<5x5x4x32xf32, #tpu.memory_space<vmem>>, vector<1x1x4x32xf32>
    %18 = vector.shape_cast %17 : vector<1x1x4x32xf32> to vector<4x32xf32>
    %cst_16 = arith.constant dense<0.000000e+00> : vector<128x32xf32>
    %19 = tpu.matmul %16, %18, %cst_16 {dimension_numbers = #tpu.dot_dimension_numbers<[1], [0], [0], [1], [0, 0, 1, 1], [], []>} : vector<128x4xf32>, vector<4x32xf32>, vector<128x32xf32> -> vector<128x32xf32>
    %20 = arith.addf %14, %19 : vector<128x32xf32>
    %21 = vector.extract_strided_slice %1 {offsets = [0, 3, 0], sizes = [8, 16, 4], strides = [1, 1, 1]} : vector<12x20x4xf32> to vector<8x16x4xf32>
    %22 = vector.shape_cast %21 : vector<8x16x4xf32> to vector<128x4xf32>
    %c0_17 = arith.constant 0 : index
    %c3 = arith.constant 3 : index
    %c0_18 = arith.constant 0 : index
    %c0_19 = arith.constant 0 : index
    %23 = vector.load %arg3[%c0_17, %c3, %c0_18, %c0_19] : memref<5x5x4x32xf32, #tpu.memory_space<vmem>>, vector<1x1x4x32xf32>
    %24 = vector.shape_cast %23 : vector<1x1x4x32xf32> to vector<4x32xf32>
    %cst_20 = arith.constant dense<0.000000e+00> : vector<128x32xf32>
    %25 = tpu.matmul %22, %24, %cst_20 {dimension_numbers = #tpu.dot_dimension_numbers<[1], [0], [0], [1], [0, 0, 1, 1], [], []>} : vector<128x4xf32>, vector<4x32xf32>, vector<128x32xf32> -> vector<128x32xf32>
    %26 = arith.addf %20, %25 : vector<128x32xf32>
    %27 = vector.extract_strided_slice %1 {offsets = [0, 4, 0], sizes = [8, 16, 4], strides = [1, 1, 1]} : vector<12x20x4xf32> to vector<8x16x4xf32>
    %28 = vector.shape_cast %27 : vector<8x16x4xf32> to vector<128x4xf32>
    %c0_21 = arith.constant 0 : index
    %c4 = arith.constant 4 : index
    %c0_22 = arith.constant 0 : index
    %c0_23 = arith.constant 0 : index
    %29 = vector.load %arg3[%c0_21, %c4, %c0_22, %c0_23] : memref<5x5x4x32xf32, #tpu.memory_space<vmem>>, vector<1x1x4x32xf32>
    %30 = vector.shape_cast %29 : vector<1x1x4x32xf32> to vector<4x32xf32>
    %cst_24 = arith.constant dense<0.000000e+00> : vector<128x32xf32>
    %31 = tpu.matmul %28, %30, %cst_24 {dimension_numbers = #tpu.dot_dimension_numbers<[1], [0], [0], [1], [0, 0, 1, 1], [], []>} : vector<128x4xf32>, vector<4x32xf32>, vector<128x32xf32> -> vector<128x32xf32>
    %32 = arith.addf %26, %31 : vector<128x32xf32>
    %33 = vector.extract_strided_slice %1 {offsets = [1, 0, 0], sizes = [8, 16, 4], strides = [1, 1, 1]} : vector<12x20x4xf32> to vector<8x16x4xf32>
    %34 = vector.shape_cast %33 : vector<8x16x4xf32> to vector<128x4xf32>
    %c1_25 = arith.constant 1 : index
    %c0_26 = arith.constant 0 : index
    %c0_27 = arith.constant 0 : index
    %c0_28 = arith.constant 0 : index
    %35 = vector.load %arg3[%c1_25, %c0_26, %c0_27, %c0_28] : memref<5x5x4x32xf32, #tpu.memory_space<vmem>>, vector<1x1x4x32xf32>
    %36 = vector.shape_cast %35 : vector<1x1x4x32xf32> to vector<4x32xf32>
    %cst_29 = arith.constant dense<0.000000e+00> : vector<128x32xf32>
    %37 = tpu.matmul %34, %36, %cst_29 {dimension_numbers = #tpu.dot_dimension_numbers<[1], [0], [0], [1], [0, 0, 1, 1], [], []>} : vector<128x4xf32>, vector<4x32xf32>, vector<128x32xf32> -> vector<128x32xf32>
    %38 = arith.addf %32, %37 : vector<128x32xf32>
    %39 = vector.extract_strided_slice %1 {offsets = [1, 1, 0], sizes = [8, 16, 4], strides = [1, 1, 1]} : vector<12x20x4xf32> to vector<8x16x4xf32>
    %40 = vector.shape_cast %39 : vector<8x16x4xf32> to vector<128x4xf32>
    %c1_30 = arith.constant 1 : index
    %c1_31 = arith.constant 1 : index
    %c0_32 = arith.constant 0 : index
    %c0_33 = arith.constant 0 : index
    %41 = vector.load %arg3[%c1_30, %c1_31, %c0_32, %c0_33] : memref<5x5x4x32xf32, #tpu.memory_space<vmem>>, vector<1x1x4x32xf32>
    %42 = vector.shape_cast %41 : vector<1x1x4x32xf32> to vector<4x32xf32>
    %cst_34 = arith.constant dense<0.000000e+00> : vector<128x32xf32>
    %43 = tpu.matmul %40, %42, %cst_34 {dimension_numbers = #tpu.dot_dimension_numbers<[1], [0], [0], [1], [0, 0, 1, 1], [], []>} : vector<128x4xf32>, vector<4x32xf32>, vector<128x32xf32> -> vector<128x32xf32>
    %44 = arith.addf %38, %43 : vector<128x32xf32>
    %45 = vector.extract_strided_slice %1 {offsets = [1, 2, 0], sizes = [8, 16, 4], strides = [1, 1, 1]} : vector<12x20x4xf32> to vector<8x16x4xf32>
    %46 = vector.shape_cast %45 : vector<8x16x4xf32> to vector<128x4xf32>
    %c1_35 = arith.constant 1 : index
    %c2_36 = arith.constant 2 : index
    %c0_37 = arith.constant 0 : index
    %c0_38 = arith.constant 0 : index
    %47 = vector.load %arg3[%c1_35, %c2_36, %c0_37, %c0_38] : memref<5x5x4x32xf32, #tpu.memory_space<vmem>>, vector<1x1x4x32xf32>
    %48 = vector.shape_cast %47 : vector<1x1x4x32xf32> to vector<4x32xf32>
    %cst_39 = arith.constant dense<0.000000e+00> : vector<128x32xf32>
    %49 = tpu.matmul %46, %48, %cst_39 {dimension_numbers = #tpu.dot_dimension_numbers<[1], [0], [0], [1], [0, 0, 1, 1], [], []>} : vector<128x4xf32>, vector<4x32xf32>, vector<128x32xf32> -> vector<128x32xf32>
    %50 = arith.addf %44, %49 : vector<128x32xf32>
    %51 = vector.extract_strided_slice %1 {offsets = [1, 3, 0], sizes = [8, 16, 4], strides = [1, 1, 1]} : vector<12x20x4xf32> to vector<8x16x4xf32>
    %52 = vector.shape_cast %51 : vector<8x16x4xf32> to vector<128x4xf32>
    %c1_40 = arith.constant 1 : index
    %c3_41 = arith.constant 3 : index
    %c0_42 = arith.constant 0 : index
    %c0_43 = arith.constant 0 : index
    %53 = vector.load %arg3[%c1_40, %c3_41, %c0_42, %c0_43] : memref<5x5x4x32xf32, #tpu.memory_space<vmem>>, vector<1x1x4x32xf32>
    %54 = vector.shape_cast %53 : vector<1x1x4x32xf32> to vector<4x32xf32>
    %cst_44 = arith.constant dense<0.000000e+00> : vector<128x32xf32>
    %55 = tpu.matmul %52, %54, %cst_44 {dimension_numbers = #tpu.dot_dimension_numbers<[1], [0], [0], [1], [0, 0, 1, 1], [], []>} : vector<128x4xf32>, vector<4x32xf32>, vector<128x32xf32> -> vector<128x32xf32>
    %56 = arith.addf %50, %55 : vector<128x32xf32>
    %57 = vector.extract_strided_slice %1 {offsets = [1, 4, 0], sizes = [8, 16, 4], strides = [1, 1, 1]} : vector<12x20x4xf32> to vector<8x16x4xf32>
    %58 = vector.shape_cast %57 : vector<8x16x4xf32> to vector<128x4xf32>
    %c1_45 = arith.constant 1 : index
    %c4_46 = arith.constant 4 : index
    %c0_47 = arith.constant 0 : index
    %c0_48 = arith.constant 0 : index
    %59 = vector.load %arg3[%c1_45, %c4_46, %c0_47, %c0_48] : memref<5x5x4x32xf32, #tpu.memory_space<vmem>>, vector<1x1x4x32xf32>
    %60 = vector.shape_cast %59 : vector<1x1x4x32xf32> to vector<4x32xf32>
    %cst_49 = arith.constant dense<0.000000e+00> : vector<128x32xf32>
    %61 = tpu.matmul %58, %60, %cst_49 {dimension_numbers = #tpu.dot_dimension_numbers<[1], [0], [0], [1], [0, 0, 1, 1], [], []>} : vector<128x4xf32>, vector<4x32xf32>, vector<128x32xf32> -> vector<128x32xf32>
    %62 = arith.addf %56, %61 : vector<128x32xf32>
    %63 = vector.extract_strided_slice %1 {offsets = [2, 0, 0], sizes = [8, 16, 4], strides = [1, 1, 1]} : vector<12x20x4xf32> to vector<8x16x4xf32>
    %64 = vector.shape_cast %63 : vector<8x16x4xf32> to vector<128x4xf32>
    %c2_50 = arith.constant 2 : index
    %c0_51 = arith.constant 0 : index
    %c0_52 = arith.constant 0 : index
    %c0_53 = arith.constant 0 : index
    %65 = vector.load %arg3[%c2_50, %c0_51, %c0_52, %c0_53] : memref<5x5x4x32xf32, #tpu.memory_space<vmem>>, vector<1x1x4x32xf32>
    %66 = vector.shape_cast %65 : vector<1x1x4x32xf32> to vector<4x32xf32>
    %cst_54 = arith.constant dense<0.000000e+00> : vector<128x32xf32>
    %67 = tpu.matmul %64, %66, %cst_54 {dimension_numbers = #tpu.dot_dimension_numbers<[1], [0], [0], [1], [0, 0, 1, 1], [], []>} : vector<128x4xf32>, vector<4x32xf32>, vector<128x32xf32> -> vector<128x32xf32>
    %68 = arith.addf %62, %67 : vector<128x32xf32>
    %69 = vector.extract_strided_slice %1 {offsets = [2, 1, 0], sizes = [8, 16, 4], strides = [1, 1, 1]} : vector<12x20x4xf32> to vector<8x16x4xf32>
    %70 = vector.shape_cast %69 : vector<8x16x4xf32> to vector<128x4xf32>
    %c2_55 = arith.constant 2 : index
    %c1_56 = arith.constant 1 : index
    %c0_57 = arith.constant 0 : index
    %c0_58 = arith.constant 0 : index
    %71 = vector.load %arg3[%c2_55, %c1_56, %c0_57, %c0_58] : memref<5x5x4x32xf32, #tpu.memory_space<vmem>>, vector<1x1x4x32xf32>
    %72 = vector.shape_cast %71 : vector<1x1x4x32xf32> to vector<4x32xf32>
    %cst_59 = arith.constant dense<0.000000e+00> : vector<128x32xf32>
    %73 = tpu.matmul %70, %72, %cst_59 {dimension_numbers = #tpu.dot_dimension_numbers<[1], [0], [0], [1], [0, 0, 1, 1], [], []>} : vector<128x4xf32>, vector<4x32xf32>, vector<128x32xf32> -> vector<128x32xf32>
    %74 = arith.addf %68, %73 : vector<128x32xf32>
    %75 = vector.extract_strided_slice %1 {offsets = [2, 2, 0], sizes = [8, 16, 4], strides = [1, 1, 1]} : vector<12x20x4xf32> to vector<8x16x4xf32>
    %76 = vector.shape_cast %75 : vector<8x16x4xf32> to vector<128x4xf32>
    %c2_60 = arith.constant 2 : index
    %c2_61 = arith.constant 2 : index
    %c0_62 = arith.constant 0 : index
    %c0_63 = arith.constant 0 : index
    %77 = vector.load %arg3[%c2_60, %c2_61, %c0_62, %c0_63] : memref<5x5x4x32xf32, #tpu.memory_space<vmem>>, vector<1x1x4x32xf32>
    %78 = vector.shape_cast %77 : vector<1x1x4x32xf32> to vector<4x32xf32>
    %cst_64 = arith.constant dense<0.000000e+00> : vector<128x32xf32>
    %79 = tpu.matmul %76, %78, %cst_64 {dimension_numbers = #tpu.dot_dimension_numbers<[1], [0], [0], [1], [0, 0, 1, 1], [], []>} : vector<128x4xf32>, vector<4x32xf32>, vector<128x32xf32> -> vector<128x32xf32>
    %80 = arith.addf %74, %79 : vector<128x32xf32>
    %81 = vector.extract_strided_slice %1 {offsets = [2, 3, 0], sizes = [8, 16, 4], strides = [1, 1, 1]} : vector<12x20x4xf32> to vector<8x16x4xf32>
    %82 = vector.shape_cast %81 : vector<8x16x4xf32> to vector<128x4xf32>
    %c2_65 = arith.constant 2 : index
    %c3_66 = arith.constant 3 : index
    %c0_67 = arith.constant 0 : index
    %c0_68 = arith.constant 0 : index
    %83 = vector.load %arg3[%c2_65, %c3_66, %c0_67, %c0_68] : memref<5x5x4x32xf32, #tpu.memory_space<vmem>>, vector<1x1x4x32xf32>
    %84 = vector.shape_cast %83 : vector<1x1x4x32xf32> to vector<4x32xf32>
    %cst_69 = arith.constant dense<0.000000e+00> : vector<128x32xf32>
    %85 = tpu.matmul %82, %84, %cst_69 {dimension_numbers = #tpu.dot_dimension_numbers<[1], [0], [0], [1], [0, 0, 1, 1], [], []>} : vector<128x4xf32>, vector<4x32xf32>, vector<128x32xf32> -> vector<128x32xf32>
    %86 = arith.addf %80, %85 : vector<128x32xf32>
    %87 = vector.extract_strided_slice %1 {offsets = [2, 4, 0], sizes = [8, 16, 4], strides = [1, 1, 1]} : vector<12x20x4xf32> to vector<8x16x4xf32>
    %88 = vector.shape_cast %87 : vector<8x16x4xf32> to vector<128x4xf32>
    %c2_70 = arith.constant 2 : index
    %c4_71 = arith.constant 4 : index
    %c0_72 = arith.constant 0 : index
    %c0_73 = arith.constant 0 : index
    %89 = vector.load %arg3[%c2_70, %c4_71, %c0_72, %c0_73] : memref<5x5x4x32xf32, #tpu.memory_space<vmem>>, vector<1x1x4x32xf32>
    %90 = vector.shape_cast %89 : vector<1x1x4x32xf32> to vector<4x32xf32>
    %cst_74 = arith.constant dense<0.000000e+00> : vector<128x32xf32>
    %91 = tpu.matmul %88, %90, %cst_74 {dimension_numbers = #tpu.dot_dimension_numbers<[1], [0], [0], [1], [0, 0, 1, 1], [], []>} : vector<128x4xf32>, vector<4x32xf32>, vector<128x32xf32> -> vector<128x32xf32>
    %92 = arith.addf %86, %91 : vector<128x32xf32>
    %93 = vector.extract_strided_slice %1 {offsets = [3, 0, 0], sizes = [8, 16, 4], strides = [1, 1, 1]} : vector<12x20x4xf32> to vector<8x16x4xf32>
    %94 = vector.shape_cast %93 : vector<8x16x4xf32> to vector<128x4xf32>
    %c3_75 = arith.constant 3 : index
    %c0_76 = arith.constant 0 : index
    %c0_77 = arith.constant 0 : index
    %c0_78 = arith.constant 0 : index
    %95 = vector.load %arg3[%c3_75, %c0_76, %c0_77, %c0_78] : memref<5x5x4x32xf32, #tpu.memory_space<vmem>>, vector<1x1x4x32xf32>
    %96 = vector.shape_cast %95 : vector<1x1x4x32xf32> to vector<4x32xf32>
    %cst_79 = arith.constant dense<0.000000e+00> : vector<128x32xf32>
    %97 = tpu.matmul %94, %96, %cst_79 {dimension_numbers = #tpu.dot_dimension_numbers<[1], [0], [0], [1], [0, 0, 1, 1], [], []>} : vector<128x4xf32>, vector<4x32xf32>, vector<128x32xf32> -> vector<128x32xf32>
    %98 = arith.addf %92, %97 : vector<128x32xf32>
    %99 = vector.extract_strided_slice %1 {offsets = [3, 1, 0], sizes = [8, 16, 4], strides = [1, 1, 1]} : vector<12x20x4xf32> to vector<8x16x4xf32>
    %100 = vector.shape_cast %99 : vector<8x16x4xf32> to vector<128x4xf32>
    %c3_80 = arith.constant 3 : index
    %c1_81 = arith.constant 1 : index
    %c0_82 = arith.constant 0 : index
    %c0_83 = arith.constant 0 : index
    %101 = vector.load %arg3[%c3_80, %c1_81, %c0_82, %c0_83] : memref<5x5x4x32xf32, #tpu.memory_space<vmem>>, vector<1x1x4x32xf32>
    %102 = vector.shape_cast %101 : vector<1x1x4x32xf32> to vector<4x32xf32>
    %cst_84 = arith.constant dense<0.000000e+00> : vector<128x32xf32>
    %103 = tpu.matmul %100, %102, %cst_84 {dimension_numbers = #tpu.dot_dimension_numbers<[1], [0], [0], [1], [0, 0, 1, 1], [], []>} : vector<128x4xf32>, vector<4x32xf32>, vector<128x32xf32> -> vector<128x32xf32>
    %104 = arith.addf %98, %103 : vector<128x32xf32>
    %105 = vector.extract_strided_slice %1 {offsets = [3, 2, 0], sizes = [8, 16, 4], strides = [1, 1, 1]} : vector<12x20x4xf32> to vector<8x16x4xf32>
    %106 = vector.shape_cast %105 : vector<8x16x4xf32> to vector<128x4xf32>
    %c3_85 = arith.constant 3 : index
    %c2_86 = arith.constant 2 : index
    %c0_87 = arith.constant 0 : index
    %c0_88 = arith.constant 0 : index
    %107 = vector.load %arg3[%c3_85, %c2_86, %c0_87, %c0_88] : memref<5x5x4x32xf32, #tpu.memory_space<vmem>>, vector<1x1x4x32xf32>
    %108 = vector.shape_cast %107 : vector<1x1x4x32xf32> to vector<4x32xf32>
    %cst_89 = arith.constant dense<0.000000e+00> : vector<128x32xf32>
    %109 = tpu.matmul %106, %108, %cst_89 {dimension_numbers = #tpu.dot_dimension_numbers<[1], [0], [0], [1], [0, 0, 1, 1], [], []>} : vector<128x4xf32>, vector<4x32xf32>, vector<128x32xf32> -> vector<128x32xf32>
    %110 = arith.addf %104, %109 : vector<128x32xf32>
    %111 = vector.extract_strided_slice %1 {offsets = [3, 3, 0], sizes = [8, 16, 4], strides = [1, 1, 1]} : vector<12x20x4xf32> to vector<8x16x4xf32>
    %112 = vector.shape_cast %111 : vector<8x16x4xf32> to vector<128x4xf32>
    %c3_90 = arith.constant 3 : index
    %c3_91 = arith.constant 3 : index
    %c0_92 = arith.constant 0 : index
    %c0_93 = arith.constant 0 : index
    %113 = vector.load %arg3[%c3_90, %c3_91, %c0_92, %c0_93] : memref<5x5x4x32xf32, #tpu.memory_space<vmem>>, vector<1x1x4x32xf32>
    %114 = vector.shape_cast %113 : vector<1x1x4x32xf32> to vector<4x32xf32>
    %cst_94 = arith.constant dense<0.000000e+00> : vector<128x32xf32>
    %115 = tpu.matmul %112, %114, %cst_94 {dimension_numbers = #tpu.dot_dimension_numbers<[1], [0], [0], [1], [0, 0, 1, 1], [], []>} : vector<128x4xf32>, vector<4x32xf32>, vector<128x32xf32> -> vector<128x32xf32>
    %116 = arith.addf %110, %115 : vector<128x32xf32>
    %117 = vector.extract_strided_slice %1 {offsets = [3, 4, 0], sizes = [8, 16, 4], strides = [1, 1, 1]} : vector<12x20x4xf32> to vector<8x16x4xf32>
    %118 = vector.shape_cast %117 : vector<8x16x4xf32> to vector<128x4xf32>
    %c3_95 = arith.constant 3 : index
    %c4_96 = arith.constant 4 : index
    %c0_97 = arith.constant 0 : index
    %c0_98 = arith.constant 0 : index
    %119 = vector.load %arg3[%c3_95, %c4_96, %c0_97, %c0_98] : memref<5x5x4x32xf32, #tpu.memory_space<vmem>>, vector<1x1x4x32xf32>
    %120 = vector.shape_cast %119 : vector<1x1x4x32xf32> to vector<4x32xf32>
    %cst_99 = arith.constant dense<0.000000e+00> : vector<128x32xf32>
    %121 = tpu.matmul %118, %120, %cst_99 {dimension_numbers = #tpu.dot_dimension_numbers<[1], [0], [0], [1], [0, 0, 1, 1], [], []>} : vector<128x4xf32>, vector<4x32xf32>, vector<128x32xf32> -> vector<128x32xf32>
    %122 = arith.addf %116, %121 : vector<128x32xf32>
    %123 = vector.extract_strided_slice %1 {offsets = [4, 0, 0], sizes = [8, 16, 4], strides = [1, 1, 1]} : vector<12x20x4xf32> to vector<8x16x4xf32>
    %124 = vector.shape_cast %123 : vector<8x16x4xf32> to vector<128x4xf32>
    %c4_100 = arith.constant 4 : index
    %c0_101 = arith.constant 0 : index
    %c0_102 = arith.constant 0 : index
    %c0_103 = arith.constant 0 : index
    %125 = vector.load %arg3[%c4_100, %c0_101, %c0_102, %c0_103] : memref<5x5x4x32xf32, #tpu.memory_space<vmem>>, vector<1x1x4x32xf32>
    %126 = vector.shape_cast %125 : vector<1x1x4x32xf32> to vector<4x32xf32>
    %cst_104 = arith.constant dense<0.000000e+00> : vector<128x32xf32>
    %127 = tpu.matmul %124, %126, %cst_104 {dimension_numbers = #tpu.dot_dimension_numbers<[1], [0], [0], [1], [0, 0, 1, 1], [], []>} : vector<128x4xf32>, vector<4x32xf32>, vector<128x32xf32> -> vector<128x32xf32>
    %128 = arith.addf %122, %127 : vector<128x32xf32>
    %129 = vector.extract_strided_slice %1 {offsets = [4, 1, 0], sizes = [8, 16, 4], strides = [1, 1, 1]} : vector<12x20x4xf32> to vector<8x16x4xf32>
    %130 = vector.shape_cast %129 : vector<8x16x4xf32> to vector<128x4xf32>
    %c4_105 = arith.constant 4 : index
    %c1_106 = arith.constant 1 : index
    %c0_107 = arith.constant 0 : index
    %c0_108 = arith.constant 0 : index
    %131 = vector.load %arg3[%c4_105, %c1_106, %c0_107, %c0_108] : memref<5x5x4x32xf32, #tpu.memory_space<vmem>>, vector<1x1x4x32xf32>
    %132 = vector.shape_cast %131 : vector<1x1x4x32xf32> to vector<4x32xf32>
    %cst_109 = arith.constant dense<0.000000e+00> : vector<128x32xf32>
    %133 = tpu.matmul %130, %132, %cst_109 {dimension_numbers = #tpu.dot_dimension_numbers<[1], [0], [0], [1], [0, 0, 1, 1], [], []>} : vector<128x4xf32>, vector<4x32xf32>, vector<128x32xf32> -> vector<128x32xf32>
    %134 = arith.addf %128, %133 : vector<128x32xf32>
    %135 = vector.extract_strided_slice %1 {offsets = [4, 2, 0], sizes = [8, 16, 4], strides = [1, 1, 1]} : vector<12x20x4xf32> to vector<8x16x4xf32>
    %136 = vector.shape_cast %135 : vector<8x16x4xf32> to vector<128x4xf32>
    %c4_110 = arith.constant 4 : index
    %c2_111 = arith.constant 2 : index
    %c0_112 = arith.constant 0 : index
    %c0_113 = arith.constant 0 : index
    %137 = vector.load %arg3[%c4_110, %c2_111, %c0_112, %c0_113] : memref<5x5x4x32xf32, #tpu.memory_space<vmem>>, vector<1x1x4x32xf32>
    %138 = vector.shape_cast %137 : vector<1x1x4x32xf32> to vector<4x32xf32>
    %cst_114 = arith.constant dense<0.000000e+00> : vector<128x32xf32>
    %139 = tpu.matmul %136, %138, %cst_114 {dimension_numbers = #tpu.dot_dimension_numbers<[1], [0], [0], [1], [0, 0, 1, 1], [], []>} : vector<128x4xf32>, vector<4x32xf32>, vector<128x32xf32> -> vector<128x32xf32>
    %140 = arith.addf %134, %139 : vector<128x32xf32>
    %141 = vector.extract_strided_slice %1 {offsets = [4, 3, 0], sizes = [8, 16, 4], strides = [1, 1, 1]} : vector<12x20x4xf32> to vector<8x16x4xf32>
    %142 = vector.shape_cast %141 : vector<8x16x4xf32> to vector<128x4xf32>
    %c4_115 = arith.constant 4 : index
    %c3_116 = arith.constant 3 : index
    %c0_117 = arith.constant 0 : index
    %c0_118 = arith.constant 0 : index
    %143 = vector.load %arg3[%c4_115, %c3_116, %c0_117, %c0_118] : memref<5x5x4x32xf32, #tpu.memory_space<vmem>>, vector<1x1x4x32xf32>
    %144 = vector.shape_cast %143 : vector<1x1x4x32xf32> to vector<4x32xf32>
    %cst_119 = arith.constant dense<0.000000e+00> : vector<128x32xf32>
    %145 = tpu.matmul %142, %144, %cst_119 {dimension_numbers = #tpu.dot_dimension_numbers<[1], [0], [0], [1], [0, 0, 1, 1], [], []>} : vector<128x4xf32>, vector<4x32xf32>, vector<128x32xf32> -> vector<128x32xf32>
    %146 = arith.addf %140, %145 : vector<128x32xf32>
    %147 = vector.extract_strided_slice %1 {offsets = [4, 4, 0], sizes = [8, 16, 4], strides = [1, 1, 1]} : vector<12x20x4xf32> to vector<8x16x4xf32>
    %148 = vector.shape_cast %147 : vector<8x16x4xf32> to vector<128x4xf32>
    %c4_120 = arith.constant 4 : index
    %c4_121 = arith.constant 4 : index
    %c0_122 = arith.constant 0 : index
    %c0_123 = arith.constant 0 : index
    %149 = vector.load %arg3[%c4_120, %c4_121, %c0_122, %c0_123] : memref<5x5x4x32xf32, #tpu.memory_space<vmem>>, vector<1x1x4x32xf32>
    %150 = vector.shape_cast %149 : vector<1x1x4x32xf32> to vector<4x32xf32>
    %cst_124 = arith.constant dense<0.000000e+00> : vector<128x32xf32>
    %151 = tpu.matmul %148, %150, %cst_124 {dimension_numbers = #tpu.dot_dimension_numbers<[1], [0], [0], [1], [0, 0, 1, 1], [], []>} : vector<128x4xf32>, vector<4x32xf32>, vector<128x32xf32> -> vector<128x32xf32>
    %152 = arith.addf %146, %151 : vector<128x32xf32>
    %c0_125 = arith.constant 0 : index
    %c0_126 = arith.constant 0 : index
    %153 = vector.load %arg4[%c0_125, %c0_126] : memref<1x32xf32, #tpu.memory_space<vmem>>, vector<1x32xf32>
    %154 = vector.broadcast %153 : vector<1x32xf32> to vector<128x32xf32>
    %155 = arith.addf %152, %154 : vector<128x32xf32>
    %156 = vector.shape_cast %155 : vector<128x32xf32> to vector<8x16x32xf32>
    %c0_127 = arith.constant 0 : index
    %c0_128 = arith.constant 0 : index
    %c0_129 = arith.constant 0 : index
    %c0_130 = arith.constant 0 : index
    %157 = vector.load %arg5[%c0_127, %c0_128, %c0_129, %c0_130] : memref<1x8x16x32xf32, #tpu.memory_space<vmem>>, vector<1x8x16x32xf32>
    %158 = vector.shape_cast %157 : vector<1x8x16x32xf32> to vector<8x16x32xf32>
    %159 = vector.shape_cast %156 : vector<8x16x32xf32> to vector<1x8x16x32xf32>
    tpu.vector_store %arg5[%c0_127, %c0_128, %c0_129, %c0_130], %159 {strides = array<i32>} : memref<1x8x16x32xf32, #tpu.memory_space<vmem>>, vector<1x8x16x32xf32>,
    return
  }
  func.func @transform_0(%arg0: i32, %arg1: i32) -> (i32, i32, i32, i32, i32) {
    %c0_i32 = arith.constant 0 : i32
    %c0_i32_0 = arith.constant 0 : i32
    %c0_i32_1 = arith.constant 0 : i32
    %c0_i32_2 = arith.constant 0 : i32
    return %arg0, %arg1, %c0_i32, %c0_i32_0, %c0_i32_1 : i32, i32, i32, i32, i32
  }
  func.func @transform_1(%arg0: i32, %arg1: i32) -> (i32, i32, i32, i32) {
    %c0_i32 = arith.constant 0 : i32
    %c0_i32_0 = arith.constant 0 : i32
    %c0_i32_1 = arith.constant 0 : i32
    %c0_i32_2 = arith.constant 0 : i32
    %c0_i32_3 = arith.constant 0 : i32
    return %c0_i32, %c0_i32_0, %c0_i32_1, %c0_i32_2 : i32, i32, i32, i32
  }
  func.func @transform_2(%arg0: i32, %arg1: i32) -> (i32, i32) {
    %c0_i32 = arith.constant 0 : i32
    %c0_i32_0 = arith.constant 0 : i32
    %c0_i32_1 = arith.constant 0 : i32
    return %c0_i32, %c0_i32_0 : i32, i32
  }
  func.func @transform_3(%arg0: i32, %arg1: i32) -> (i32, i32, i32, i32) {
    %c0_i32 = arith.constant 0 : i32
    %c0_i32_0 = arith.constant 0 : i32
    %c0_i32_1 = arith.constant 0 : i32
    return %arg0, %arg1, %c0_i32, %c0_i32_0 : i32, i32, i32, i32
  }
}

</mosaic_0001>

<llo_original>
// kernel: tpu_custom_call.1
$region0: #{tpu_custom_call.1}
  #allocation0 [shape = 'u32[]', space=smem, size = 0x4, offset = 0x4, fixed_abs, tag = 'smem constant byte address 0x4 - core index']
  #allocation1 [shape = 'u32[72,128]{1,0:T(1,128)}', space=vmem, size = 0x9000, scoped, tag = 'internal scratch']
  %s0 = inlined_call_operand.vmem [shape: f32[2,2,12,20,4], index: 0, kind: input, shape index: {}]
  %s1 = inlined_call_operand.vmem [shape: f32[5,5,4,32], index: 1, kind: input, shape index: {}]
  %s2 = inlined_call_operand.vmem [shape: f32[1,32], index: 2, kind: input, shape index: {}]
  %s3 = inlined_call_operand.hbm [shape: f32[2,16,16,32], index: 3, kind: output, shape index: {}]
  %s4 = sld [smem:[#allocation0]]
  $region45: #{tpu_custom_call.1} parent=0
    _
  %s6 = ssub.s32 1, %s4
  %s7 = scalar_select 0, %s6, %s4
  $region1: #{tpu_custom_call.1} parent=0
    #allocation2 [shape = 'u8[131072]{0}', space=vmem, size = 0x20000, scoped, tag = 'output window, operand 0']
    #allocation3 [shape = 's32[2]{0}', space=sflag, size = 0x8, scoped, tag = 'scoped memory for tpu_custom_call.1']
    %8 = vsyncpa [#allocation3], 0
    %s9 = scalar_lea.sflag [#allocation3], 1
    %10 = vsyncpa %s9, 0
    loop: start=0, step=1, limit=6
    $region2: #{tpu_custom_call.1} parent=1 // loop_pre_header
      _
    $region3: #{tpu_custom_call.1} parent=1 // loop_header
      %s12 = sphi 0, %s16
      %p13 = scmp.ge.s32.totalorder %s12, 6
      %s19 = sphi 0, %s31
      %s20 = sphi 0, %s27
      %s21 = sphi 0, %s19
      %s22 = sphi 0, %s20
      %s23 = sphi 0, %s21
      %s24 = sphi 0, %s22
      %s36 = sphi 0, %s38
      %s39 = sphi 0, %s36
      %s40 = sphi 0, %s39
      %s56 = sphi 0, %s40
      %s60 = sphi 0, %s60
      %s62 = sphi 0, %s60
      %s63 = sphi 0, %s62
      %s77 = sphi 0, %s63
      %s81 = sphi 0, %s81
      %s83 = sphi 0, %s81
      %s84 = sphi 0, %s83
      %s98 = sphi 0, %s84
      %s106 = sphi 0, %s108
      %s109 = sphi 0, %s106
      %s110 = sphi 0, %s109
      %s126 = sphi 0, %s110
    $region4: #{tpu_custom_call.1} parent=1 // loop_header_branch
      %15 = sbr.rel (%p13) target = $region8
    $region5: #{tpu_custom_call.1} parent=1 // loop_body
      %s17 = ssub.s32 %s12, 1
      %s18 = ssub.s32 %s12, 2
      %s25 = sadd.s32 1, %s20
      %p26 = scmp.ge.s32.totalorder %s25, 2
      %s27 = scalar_select %p26, 0, %s25
      %s28 = sadd.s32 1, %s19
      %s29 = scalar_select %p26, %s28, %s19
      %p30 = scmp.ge.s32.totalorder %s29, 2
      %s31 = scalar_select %p30, 0, %s29
      %s32 = ssub.s32 %s19, %s31
      %s33 = ssub.s32 %s20, %s27
      %s34 = sor.u32 %s32, %s33
      %p35 = scmp.eq.s32.totalorder %s34, 0
      %s37 = sadd.s32 %s36, 1
      %s38 = scalar_select %p35, %s36, %s37
      %p41 = pneg %p35
      %p42 = scmp.eq.s32.totalorder %s12, 3
      %p43 = por %p41, %p42
      %p44 = scmp.ne.s32.totalorder %s36, %s39
      %p45 = scmp.eq.s32.totalorder %s12, 0
      %p46 = por %p44, %p45
      %p47 = scmp.ne.s32.totalorder %s36, %s39
      %p48 = scmp.eq.s32.totalorder %s17, 3
      %p49 = por %p47, %p48
      %p50 = scmp.ne.s32.totalorder %s39, %s40
      %p51 = scmp.eq.s32.totalorder %s17, 0
      %p52 = por %p50, %p51
      %p53 = scmp.ne.s32.totalorder %s39, %s40
      %p54 = scmp.eq.s32.totalorder %s18, 3
      %p55 = por %p53, %p54
      %p57 = scmp.ne.s32.totalorder %s40, %s56
      %p58 = scmp.eq.s32.totalorder %s18, 0
      %p59 = por %p57, %p58
      %s61 = sadd.s32 %s60, 1
      %p64 = scmp.eq.s32.totalorder %s12, 3
      %p65 = scmp.ne.s32.totalorder %s60, %s62
      %p66 = scmp.eq.s32.totalorder %s12, 0
      %p67 = por %p65, %p66
      %p68 = scmp.ne.s32.totalorder %s60, %s62
      %p69 = scmp.eq.s32.totalorder %s17, 3
      %p70 = por %p68, %p69
      %p71 = scmp.ne.s32.totalorder %s62, %s63
      %p72 = scmp.eq.s32.totalorder %s17, 0
      %p73 = por %p71, %p72
      %p74 = scmp.ne.s32.totalorder %s62, %s63
      %p75 = scmp.eq.s32.totalorder %s18, 3
      %p76 = por %p74, %p75
      %p78 = scmp.ne.s32.totalorder %s63, %s77
      %p79 = scmp.eq.s32.totalorder %s18, 0
      %p80 = por %p78, %p79
      %s82 = sadd.s32 %s81, 1
      %p85 = scmp.eq.s32.totalorder %s12, 3
      %p86 = scmp.ne.s32.totalorder %s81, %s83
      %p87 = scmp.eq.s32.totalorder %s12, 0
      %p88 = por %p86, %p87
      %p89 = scmp.ne.s32.totalorder %s81, %s83
      %p90 = scmp.eq.s32.totalorder %s17, 3
      %p91 = por %p89, %p90
      %p92 = scmp.ne.s32.totalorder %s83, %s84
      %p93 = scmp.eq.s32.totalorder %s17, 0
      %p94 = por %p92, %p93
      %p95 = scmp.ne.s32.totalorder %s83, %s84
      %p96 = scmp.eq.s32.totalorder %s18, 3
      %p97 = por %p95, %p96
      %p99 = scmp.ne.s32.totalorder %s84, %s98
      %p100 = scmp.eq.s32.totalorder %s18, 0
      %p101 = por %p99, %p100
      %s102 = ssub.s32 %s19, %s31
      %s103 = ssub.s32 %s20, %s27
      %s104 = sor.u32 %s102, %s103
      %p105 = scmp.eq.s32.totalorder %s104, 0
      %s107 = sadd.s32 %s106, 1
      %s108 = scalar_select %p105, %s106, %s107
      %p111 = pneg %p105
      %p112 = scmp.eq.s32.totalorder %s12, 3
      %p113 = por %p111, %p112
      %p114 = scmp.ne.s32.totalorder %s106, %s109
      %p115 = scmp.eq.s32.totalorder %s12, 0
      %p116 = por %p114, %p115
      %p117 = scmp.ne.s32.totalorder %s106, %s109
      %p118 = scmp.eq.s32.totalorder %s17, 3
      %p119 = por %p117, %p118
      %p120 = scmp.ne.s32.totalorder %s109, %s110
      %p121 = scmp.eq.s32.totalorder %s17, 0
      %p122 = por %p120, %p121
      %p123 = scmp.ne.s32.totalorder %s109, %s110
      %p124 = scmp.eq.s32.totalorder %s18, 3
      %p125 = por %p123, %p124
      %p127 = scmp.ne.s32.totalorder %s110, %s126
      %p128 = scmp.eq.s32.totalorder %s18, 0
      %p129 = por %p127, %p128
      %p130 = scmp.le.s32.totalorder 1, %s12
      %p131 = scmp.lt.s32.totalorder %s12, 5
      %p132 = pnand %p130, %p131
      %p133 = pneg %p132
      // Predicated region
      $region9: #{tpu_custom_call.1} parent=5 // pred_check
        _
      $region10: #{tpu_custom_call.1} parent=5 // pred_check_branch
        %135 = sbr.rel (%p132) target = $region12
      $region11: #{tpu_custom_call.1} parent=5 // pred_region
        %s136 = ssub.s32 %s12, 1
        // Predicated region
        $region13: #{tpu_custom_call.1} parent=11 // pred_check
          %p137 = pneg %p73
        $region14: #{tpu_custom_call.1} parent=11 // pred_check_branch
          %139 = sbr.rel (%p137) target = $region16
        $region15: #{tpu_custom_call.1} parent=11 // pred_region
          _
        $region16: #{tpu_custom_call.1} parent=11 // pred_fallthru
          _
        // Predicated region
        $region17: #{tpu_custom_call.1} parent=11 // pred_check
          %p140 = pneg %p94
        $region18: #{tpu_custom_call.1} parent=11 // pred_check_branch
          %142 = sbr.rel (%p140) target = $region20
        $region19: #{tpu_custom_call.1} parent=11 // pred_region
          _
        $region20: #{tpu_custom_call.1} parent=11 // pred_fallthru
          _
      $region12: #{tpu_custom_call.1} parent=5 // pred_fallthru
        _
      %p143 = scmp.lt.s32.totalorder %s12, 4
      // Predicated region
      $region21: #{tpu_custom_call.1} parent=5 // pred_check
        %p144 = pneg %p143
      $region22: #{tpu_custom_call.1} parent=5 // pred_check_branch
        %146 = sbr.rel (%p144) target = $region24
      $region23: #{tpu_custom_call.1} parent=5 // pred_region
        // Predicated region
        $region25: #{tpu_custom_call.1} parent=23 // pred_check
          %p147 = pneg %p46
        $region26: #{tpu_custom_call.1} parent=23 // pred_check_branch
          %149 = sbr.rel (%p147) target = $region28
        $region27: #{tpu_custom_call.1} parent=23 // pred_region
          %p150 = scmp.lt.s32.totalorder %s19, 1
          %s151 = scalar_select %p150, %s19, 1
          %p152 = scmp.lt.s32.totalorder %s20, 1
          %s153 = scalar_select %p152, %s20, 1
          %s154 = smul.addr %s153, 36
          %s155 = smul.addr %s151, 72
          %s156 = sadd.s32 %s154, %s155
          %s157 = smul.addr %s156, 8
          %s158 = scalar_lea.vmem %s0, %s157
        $region28: #{tpu_custom_call.1} parent=23 // pred_fallthru
          _
      $region24: #{tpu_custom_call.1} parent=5 // pred_fallthru
        _
      %p159 = scmp.le.s32.totalorder 1, %s12
      %p160 = scmp.lt.s32.totalorder %s12, 5
      %p161 = pnand %p159, %p160
      %p162 = pneg %p161
      // Predicated region
      $region29: #{tpu_custom_call.1} parent=5 // pred_check
        _
      $region30: #{tpu_custom_call.1} parent=5 // pred_check_branch
        %164 = sbr.rel (%p161) target = $region32
      $region31: #{tpu_custom_call.1} parent=5 // pred_region
        %s165 = ssub.s32 %s12, 1
        %p166 = scmp.lt.s32.totalorder %s21, 1
        %s167 = scalar_select %p166, %s21, 1
        %p168 = scmp.lt.s32.totalorder %s22, 1
        %s169 = scalar_select %p168, %s22, 1
        %s170 = smul.addr %s169, 36
        %s171 = smul.addr %s167, 72
        %s172 = sadd.s32 %s170, %s171
        %s173 = smul.addr %s172, 8
        %s174 = scalar_lea.vmem %s0, %s173
        %p175 = pneg %p52
        %p176 = pneg %p49
        %p177 = pneg %p73
        %p178 = pneg %p70
        %p179 = pneg %p94
        %p180 = pneg %p91
        %p181 = pneg %p122
        %p182 = pneg %p119
        %s183 = sand.u32 %s109, 1
        %s184 = scalar_lea.sflag [#allocation3], %s183
        %s185 = sand.u32 %s109, 1
        %s186 = smul.addr %s185, 128
        %s187 = scalar_lea.vmem [#allocation2], %s186
        %p188 = scmp.lt.s32.totalorder %s21, 1
        %s189 = scalar_select %p188, %s21, 1
        %p190 = scmp.lt.s32.totalorder %s22, 1
        %s191 = scalar_select %p190, %s22, 1
        %s192 = smul.addr %s191, 36
        %s193 = smul.addr %s189, 72
        %s194 = sadd.s32 %s192, %s193
        %s195 = smul.addr %s194, 8
        %s196 = scalar_lea.vmem %s0, %s195
        %s197 = smul.u32 8, %s22
        %v198 = vld [vmem:[%s196] sm:$0xff]
        %v199 = vld [vmem:[%s196 + $0x8] sm:$0xff]
        %v200 = vld [vmem:[%s196 + $0x10] sm:$0xf]
        %v201 = vld [vmem:[%s196 + $0x18] sm:$0xff]
        %v202 = vld [vmem:[%s196 + $0x20] sm:$0xff]
        %v203 = vld [vmem:[%s196 + $0x28] sm:$0xf]
        %v204 = vld [vmem:[%s196 + $0x30] sm:$0xff]
        %v205 = vld [vmem:[%s196 + $0x38] sm:$0xff]
        %v206 = vld [vmem:[%s196 + $0x40] sm:$0xf]
        %v207 = vld [vmem:[%s196 + $0x48] sm:$0xff]
        %v208 = vld [vmem:[%s196 + $0x50] sm:$0xff]
        %v209 = vld [vmem:[%s196 + $0x58] sm:$0xf]
        %v210 = vld [vmem:[%s196 + $0x60] sm:$0xff]
        %v211 = vld [vmem:[%s196 + $0x68] sm:$0xff]
        %v212 = vld [vmem:[%s196 + $0x70] sm:$0xf]
        %v213 = vld [vmem:[%s196 + $0x78] sm:$0xff]
        %v214 = vld [vmem:[%s196 + $0x80] sm:$0xff]
        %v215 = vld [vmem:[%s196 + $0x88] sm:$0xf]
        %v216 = vld [vmem:[%s196 + $0x90] sm:$0xff]
        %v217 = vld [vmem:[%s196 + $0x98] sm:$0xff]
        %v218 = vld [vmem:[%s196 + $0xa0] sm:$0xf]
        %v219 = vld [vmem:[%s196 + $0xa8] sm:$0xff]
        %v220 = vld [vmem:[%s196 + $0xb0] sm:$0xff]
        %v221 = vld [vmem:[%s196 + $0xb8] sm:$0xf]
        %v222 = vld [vmem:[%s196 + $0xc0] sm:$0xff]
        %v223 = vld [vmem:[%s196 + $0xc8] sm:$0xff]
        %v224 = vld [vmem:[%s196 + $0xd0] sm:$0xf]
        %v225 = vld [vmem:[%s196 + $0xd8] sm:$0xff]
        %v226 = vld [vmem:[%s196 + $0xe0] sm:$0xff]
        %v227 = vld [vmem:[%s196 + $0xe8] sm:$0xf]
        %v228 = vld [vmem:[%s196 + $0xf0] sm:$0xff]
        %v229 = vld [vmem:[%s196 + $0xf8] sm:$0xff]
        %v230 = vld [vmem:[%s196 + $0x100] sm:$0xf]
        %v231 = vld [vmem:[%s196 + $0x108] sm:$0xff]
        %v232 = vld [vmem:[%s196 + $0x110] sm:$0xff]
        %v233 = vld [vmem:[%s196 + $0x118] sm:$0xf]
        %v234 = vld [vmem:[%s1] sm:$0xf]
        %vm259 = vcmask 1046528
        %v260 = vrot.slane %v198, 1
        %v261 = vrot.slane %v199, 1
        %v262 = vsel %vm259, %v260, %v261
        %v263 = vrot.slane %v200, 1
        %v264 = vsel %vm259, %v261, %v263
        %v265 = vrot.slane %v201, 1
        %v266 = vrot.slane %v202, 1
        %v267 = vsel %vm259, %v265, %v266
        %v268 = vrot.slane %v203, 1
        %v269 = vsel %vm259, %v266, %v268
        %v270 = vrot.slane %v204, 1
        %v271 = vrot.slane %v205, 1
        %v272 = vsel %vm259, %v270, %v271
        %v273 = vrot.slane %v206, 1
        %v274 = vsel %vm259, %v271, %v273
        %v275 = vrot.slane %v207, 1
        %v276 = vrot.slane %v208, 1
        %v277 = vsel %vm259, %v275, %v276
        %v278 = vrot.slane %v209, 1
        %v279 = vsel %vm259, %v276, %v278
        %v280 = vrot.slane %v210, 1
        %v281 = vrot.slane %v211, 1
        %v282 = vsel %vm259, %v280, %v281
        %v283 = vrot.slane %v212, 1
        %v284 = vsel %vm259, %v281, %v283
        %v285 = vrot.slane %v213, 1
        %v286 = vrot.slane %v214, 1
        %v287 = vsel %vm259, %v285, %v286
        %v288 = vrot.slane %v215, 1
        %v289 = vsel %vm259, %v286, %v288
        %v290 = vrot.slane %v216, 1
        %v291 = vrot.slane %v217, 1
        %v292 = vsel %vm259, %v290, %v291
        %v293 = vrot.slane %v218, 1
        %v294 = vsel %vm259, %v291, %v293
        %v295 = vrot.slane %v219, 1
        %v296 = vrot.slane %v220, 1
        %v297 = vsel %vm259, %v295, %v296
        %v298 = vrot.slane %v221, 1
        %v299 = vsel %vm259, %v296, %v298
        %s300 = scalar_lea.vmem %s1, 4
        %v301 = vld [vmem:[%s300] sm:$0xf]
        %vm302 = vcmask 31744
        %v303 = vsel %vm302, %v262, 0
        %v305 = vsel %vm302, %v264, 0
        %v307 = vsel %vm302, %v267, 0
        %v309 = vsel %vm302, %v269, 0
        %v311 = vsel %vm302, %v272, 0
        %v313 = vsel %vm302, %v274, 0
        %v315 = vsel %vm302, %v277, 0
        %v317 = vsel %vm302, %v279, 0
        %v319 = vsel %vm302, %v282, 0
        %v321 = vsel %vm302, %v284, 0
        %v323 = vsel %vm302, %v287, 0
        %v325 = vsel %vm302, %v289, 0
        %v327 = vsel %vm302, %v292, 0
        %v329 = vsel %vm302, %v294, 0
        %v331 = vsel %vm302, %v297, 0
        %v333 = vsel %vm302, %v299, 0
        %vm335 = vcmask 1043456
        %v337 = vsel %vm335, %v301, 0
        %339 = vmatpush.msra.mxu0 0.0
        %340 = vmatpush.msra.mxu0 0.0
        %341 = vmatpush.msra.mxu0 0.0
        %342 = vmatpush.msra.mxu0 0.0
        %343 = vmatpush.msra.mxu0 0.0
        %344 = vmatpush.msra.mxu0 0.0
        %345 = vmatpush.msra.mxu0 0.0
        %346 = vmatpush.msra.mxu0 0.0
        %347 = vmatpush.msra.mxu0 0.0
        %348 = vmatpush.msra.mxu0 0.0
        %349 = vmatpush.msra.mxu0 0.0
        %350 = vmatpush.msra.mxu0 0.0
        %351 = vmatpush.msra.mxu0 0.0
        %352 = vmatpush.msra.mxu0 0.0
        %353 = vmatpush.msra.mxu0 0.0
        %354 = vmatpush.msra.mxu0 %v337
        %355 = vmatmul.f32.gmra.mxu0 %v303
        %v356 = vpop.f32.mrf.mxu0
        %v357 = vadd.f32 0.0, %v356
        %358 = vmatmul.f32.gmra.mxu0 %v305
        %v359 = vpop.f32.mrf.mxu0
        %v360 = vadd.f32 0.0, %v359
        %361 = vmatmul.f32.gmra.mxu0 %v307
        %v362 = vpop.f32.mrf.mxu0
        %v363 = vadd.f32 0.0, %v362
        %364 = vmatmul.f32.gmra.mxu0 %v309
        %v365 = vpop.f32.mrf.mxu0
        %v366 = vadd.f32 0.0, %v365
        %367 = vmatmul.f32.gmra.mxu0 %v311
        %v368 = vpop.f32.mrf.mxu0
        %v369 = vadd.f32 0.0, %v368
        %370 = vmatmul.f32.gmra.mxu0 %v313
        %v371 = vpop.f32.mrf.mxu0
        %v372 = vadd.f32 0.0, %v371
        %373 = vmatmul.f32.gmra.mxu0 %v315
        %v374 = vpop.f32.mrf.mxu0
        %v375 = vadd.f32 0.0, %v374
        %376 = vmatmul.f32.gmra.mxu0 %v317
        %v377 = vpop.f32.mrf.mxu0
        %v378 = vadd.f32 0.0, %v377
        %379 = vmatmul.f32.gmra.mxu0 %v319
        %v380 = vpop.f32.mrf.mxu0
        %v381 = vadd.f32 0.0, %v380
        %382 = vmatmul.f32.gmra.mxu0 %v321
        %v383 = vpop.f32.mrf.mxu0
        %v384 = vadd.f32 0.0, %v383
        %385 = vmatmul.f32.gmra.mxu0 %v323
        %v386 = vpop.f32.mrf.mxu0
        %v387 = vadd.f32 0.0, %v386
        %388 = vmatmul.f32.gmra.mxu0 %v325
        %v389 = vpop.f32.mrf.mxu0
        %v390 = vadd.f32 0.0, %v389
        %391 = vmatmul.f32.gmra.mxu0 %v327
        %v392 = vpop.f32.mrf.mxu0
        %v393 = vadd.f32 0.0, %v392
        %394 = vmatmul.f32.gmra.mxu0 %v329
        %v395 = vpop.f32.mrf.mxu0
        %v396 = vadd.f32 0.0, %v395
        %397 = vmatmul.f32.gmra.mxu0 %v331
        %v398 = vpop.f32.mrf.mxu0
        %v399 = vadd.f32 0.0, %v398
        %400 = vmatmul.f32.gmra.mxu0 %v333
        %v401 = vpop.f32.mrf.mxu0
        %v402 = vadd.f32 0.0, %v401
        %403 = vdwg.mxu0
        %v404 = vsel %vm302, %v198, 0
        %v406 = vsel %vm302, %v199, 0
        %v408 = vsel %vm302, %v201, 0
        %v410 = vsel %vm302, %v202, 0
        %v412 = vsel %vm302, %v204, 0
        %v414 = vsel %vm302, %v205, 0
        %v416 = vsel %vm302, %v207, 0
        %v418 = vsel %vm302, %v208, 0
        %v420 = vsel %vm302, %v210, 0
        %v422 = vsel %vm302, %v211, 0
        %v424 = vsel %vm302, %v213, 0
        %v426 = vsel %vm302, %v214, 0
        %v428 = vsel %vm302, %v216, 0
        %v430 = vsel %vm302, %v217, 0
        %v432 = vsel %vm302, %v219, 0
        %v434 = vsel %vm302, %v220, 0
        %v437 = vsel %vm335, %v234, 0
        %439 = vmatpush.msra.mxu0 0.0
        %440 = vmatpush.msra.mxu0 0.0
        %441 = vmatpush.msra.mxu0 0.0
        %442 = vmatpush.msra.mxu0 0.0
        %443 = vmatpush.msra.mxu0 0.0
        %444 = vmatpush.msra.mxu0 0.0
        %445 = vmatpush.msra.mxu0 0.0
        %446 = vmatpush.msra.mxu0 0.0
        %447 = vmatpush.msra.mxu0 0.0
        %448 = vmatpush.msra.mxu0 0.0
        %449 = vmatpush.msra.mxu0 0.0
        %450 = vmatpush.msra.mxu0 0.0
        %451 = vmatpush.msra.mxu0 0.0
        %452 = vmatpush.msra.mxu0 0.0
        %453 = vmatpush.msra.mxu0 0.0
        %454 = vmatpush.msra.mxu0 %v437
        %455 = vmatmul.f32.gmra.mxu0 %v404
        %v456 = vpop.f32.mrf.mxu0
        %v457 = vadd.f32 %v357, %v456
        %458 = vmatmul.f32.gmra.mxu0 %v406
        %v459 = vpop.f32.mrf.mxu0
        %v460 = vadd.f32 %v360, %v459
        %461 = vmatmul.f32.gmra.mxu0 %v408
        %v462 = vpop.f32.mrf.mxu0
        %v463 = vadd.f32 %v363, %v462
        %464 = vmatmul.f32.gmra.mxu0 %v410
        %v465 = vpop.f32.mrf.mxu0
        %v466 = vadd.f32 %v366, %v465
        %467 = vmatmul.f32.gmra.mxu0 %v412
        %v468 = vpop.f32.mrf.mxu0
        %v469 = vadd.f32 %v369, %v468
        %470 = vmatmul.f32.gmra.mxu0 %v414
        %v471 = vpop.f32.mrf.mxu0
        %v472 = vadd.f32 %v372, %v471
        %473 = vmatmul.f32.gmra.mxu0 %v416
        %v474 = vpop.f32.mrf.mxu0
        %v475 = vadd.f32 %v375, %v474
        %476 = vmatmul.f32.gmra.mxu0 %v418
        %v477 = vpop.f32.mrf.mxu0
        %v478 = vadd.f32 %v378, %v477
        %479 = vmatmul.f32.gmra.mxu0 %v420
        %v480 = vpop.f32.mrf.mxu0
        %v481 = vadd.f32 %v381, %v480
        %482 = vmatmul.f32.gmra.mxu0 %v422
        %v483 = vpop.f32.mrf.mxu0
        %v484 = vadd.f32 %v384, %v483
        %485 = vmatmul.f32.gmra.mxu0 %v424
        %v486 = vpop.f32.mrf.mxu0
        %v487 = vadd.f32 %v387, %v486
        %488 = vmatmul.f32.gmra.mxu0 %v426
        %v489 = vpop.f32.mrf.mxu0
        %v490 = vadd.f32 %v390, %v489
        %491 = vmatmul.f32.gmra.mxu0 %v428
        %v492 = vpop.f32.mrf.mxu0
        %v493 = vadd.f32 %v393, %v492
        %494 = vmatmul.f32.gmra.mxu0 %v430
        %v495 = vpop.f32.mrf.mxu0
        %v496 = vadd.f32 %v396, %v495
        %497 = vmatmul.f32.gmra.mxu0 %v432
        %v498 = vpop.f32.mrf.mxu0
        %v499 = vadd.f32 %v399, %v498
        %500 = vmatmul.f32.gmra.mxu0 %v434
        %v501 = vpop.f32.mrf.mxu0
        %v502 = vadd.f32 %v402, %v501
        %503 = vdwg.mxu0
        %vm504 = vcmask 1045504
        %v505 = vrot.slane %v198, 2
        %v506 = vrot.slane %v199, 2
        %v507 = vsel %vm504, %v505, %v506
        %v508 = vrot.slane %v200, 2
        %v509 = vsel %vm504, %v506, %v508
        %v510 = vrot.slane %v201, 2
        %v511 = vrot.slane %v202, 2
        %v512 = vsel %vm504, %v510, %v511
        %v513 = vrot.slane %v203, 2
        %v514 = vsel %vm504, %v511, %v513
        %v515 = vrot.slane %v204, 2
        %v516 = vrot.slane %v205, 2
        %v517 = vsel %vm504, %v515, %v516
        %v518 = vrot.slane %v206, 2
        %v519 = vsel %vm504, %v516, %v518
        %v520 = vrot.slane %v207, 2
        %v521 = vrot.slane %v208, 2
        %v522 = vsel %vm504, %v520, %v521
        %v523 = vrot.slane %v209, 2
        %v524 = vsel %vm504, %v521, %v523
        %v525 = vrot.slane %v210, 2
        %v526 = vrot.slane %v211, 2
        %v527 = vsel %vm504, %v525, %v526
        %v528 = vrot.slane %v212, 2
        %v529 = vsel %vm504, %v526, %v528
        %v530 = vrot.slane %v213, 2
        %v531 = vrot.slane %v214, 2
        %v532 = vsel %vm504, %v530, %v531
        %v533 = vrot.slane %v215, 2
        %v534 = vsel %vm504, %v531, %v533
        %v535 = vrot.slane %v216, 2
        %v536 = vrot.slane %v217, 2
        %v537 = vsel %vm504, %v535, %v536
        %v538 = vrot.slane %v218, 2
        %v539 = vsel %vm504, %v536, %v538
        %v540 = vrot.slane %v219, 2
        %v541 = vrot.slane %v220, 2
        %v542 = vsel %vm504, %v540, %v541
        %v543 = vrot.slane %v221, 2
        %v544 = vsel %vm504, %v541, %v543
        %s545 = scalar_lea.vmem %s1, 8
        %v546 = vld [vmem:[%s545] sm:$0xf]
        %v547 = vsel %vm302, %v507, 0
        %v549 = vsel %vm302, %v509, 0
        %v551 = vsel %vm302, %v512, 0
        %v553 = vsel %vm302, %v514, 0
        %v555 = vsel %vm302, %v517, 0
        %v557 = vsel %vm302, %v519, 0
        %v559 = vsel %vm302, %v522, 0
        %v561 = vsel %vm302, %v524, 0
        %v563 = vsel %vm302, %v527, 0
        %v565 = vsel %vm302, %v529, 0
        %v567 = vsel %vm302, %v532, 0
        %v569 = vsel %vm302, %v534, 0
        %v571 = vsel %vm302, %v537, 0
        %v573 = vsel %vm302, %v539, 0
        %v575 = vsel %vm302, %v542, 0
        %v577 = vsel %vm302, %v544, 0
        %v580 = vsel %vm335, %v546, 0
        %582 = vmatpush.msra.mxu0 0.0
        %583 = vmatpush.msra.mxu0 0.0
        %584 = vmatpush.msra.mxu0 0.0
        %585 = vmatpush.msra.mxu0 0.0
        %586 = vmatpush.msra.mxu0 0.0
        %587 = vmatpush.msra.mxu0 0.0
        %588 = vmatpush.msra.mxu0 0.0
        %589 = vmatpush.msra.mxu0 0.0
        %590 = vmatpush.msra.mxu0 0.0
        %591 = vmatpush.msra.mxu0 0.0
        %592 = vmatpush.msra.mxu0 0.0
        %593 = vmatpush.msra.mxu0 0.0
        %594 = vmatpush.msra.mxu0 0.0
        %595 = vmatpush.msra.mxu0 0.0
        %596 = vmatpush.msra.mxu0 0.0
        %597 = vmatpush.msra.mxu0 %v580
        %598 = vmatmul.f32.gmra.mxu0 %v547
        %v599 = vpop.f32.mrf.mxu0
        %v600 = vadd.f32 0.0, %v599
        %601 = vmatmul.f32.gmra.mxu0 %v549
        %v602 = vpop.f32.mrf.mxu0
        %v603 = vadd.f32 0.0, %v602
        %604 = vmatmul.f32.gmra.mxu0 %v551
        %v605 = vpop.f32.mrf.mxu0
        %v606 = vadd.f32 0.0, %v605
        %607 = vmatmul.f32.gmra.mxu0 %v553
        %v608 = vpop.f32.mrf.mxu0
        %v609 = vadd.f32 0.0, %v608
        %610 = vmatmul.f32.gmra.mxu0 %v555
        %v611 = vpop.f32.mrf.mxu0
        %v612 = vadd.f32 0.0, %v611
        %613 = vmatmul.f32.gmra.mxu0 %v557
        %v614 = vpop.f32.mrf.mxu0
        %v615 = vadd.f32 0.0, %v614
        %616 = vmatmul.f32.gmra.mxu0 %v559
        %v617 = vpop.f32.mrf.mxu0
        %v618 = vadd.f32 0.0, %v617
        %619 = vmatmul.f32.gmra.mxu0 %v561
        %v620 = vpop.f32.mrf.mxu0
        %v621 = vadd.f32 0.0, %v620
        %622 = vmatmul.f32.gmra.mxu0 %v563
        %v623 = vpop.f32.mrf.mxu0
        %v624 = vadd.f32 0.0, %v623
        %625 = vmatmul.f32.gmra.mxu0 %v565
        %v626 = vpop.f32.mrf.mxu0
        %v627 = vadd.f32 0.0, %v626
        %628 = vmatmul.f32.gmra.mxu0 %v567
        %v629 = vpop.f32.mrf.mxu0
        %v630 = vadd.f32 0.0, %v629
        %631 = vmatmul.f32.gmra.mxu0 %v569
        %v632 = vpop.f32.mrf.mxu0
        %v633 = vadd.f32 0.0, %v632
        %634 = vmatmul.f32.gmra.mxu0 %v571
        %v635 = vpop.f32.mrf.mxu0
        %v636 = vadd.f32 0.0, %v635
        %637 = vmatmul.f32.gmra.mxu0 %v573
        %v638 = vpop.f32.mrf.mxu0
        %v639 = vadd.f32 0.0, %v638
        %640 = vmatmul.f32.gmra.mxu0 %v575
        %v641 = vpop.f32.mrf.mxu0
        %v642 = vadd.f32 0.0, %v641
        %643 = vmatmul.f32.gmra.mxu0 %v577
        %v644 = vpop.f32.mrf.mxu0
        %v645 = vadd.f32 0.0, %v644
        %646 = vdwg.mxu0
        %v647 = vadd.f32 %v457, %v600
        %v648 = vadd.f32 %v460, %v603
        %v649 = vadd.f32 %v463, %v606
        %v650 = vadd.f32 %v466, %v609
        %v651 = vadd.f32 %v469, %v612
        %v652 = vadd.f32 %v472, %v615
        %v653 = vadd.f32 %v475, %v618
        %v654 = vadd.f32 %v478, %v621
        %v655 = vadd.f32 %v481, %v624
        %v656 = vadd.f32 %v484, %v627
        %v657 = vadd.f32 %v487, %v630
        %v658 = vadd.f32 %v490, %v633
        %v659 = vadd.f32 %v493, %v636
        %v660 = vadd.f32 %v496, %v639
        %v661 = vadd.f32 %v499, %v642
        %v662 = vadd.f32 %v502, %v645
        %vm663 = vcmask 1044480
        %v664 = vrot.slane %v198, 3
        %v665 = vrot.slane %v199, 3
        %v666 = vsel %vm663, %v664, %v665
        %v667 = vrot.slane %v200, 3
        %v668 = vsel %vm663, %v665, %v667
        %v669 = vrot.slane %v201, 3
        %v670 = vrot.slane %v202, 3
        %v671 = vsel %vm663, %v669, %v670
        %v672 = vrot.slane %v203, 3
        %v673 = vsel %vm663, %v670, %v672
        %v674 = vrot.slane %v204, 3
        %v675 = vrot.slane %v205, 3
        %v676 = vsel %vm663, %v674, %v675
        %v677 = vrot.slane %v206, 3
        %v678 = vsel %vm663, %v675, %v677
        %v679 = vrot.slane %v207, 3
        %v680 = vrot.slane %v208, 3
        %v681 = vsel %vm663, %v679, %v680
        %v682 = vrot.slane %v209, 3
        %v683 = vsel %vm663, %v680, %v682
        %v684 = vrot.slane %v210, 3
        %v685 = vrot.slane %v211, 3
        %v686 = vsel %vm663, %v684, %v685
        %v687 = vrot.slane %v212, 3
        %v688 = vsel %vm663, %v685, %v687
        %v689 = vrot.slane %v213, 3
        %v690 = vrot.slane %v214, 3
        %v691 = vsel %vm663, %v689, %v690
        %v692 = vrot.slane %v215, 3
        %v693 = vsel %vm663, %v690, %v692
        %v694 = vrot.slane %v216, 3
        %v695 = vrot.slane %v217, 3
        %v696 = vsel %vm663, %v694, %v695
        %v697 = vrot.slane %v218, 3
        %v698 = vsel %vm663, %v695, %v697
        %v699 = vrot.slane %v219, 3
        %v700 = vrot.slane %v220, 3
        %v701 = vsel %vm663, %v699, %v700
        %v702 = vrot.slane %v221, 3
        %v703 = vsel %vm663, %v700, %v702
        %s704 = scalar_lea.vmem %s1, 12
        %v705 = vld [vmem:[%s704] sm:$0xf]
        %v706 = vsel %vm302, %v666, 0
        %v708 = vsel %vm302, %v668, 0
        %v710 = vsel %vm302, %v671, 0
        %v712 = vsel %vm302, %v673, 0
        %v714 = vsel %vm302, %v676, 0
        %v716 = vsel %vm302, %v678, 0
        %v718 = vsel %vm302, %v681, 0
        %v720 = vsel %vm302, %v683, 0
        %v722 = vsel %vm302, %v686, 0
        %v724 = vsel %vm302, %v688, 0
        %v726 = vsel %vm302, %v691, 0
        %v728 = vsel %vm302, %v693, 0
        %v730 = vsel %vm302, %v696, 0
        %v732 = vsel %vm302, %v698, 0
        %v734 = vsel %vm302, %v701, 0
        %v736 = vsel %vm302, %v703, 0
        %v739 = vsel %vm335, %v705, 0
        %741 = vmatpush.msra.mxu0 0.0
        %742 = vmatpush.msra.mxu0 0.0
        %743 = vmatpush.msra.mxu0 0.0
        %744 = vmatpush.msra.mxu0 0.0
        %745 = vmatpush.msra.mxu0 0.0
        %746 = vmatpush.msra.mxu0 0.0
        %747 = vmatpush.msra.mxu0 0.0
        %748 = vmatpush.msra.mxu0 0.0
        %749 = vmatpush.msra.mxu0 0.0
        %750 = vmatpush.msra.mxu0 0.0
        %751 = vmatpush.msra.mxu0 0.0
        %752 = vmatpush.msra.mxu0 0.0
        %753 = vmatpush.msra.mxu0 0.0
        %754 = vmatpush.msra.mxu0 0.0
        %755 = vmatpush.msra.mxu0 0.0
        %756 = vmatpush.msra.mxu0 %v739
        %757 = vmatmul.f32.gmra.mxu0 %v706
        %v758 = vpop.f32.mrf.mxu0
        %v759 = vadd.f32 0.0, %v758
        %760 = vmatmul.f32.gmra.mxu0 %v708
        %v761 = vpop.f32.mrf.mxu0
        %v762 = vadd.f32 0.0, %v761
        %763 = vmatmul.f32.gmra.mxu0 %v710
        %v764 = vpop.f32.mrf.mxu0
        %v765 = vadd.f32 0.0, %v764
        %766 = vmatmul.f32.gmra.mxu0 %v712
        %v767 = vpop.f32.mrf.mxu0
        %v768 = vadd.f32 0.0, %v767
        %769 = vmatmul.f32.gmra.mxu0 %v714
        %v770 = vpop.f32.mrf.mxu0
        %v771 = vadd.f32 0.0, %v770
        %772 = vmatmul.f32.gmra.mxu0 %v716
        %v773 = vpop.f32.mrf.mxu0
        %v774 = vadd.f32 0.0, %v773
        %775 = vmatmul.f32.gmra.mxu0 %v718
        %v776 = vpop.f32.mrf.mxu0
        %v777 = vadd.f32 0.0, %v776
        %778 = vmatmul.f32.gmra.mxu0 %v720
        %v779 = vpop.f32.mrf.mxu0
        %v780 = vadd.f32 0.0, %v779
        %781 = vmatmul.f32.gmra.mxu0 %v722
        %v782 = vpop.f32.mrf.mxu0
        %v783 = vadd.f32 0.0, %v782
        %784 = vmatmul.f32.gmra.mxu0 %v724
        %v785 = vpop.f32.mrf.mxu0
        %v786 = vadd.f32 0.0, %v785
        %787 = vmatmul.f32.gmra.mxu0 %v726
        %v788 = vpop.f32.mrf.mxu0
        %v789 = vadd.f32 0.0, %v788
        %790 = vmatmul.f32.gmra.mxu0 %v728
        %v791 = vpop.f32.mrf.mxu0
        %v792 = vadd.f32 0.0, %v791
        %793 = vmatmul.f32.gmra.mxu0 %v730
        %v794 = vpop.f32.mrf.mxu0
        %v795 = vadd.f32 0.0, %v794
        %796 = vmatmul.f32.gmra.mxu0 %v732
        %v797 = vpop.f32.mrf.mxu0
        %v798 = vadd.f32 0.0, %v797
        %799 = vmatmul.f32.gmra.mxu0 %v734
        %v800 = vpop.f32.mrf.mxu0
        %v801 = vadd.f32 0.0, %v800
        %802 = vmatmul.f32.gmra.mxu0 %v736
        %v803 = vpop.f32.mrf.mxu0
        %v804 = vadd.f32 0.0, %v803
        %805 = vdwg.mxu0
        %v806 = vadd.f32 %v647, %v759
        %v807 = vadd.f32 %v648, %v762
        %v808 = vadd.f32 %v649, %v765
        %v809 = vadd.f32 %v650, %v768
        %v810 = vadd.f32 %v651, %v771
        %v811 = vadd.f32 %v652, %v774
        %v812 = vadd.f32 %v653, %v777
        %v813 = vadd.f32 %v654, %v780
        %v814 = vadd.f32 %v655, %v783
        %v815 = vadd.f32 %v656, %v786
        %v816 = vadd.f32 %v657, %v789
        %v817 = vadd.f32 %v658, %v792
        %v818 = vadd.f32 %v659, %v795
        %v819 = vadd.f32 %v660, %v798
        %v820 = vadd.f32 %v661, %v801
        %v821 = vadd.f32 %v662, %v804
        %v822 = vrot.slane %v198, 4
        %v823 = vrot.slane %v199, 4
        %v824 = vsel %vm335, %v822, %v823
        %v825 = vrot.slane %v200, 4
        %v826 = vsel %vm335, %v823, %v825
        %v827 = vrot.slane %v201, 4
        %v828 = vrot.slane %v202, 4
        %v829 = vsel %vm335, %v827, %v828
        %v830 = vrot.slane %v203, 4
        %v831 = vsel %vm335, %v828, %v830
        %v832 = vrot.slane %v204, 4
        %v833 = vrot.slane %v205, 4
        %v834 = vsel %vm335, %v832, %v833
        %v835 = vrot.slane %v206, 4
        %v836 = vsel %vm335, %v833, %v835
        %v837 = vrot.slane %v207, 4
        %v838 = vrot.slane %v208, 4
        %v839 = vsel %vm335, %v837, %v838
        %v840 = vrot.slane %v209, 4
        %v841 = vsel %vm335, %v838, %v840
        %v842 = vrot.slane %v210, 4
        %v843 = vrot.slane %v211, 4
        %v844 = vsel %vm335, %v842, %v843
        %v845 = vrot.slane %v212, 4
        %v846 = vsel %vm335, %v843, %v845
        %v847 = vrot.slane %v213, 4
        %v848 = vrot.slane %v214, 4
        %v849 = vsel %vm335, %v847, %v848
        %v850 = vrot.slane %v215, 4
        %v851 = vsel %vm335, %v848, %v850
        %v852 = vrot.slane %v216, 4
        %v853 = vrot.slane %v217, 4
        %v854 = vsel %vm335, %v852, %v853
        %v855 = vrot.slane %v218, 4
        %v856 = vsel %vm335, %v853, %v855
        %v857 = vrot.slane %v219, 4
        %v858 = vrot.slane %v220, 4
        %v859 = vsel %vm335, %v857, %v858
        %v860 = vrot.slane %v221, 4
        %v861 = vsel %vm335, %v858, %v860
        %s862 = scalar_lea.vmem %s1, 16
        %v863 = vld [vmem:[%s862] sm:$0xf]
        %v864 = vsel %vm302, %v824, 0
        %v866 = vsel %vm302, %v826, 0
        %v868 = vsel %vm302, %v829, 0
        %v870 = vsel %vm302, %v831, 0
        %v872 = vsel %vm302, %v834, 0
        %v874 = vsel %vm302, %v836, 0
        %v876 = vsel %vm302, %v839, 0
        %v878 = vsel %vm302, %v841, 0
        %v880 = vsel %vm302, %v844, 0
        %v882 = vsel %vm302, %v846, 0
        %v884 = vsel %vm302, %v849, 0
        %v886 = vsel %vm302, %v851, 0
        %v888 = vsel %vm302, %v854, 0
        %v890 = vsel %vm302, %v856, 0
        %v892 = vsel %vm302, %v859, 0
        %v894 = vsel %vm302, %v861, 0
        %v897 = vsel %vm335, %v863, 0
        %899 = vmatpush.msra.mxu0 0.0
        %900 = vmatpush.msra.mxu0 0.0
        %901 = vmatpush.msra.mxu0 0.0
        %902 = vmatpush.msra.mxu0 0.0
        %903 = vmatpush.msra.mxu0 0.0
        %904 = vmatpush.msra.mxu0 0.0
        %905 = vmatpush.msra.mxu0 0.0
        %906 = vmatpush.msra.mxu0 0.0
        %907 = vmatpush.msra.mxu0 0.0
        %908 = vmatpush.msra.mxu0 0.0
        %909 = vmatpush.msra.mxu0 0.0
        %910 = vmatpush.msra.mxu0 0.0
        %911 = vmatpush.msra.mxu0 0.0
        %912 = vmatpush.msra.mxu0 0.0
        %913 = vmatpush.msra.mxu0 0.0
        %914 = vmatpush.msra.mxu0 %v897
        %915 = vmatmul.f32.gmra.mxu0 %v864
        %v916 = vpop.f32.mrf.mxu0
        %v917 = vadd.f32 0.0, %v916
        %918 = vmatmul.f32.gmra.mxu0 %v866
        %v919 = vpop.f32.mrf.mxu0
        %v920 = vadd.f32 0.0, %v919
        %921 = vmatmul.f32.gmra.mxu0 %v868
        %v922 = vpop.f32.mrf.mxu0
        %v923 = vadd.f32 0.0, %v922
        %924 = vmatmul.f32.gmra.mxu0 %v870
        %v925 = vpop.f32.mrf.mxu0
        %v926 = vadd.f32 0.0, %v925
        %927 = vmatmul.f32.gmra.mxu0 %v872
        %v928 = vpop.f32.mrf.mxu0
        %v929 = vadd.f32 0.0, %v928
        %930 = vmatmul.f32.gmra.mxu0 %v874
        %v931 = vpop.f32.mrf.mxu0
        %v932 = vadd.f32 0.0, %v931
        %933 = vmatmul.f32.gmra.mxu0 %v876
        %v934 = vpop.f32.mrf.mxu0
        %v935 = vadd.f32 0.0, %v934
        %936 = vmatmul.f32.gmra.mxu0 %v878
        %v937 = vpop.f32.mrf.mxu0
        %v938 = vadd.f32 0.0, %v937
        %939 = vmatmul.f32.gmra.mxu0 %v880
        %v940 = vpop.f32.mrf.mxu0
        %v941 = vadd.f32 0.0, %v940
        %942 = vmatmul.f32.gmra.mxu0 %v882
        %v943 = vpop.f32.mrf.mxu0
        %v944 = vadd.f32 0.0, %v943
        %945 = vmatmul.f32.gmra.mxu0 %v884
        %v946 = vpop.f32.mrf.mxu0
        %v947 = vadd.f32 0.0, %v946
        %948 = vmatmul.f32.gmra.mxu0 %v886
        %v949 = vpop.f32.mrf.mxu0
        %v950 = vadd.f32 0.0, %v949
        %951 = vmatmul.f32.gmra.mxu0 %v888
        %v952 = vpop.f32.mrf.mxu0
        %v953 = vadd.f32 0.0, %v952
        %954 = vmatmul.f32.gmra.mxu0 %v890
        %v955 = vpop.f32.mrf.mxu0
        %v956 = vadd.f32 0.0, %v955
        %957 = vmatmul.f32.gmra.mxu0 %v892
        %v958 = vpop.f32.mrf.mxu0
        %v959 = vadd.f32 0.0, %v958
        %960 = vmatmul.f32.gmra.mxu0 %v894
        %v961 = vpop.f32.mrf.mxu0
        %v962 = vadd.f32 0.0, %v961
        %963 = vdwg.mxu0
        %v964 = vadd.f32 %v806, %v917
        %v965 = vadd.f32 %v807, %v920
        %v966 = vadd.f32 %v808, %v923
        %v967 = vadd.f32 %v809, %v926
        %v968 = vadd.f32 %v810, %v929
        %v969 = vadd.f32 %v811, %v932
        %v970 = vadd.f32 %v812, %v935
        %v971 = vadd.f32 %v813, %v938
        %v972 = vadd.f32 %v814, %v941
        %v973 = vadd.f32 %v815, %v944
        %v974 = vadd.f32 %v816, %v947
        %v975 = vadd.f32 %v817, %v950
        %v976 = vadd.f32 %v818, %v953
        %v977 = vadd.f32 %v819, %v956
        %v978 = vadd.f32 %v820, %v959
        %v979 = vadd.f32 %v821, %v962
        %s980 = scalar_lea.vmem %s1, 20
        %v981 = vld [vmem:[%s980] sm:$0xf]
        %v983 = vsel %vm302, %v222, 0
        %v986 = vsel %vm302, %v223, 0
        %v989 = vsel %vm335, %v981, 0
        %991 = vmatpush.msra.mxu0 0.0
        %992 = vmatpush.msra.mxu0 0.0
        %993 = vmatpush.msra.mxu0 0.0
        %994 = vmatpush.msra.mxu0 0.0
        %995 = vmatpush.msra.mxu0 0.0
        %996 = vmatpush.msra.mxu0 0.0
        %997 = vmatpush.msra.mxu0 0.0
        %998 = vmatpush.msra.mxu0 0.0
        %999 = vmatpush.msra.mxu0 0.0
        %1000 = vmatpush.msra.mxu0 0.0
        %1001 = vmatpush.msra.mxu0 0.0
        %1002 = vmatpush.msra.mxu0 0.0
        %1003 = vmatpush.msra.mxu0 0.0
        %1004 = vmatpush.msra.mxu0 0.0
        %1005 = vmatpush.msra.mxu0 0.0
        %1006 = vmatpush.msra.mxu0 %v989
        %1007 = vmatmul.f32.gmra.mxu0 %v408
        %v1008 = vpop.f32.mrf.mxu0
        %v1009 = vadd.f32 0.0, %v1008
        %1010 = vmatmul.f32.gmra.mxu0 %v410
        %v1011 = vpop.f32.mrf.mxu0
        %v1012 = vadd.f32 0.0, %v1011
        %1013 = vmatmul.f32.gmra.mxu0 %v412
        %v1014 = vpop.f32.mrf.mxu0
        %v1015 = vadd.f32 0.0, %v1014
        %1016 = vmatmul.f32.gmra.mxu0 %v414
        %v1017 = vpop.f32.mrf.mxu0
        %v1018 = vadd.f32 0.0, %v1017
        %1019 = vmatmul.f32.gmra.mxu0 %v416
        %v1020 = vpop.f32.mrf.mxu0
        %v1021 = vadd.f32 0.0, %v1020
        %1022 = vmatmul.f32.gmra.mxu0 %v418
        %v1023 = vpop.f32.mrf.mxu0
        %v1024 = vadd.f32 0.0, %v1023
        %1025 = vmatmul.f32.gmra.mxu0 %v420
        %v1026 = vpop.f32.mrf.mxu0
        %v1027 = vadd.f32 0.0, %v1026
        %1028 = vmatmul.f32.gmra.mxu0 %v422
        %v1029 = vpop.f32.mrf.mxu0
        %v1030 = vadd.f32 0.0, %v1029
        %1031 = vmatmul.f32.gmra.mxu0 %v424
        %v1032 = vpop.f32.mrf.mxu0
        %v1033 = vadd.f32 0.0, %v1032
        %1034 = vmatmul.f32.gmra.mxu0 %v426
        %v1035 = vpop.f32.mrf.mxu0
        %v1036 = vadd.f32 0.0, %v1035
        %1037 = vmatmul.f32.gmra.mxu0 %v428
        %v1038 = vpop.f32.mrf.mxu0
        %v1039 = vadd.f32 0.0, %v1038
        %1040 = vmatmul.f32.gmra.mxu0 %v430
        %v1041 = vpop.f32.mrf.mxu0
        %v1042 = vadd.f32 0.0, %v1041
        %1043 = vmatmul.f32.gmra.mxu0 %v432
        %v1044 = vpop.f32.mrf.mxu0
        %v1045 = vadd.f32 0.0, %v1044
        %1046 = vmatmul.f32.gmra.mxu0 %v434
        %v1047 = vpop.f32.mrf.mxu0
        %v1048 = vadd.f32 0.0, %v1047
        %1049 = vmatmul.f32.gmra.mxu0 %v983
        %v1050 = vpop.f32.mrf.mxu0
        %v1051 = vadd.f32 0.0, %v1050
        %1052 = vmatmul.f32.gmra.mxu0 %v986
        %v1053 = vpop.f32.mrf.mxu0
        %v1054 = vadd.f32 0.0, %v1053
        %1055 = vdwg.mxu0
        %v1056 = vadd.f32 %v964, %v1009
        %v1057 = vadd.f32 %v965, %v1012
        %v1058 = vadd.f32 %v966, %v1015
        %v1059 = vadd.f32 %v967, %v1018
        %v1060 = vadd.f32 %v968, %v1021
        %v1061 = vadd.f32 %v969, %v1024
        %v1062 = vadd.f32 %v970, %v1027
        %v1063 = vadd.f32 %v971, %v1030
        %v1064 = vadd.f32 %v972, %v1033
        %v1065 = vadd.f32 %v973, %v1036
        %v1066 = vadd.f32 %v974, %v1039
        %v1067 = vadd.f32 %v975, %v1042
        %v1068 = vadd.f32 %v976, %v1045
        %v1069 = vadd.f32 %v977, %v1048
        %v1070 = vadd.f32 %v978, %v1051
        %v1071 = vadd.f32 %v979, %v1054
        %v1073 = vrot.slane %v222, 1
        %v1074 = vrot.slane %v223, 1
        %v1075 = vsel %vm259, %v1073, %v1074
        %v1076 = vrot.slane %v224, 1
        %v1077 = vsel %vm259, %v1074, %v1076
        %s1078 = scalar_lea.vmem %s1, 24
        %v1079 = vld [vmem:[%s1078] sm:$0xf]
        %v1080 = vsel %vm302, %v1075, 0
        %v1082 = vsel %vm302, %v1077, 0
        %v1085 = vsel %vm335, %v1079, 0
        %1087 = vmatpush.msra.mxu0 0.0
        %1088 = vmatpush.msra.mxu0 0.0
        %1089 = vmatpush.msra.mxu0 0.0
        %1090 = vmatpush.msra.mxu0 0.0
        %1091 = vmatpush.msra.mxu0 0.0
        %1092 = vmatpush.msra.mxu0 0.0
        %1093 = vmatpush.msra.mxu0 0.0
        %1094 = vmatpush.msra.mxu0 0.0
        %1095 = vmatpush.msra.mxu0 0.0
        %1096 = vmatpush.msra.mxu0 0.0
        %1097 = vmatpush.msra.mxu0 0.0
        %1098 = vmatpush.msra.mxu0 0.0
        %1099 = vmatpush.msra.mxu0 0.0
        %1100 = vmatpush.msra.mxu0 0.0
        %1101 = vmatpush.msra.mxu0 0.0
        %1102 = vmatpush.msra.mxu0 %v1085
        %1103 = vmatmul.f32.gmra.mxu0 %v307
        %v1104 = vpop.f32.mrf.mxu0
        %v1105 = vadd.f32 0.0, %v1104
        %1106 = vmatmul.f32.gmra.mxu0 %v309
        %v1107 = vpop.f32.mrf.mxu0
        %v1108 = vadd.f32 0.0, %v1107
        %1109 = vmatmul.f32.gmra.mxu0 %v311
        %v1110 = vpop.f32.mrf.mxu0
        %v1111 = vadd.f32 0.0, %v1110
        %1112 = vmatmul.f32.gmra.mxu0 %v313
        %v1113 = vpop.f32.mrf.mxu0
        %v1114 = vadd.f32 0.0, %v1113
        %1115 = vmatmul.f32.gmra.mxu0 %v315
        %v1116 = vpop.f32.mrf.mxu0
        %v1117 = vadd.f32 0.0, %v1116
        %1118 = vmatmul.f32.gmra.mxu0 %v317
        %v1119 = vpop.f32.mrf.mxu0
        %v1120 = vadd.f32 0.0, %v1119
        %1121 = vmatmul.f32.gmra.mxu0 %v319
        %v1122 = vpop.f32.mrf.mxu0
        %v1123 = vadd.f32 0.0, %v1122
        %1124 = vmatmul.f32.gmra.mxu0 %v321
        %v1125 = vpop.f32.mrf.mxu0
        %v1126 = vadd.f32 0.0, %v1125
        %1127 = vmatmul.f32.gmra.mxu0 %v323
        %v1128 = vpop.f32.mrf.mxu0
        %v1129 = vadd.f32 0.0, %v1128
        %1130 = vmatmul.f32.gmra.mxu0 %v325
        %v1131 = vpop.f32.mrf.mxu0
        %v1132 = vadd.f32 0.0, %v1131
        %1133 = vmatmul.f32.gmra.mxu0 %v327
        %v1134 = vpop.f32.mrf.mxu0
        %v1135 = vadd.f32 0.0, %v1134
        %1136 = vmatmul.f32.gmra.mxu0 %v329
        %v1137 = vpop.f32.mrf.mxu0
        %v1138 = vadd.f32 0.0, %v1137
        %1139 = vmatmul.f32.gmra.mxu0 %v331
        %v1140 = vpop.f32.mrf.mxu0
        %v1141 = vadd.f32 0.0, %v1140
        %1142 = vmatmul.f32.gmra.mxu0 %v333
        %v1143 = vpop.f32.mrf.mxu0
        %v1144 = vadd.f32 0.0, %v1143
        %1145 = vmatmul.f32.gmra.mxu0 %v1080
        %v1146 = vpop.f32.mrf.mxu0
        %v1147 = vadd.f32 0.0, %v1146
        %1148 = vmatmul.f32.gmra.mxu0 %v1082
        %v1149 = vpop.f32.mrf.mxu0
        %v1150 = vadd.f32 0.0, %v1149
        %1151 = vdwg.mxu0
        %v1152 = vadd.f32 %v1056, %v1105
        %v1153 = vadd.f32 %v1057, %v1108
        %v1154 = vadd.f32 %v1058, %v1111
        %v1155 = vadd.f32 %v1059, %v1114
        %v1156 = vadd.f32 %v1060, %v1117
        %v1157 = vadd.f32 %v1061, %v1120
        %v1158 = vadd.f32 %v1062, %v1123
        %v1159 = vadd.f32 %v1063, %v1126
        %v1160 = vadd.f32 %v1064, %v1129
        %v1161 = vadd.f32 %v1065, %v1132
        %v1162 = vadd.f32 %v1066, %v1135
        %v1163 = vadd.f32 %v1067, %v1138
        %v1164 = vadd.f32 %v1068, %v1141
        %v1165 = vadd.f32 %v1069, %v1144
        %v1166 = vadd.f32 %v1070, %v1147
        %v1167 = vadd.f32 %v1071, %v1150
        %v1168 = vrot.slane %v222, 2
        %v1169 = vrot.slane %v223, 2
        %v1170 = vsel %vm504, %v1168, %v1169
        %v1171 = vrot.slane %v224, 2
        %v1172 = vsel %vm504, %v1169, %v1171
        %s1173 = scalar_lea.vmem %s1, 28
        %v1174 = vld [vmem:[%s1173] sm:$0xf]
        %v1175 = vsel %vm302, %v1170, 0
        %v1177 = vsel %vm302, %v1172, 0
        %v1180 = vsel %vm335, %v1174, 0
        %1182 = vmatpush.msra.mxu0 0.0
        %1183 = vmatpush.msra.mxu0 0.0
        %1184 = vmatpush.msra.mxu0 0.0
        %1185 = vmatpush.msra.mxu0 0.0
        %1186 = vmatpush.msra.mxu0 0.0
        %1187 = vmatpush.msra.mxu0 0.0
        %1188 = vmatpush.msra.mxu0 0.0
        %1189 = vmatpush.msra.mxu0 0.0
        %1190 = vmatpush.msra.mxu0 0.0
        %1191 = vmatpush.msra.mxu0 0.0
        %1192 = vmatpush.msra.mxu0 0.0
        %1193 = vmatpush.msra.mxu0 0.0
        %1194 = vmatpush.msra.mxu0 0.0
        %1195 = vmatpush.msra.mxu0 0.0
        %1196 = vmatpush.msra.mxu0 0.0
        %1197 = vmatpush.msra.mxu0 %v1180
        %1198 = vmatmul.f32.gmra.mxu0 %v551
        %v1199 = vpop.f32.mrf.mxu0
        %v1200 = vadd.f32 0.0, %v1199
        %1201 = vmatmul.f32.gmra.mxu0 %v553
        %v1202 = vpop.f32.mrf.mxu0
        %v1203 = vadd.f32 0.0, %v1202
        %1204 = vmatmul.f32.gmra.mxu0 %v555
        %v1205 = vpop.f32.mrf.mxu0
        %v1206 = vadd.f32 0.0, %v1205
        %1207 = vmatmul.f32.gmra.mxu0 %v557
        %v1208 = vpop.f32.mrf.mxu0
        %v1209 = vadd.f32 0.0, %v1208
        %1210 = vmatmul.f32.gmra.mxu0 %v559
        %v1211 = vpop.f32.mrf.mxu0
        %v1212 = vadd.f32 0.0, %v1211
        %1213 = vmatmul.f32.gmra.mxu0 %v561
        %v1214 = vpop.f32.mrf.mxu0
        %v1215 = vadd.f32 0.0, %v1214
        %1216 = vmatmul.f32.gmra.mxu0 %v563
        %v1217 = vpop.f32.mrf.mxu0
        %v1218 = vadd.f32 0.0, %v1217
        %1219 = vmatmul.f32.gmra.mxu0 %v565
        %v1220 = vpop.f32.mrf.mxu0
        %v1221 = vadd.f32 0.0, %v1220
        %1222 = vmatmul.f32.gmra.mxu0 %v567
        %v1223 = vpop.f32.mrf.mxu0
        %v1224 = vadd.f32 0.0, %v1223
        %1225 = vmatmul.f32.gmra.mxu0 %v569
        %v1226 = vpop.f32.mrf.mxu0
        %v1227 = vadd.f32 0.0, %v1226
        %1228 = vmatmul.f32.gmra.mxu0 %v571
        %v1229 = vpop.f32.mrf.mxu0
        %v1230 = vadd.f32 0.0, %v1229
        %1231 = vmatmul.f32.gmra.mxu0 %v573
        %v1232 = vpop.f32.mrf.mxu0
        %v1233 = vadd.f32 0.0, %v1232
        %1234 = vmatmul.f32.gmra.mxu0 %v575
        %v1235 = vpop.f32.mrf.mxu0
        %v1236 = vadd.f32 0.0, %v1235
        %1237 = vmatmul.f32.gmra.mxu0 %v577
        %v1238 = vpop.f32.mrf.mxu0
        %v1239 = vadd.f32 0.0, %v1238
        %1240 = vmatmul.f32.gmra.mxu0 %v1175
        %v1241 = vpop.f32.mrf.mxu0
        %v1242 = vadd.f32 0.0, %v1241
        %1243 = vmatmul.f32.gmra.mxu0 %v1177
        %v1244 = vpop.f32.mrf.mxu0
        %v1245 = vadd.f32 0.0, %v1244
        %1246 = vdwg.mxu0
        %v1247 = vadd.f32 %v1152, %v1200
        %v1248 = vadd.f32 %v1153, %v1203
        %v1249 = vadd.f32 %v1154, %v1206
        %v1250 = vadd.f32 %v1155, %v1209
        %v1251 = vadd.f32 %v1156, %v1212
        %v1252 = vadd.f32 %v1157, %v1215
        %v1253 = vadd.f32 %v1158, %v1218
        %v1254 = vadd.f32 %v1159, %v1221
        %v1255 = vadd.f32 %v1160, %v1224
        %v1256 = vadd.f32 %v1161, %v1227
        %v1257 = vadd.f32 %v1162, %v1230
        %v1258 = vadd.f32 %v1163, %v1233
        %v1259 = vadd.f32 %v1164, %v1236
        %v1260 = vadd.f32 %v1165, %v1239
        %v1261 = vadd.f32 %v1166, %v1242
        %v1262 = vadd.f32 %v1167, %v1245
        %v1263 = vrot.slane %v222, 3
        %v1264 = vrot.slane %v223, 3
        %v1265 = vsel %vm663, %v1263, %v1264
        %v1266 = vrot.slane %v224, 3
        %v1267 = vsel %vm663, %v1264, %v1266
        %s1268 = scalar_lea.vmem %s1, 32
        %v1269 = vld [vmem:[%s1268] sm:$0xf]
        %v1270 = vsel %vm302, %v1265, 0
        %v1272 = vsel %vm302, %v1267, 0
        %v1275 = vsel %vm335, %v1269, 0
        %1277 = vmatpush.msra.mxu0 0.0
        %1278 = vmatpush.msra.mxu0 0.0
        %1279 = vmatpush.msra.mxu0 0.0
        %1280 = vmatpush.msra.mxu0 0.0
        %1281 = vmatpush.msra.mxu0 0.0
        %1282 = vmatpush.msra.mxu0 0.0
        %1283 = vmatpush.msra.mxu0 0.0
        %1284 = vmatpush.msra.mxu0 0.0
        %1285 = vmatpush.msra.mxu0 0.0
        %1286 = vmatpush.msra.mxu0 0.0
        %1287 = vmatpush.msra.mxu0 0.0
        %1288 = vmatpush.msra.mxu0 0.0
        %1289 = vmatpush.msra.mxu0 0.0
        %1290 = vmatpush.msra.mxu0 0.0
        %1291 = vmatpush.msra.mxu0 0.0
        %1292 = vmatpush.msra.mxu0 %v1275
        %1293 = vmatmul.f32.gmra.mxu0 %v710
        %v1294 = vpop.f32.mrf.mxu0
        %v1295 = vadd.f32 0.0, %v1294
        %1296 = vmatmul.f32.gmra.mxu0 %v712
        %v1297 = vpop.f32.mrf.mxu0
        %v1298 = vadd.f32 0.0, %v1297
        %1299 = vmatmul.f32.gmra.mxu0 %v714
        %v1300 = vpop.f32.mrf.mxu0
        %v1301 = vadd.f32 0.0, %v1300
        %1302 = vmatmul.f32.gmra.mxu0 %v716
        %v1303 = vpop.f32.mrf.mxu0
        %v1304 = vadd.f32 0.0, %v1303
        %1305 = vmatmul.f32.gmra.mxu0 %v718
        %v1306 = vpop.f32.mrf.mxu0
        %v1307 = vadd.f32 0.0, %v1306
        %1308 = vmatmul.f32.gmra.mxu0 %v720
        %v1309 = vpop.f32.mrf.mxu0
        %v1310 = vadd.f32 0.0, %v1309
        %1311 = vmatmul.f32.gmra.mxu0 %v722
        %v1312 = vpop.f32.mrf.mxu0
        %v1313 = vadd.f32 0.0, %v1312
        %1314 = vmatmul.f32.gmra.mxu0 %v724
        %v1315 = vpop.f32.mrf.mxu0
        %v1316 = vadd.f32 0.0, %v1315
        %1317 = vmatmul.f32.gmra.mxu0 %v726
        %v1318 = vpop.f32.mrf.mxu0
        %v1319 = vadd.f32 0.0, %v1318
        %1320 = vmatmul.f32.gmra.mxu0 %v728
        %v1321 = vpop.f32.mrf.mxu0
        %v1322 = vadd.f32 0.0, %v1321
        %1323 = vmatmul.f32.gmra.mxu0 %v730
        %v1324 = vpop.f32.mrf.mxu0
        %v1325 = vadd.f32 0.0, %v1324
        %1326 = vmatmul.f32.gmra.mxu0 %v732
        %v1327 = vpop.f32.mrf.mxu0
        %v1328 = vadd.f32 0.0, %v1327
        %1329 = vmatmul.f32.gmra.mxu0 %v734
        %v1330 = vpop.f32.mrf.mxu0
        %v1331 = vadd.f32 0.0, %v1330
        %1332 = vmatmul.f32.gmra.mxu0 %v736
        %v1333 = vpop.f32.mrf.mxu0
        %v1334 = vadd.f32 0.0, %v1333
        %1335 = vmatmul.f32.gmra.mxu0 %v1270
        %v1336 = vpop.f32.mrf.mxu0
        %v1337 = vadd.f32 0.0, %v1336
        %1338 = vmatmul.f32.gmra.mxu0 %v1272
        %v1339 = vpop.f32.mrf.mxu0
        %v1340 = vadd.f32 0.0, %v1339
        %1341 = vdwg.mxu0
        %v1342 = vadd.f32 %v1247, %v1295
        %v1343 = vadd.f32 %v1248, %v1298
        %v1344 = vadd.f32 %v1249, %v1301
        %v1345 = vadd.f32 %v1250, %v1304
        %v1346 = vadd.f32 %v1251, %v1307
        %v1347 = vadd.f32 %v1252, %v1310
        %v1348 = vadd.f32 %v1253, %v1313
        %v1349 = vadd.f32 %v1254, %v1316
        %v1350 = vadd.f32 %v1255, %v1319
        %v1351 = vadd.f32 %v1256, %v1322
        %v1352 = vadd.f32 %v1257, %v1325
        %v1353 = vadd.f32 %v1258, %v1328
        %v1354 = vadd.f32 %v1259, %v1331
        %v1355 = vadd.f32 %v1260, %v1334
        %v1356 = vadd.f32 %v1261, %v1337
        %v1357 = vadd.f32 %v1262, %v1340
        %v1358 = vrot.slane %v222, 4
        %v1359 = vrot.slane %v223, 4
        %v1360 = vsel %vm335, %v1358, %v1359
        %v1361 = vrot.slane %v224, 4
        %v1362 = vsel %vm335, %v1359, %v1361
        %s1363 = scalar_lea.vmem %s1, 36
        %v1364 = vld [vmem:[%s1363] sm:$0xf]
        %v1365 = vsel %vm302, %v1360, 0
        %v1367 = vsel %vm302, %v1362, 0
        %v1370 = vsel %vm335, %v1364, 0
        %1372 = vmatpush.msra.mxu0 0.0
        %1373 = vmatpush.msra.mxu0 0.0
        %1374 = vmatpush.msra.mxu0 0.0
        %1375 = vmatpush.msra.mxu0 0.0
        %1376 = vmatpush.msra.mxu0 0.0
        %1377 = vmatpush.msra.mxu0 0.0
        %1378 = vmatpush.msra.mxu0 0.0
        %1379 = vmatpush.msra.mxu0 0.0
        %1380 = vmatpush.msra.mxu0 0.0
        %1381 = vmatpush.msra.mxu0 0.0
        %1382 = vmatpush.msra.mxu0 0.0
        %1383 = vmatpush.msra.mxu0 0.0
        %1384 = vmatpush.msra.mxu0 0.0
        %1385 = vmatpush.msra.mxu0 0.0
        %1386 = vmatpush.msra.mxu0 0.0
        %1387 = vmatpush.msra.mxu0 %v1370
        %1388 = vmatmul.f32.gmra.mxu0 %v868
        %v1389 = vpop.f32.mrf.mxu0
        %v1390 = vadd.f32 0.0, %v1389
        %1391 = vmatmul.f32.gmra.mxu0 %v870
        %v1392 = vpop.f32.mrf.mxu0
        %v1393 = vadd.f32 0.0, %v1392
        %1394 = vmatmul.f32.gmra.mxu0 %v872
        %v1395 = vpop.f32.mrf.mxu0
        %v1396 = vadd.f32 0.0, %v1395
        %1397 = vmatmul.f32.gmra.mxu0 %v874
        %v1398 = vpop.f32.mrf.mxu0
        %v1399 = vadd.f32 0.0, %v1398
        %1400 = vmatmul.f32.gmra.mxu0 %v876
        %v1401 = vpop.f32.mrf.mxu0
        %v1402 = vadd.f32 0.0, %v1401
        %1403 = vmatmul.f32.gmra.mxu0 %v878
        %v1404 = vpop.f32.mrf.mxu0
        %v1405 = vadd.f32 0.0, %v1404
        %1406 = vmatmul.f32.gmra.mxu0 %v880
        %v1407 = vpop.f32.mrf.mxu0
        %v1408 = vadd.f32 0.0, %v1407
        %1409 = vmatmul.f32.gmra.mxu0 %v882
        %v1410 = vpop.f32.mrf.mxu0
        %v1411 = vadd.f32 0.0, %v1410
        %1412 = vmatmul.f32.gmra.mxu0 %v884
        %v1413 = vpop.f32.mrf.mxu0
        %v1414 = vadd.f32 0.0, %v1413
        %1415 = vmatmul.f32.gmra.mxu0 %v886
        %v1416 = vpop.f32.mrf.mxu0
        %v1417 = vadd.f32 0.0, %v1416
        %1418 = vmatmul.f32.gmra.mxu0 %v888
        %v1419 = vpop.f32.mrf.mxu0
        %v1420 = vadd.f32 0.0, %v1419
        %1421 = vmatmul.f32.gmra.mxu0 %v890
        %v1422 = vpop.f32.mrf.mxu0
        %v1423 = vadd.f32 0.0, %v1422
        %1424 = vmatmul.f32.gmra.mxu0 %v892
        %v1425 = vpop.f32.mrf.mxu0
        %v1426 = vadd.f32 0.0, %v1425
        %1427 = vmatmul.f32.gmra.mxu0 %v894
        %v1428 = vpop.f32.mrf.mxu0
        %v1429 = vadd.f32 0.0, %v1428
        %1430 = vmatmul.f32.gmra.mxu0 %v1365
        %v1431 = vpop.f32.mrf.mxu0
        %v1432 = vadd.f32 0.0, %v1431
        %1433 = vmatmul.f32.gmra.mxu0 %v1367
        %v1434 = vpop.f32.mrf.mxu0
        %v1435 = vadd.f32 0.0, %v1434
        %1436 = vdwg.mxu0
        %v1437 = vadd.f32 %v1342, %v1390
        %v1438 = vadd.f32 %v1343, %v1393
        %v1439 = vadd.f32 %v1344, %v1396
        %v1440 = vadd.f32 %v1345, %v1399
        %v1441 = vadd.f32 %v1346, %v1402
        %v1442 = vadd.f32 %v1347, %v1405
        %v1443 = vadd.f32 %v1348, %v1408
        %v1444 = vadd.f32 %v1349, %v1411
        %v1445 = vadd.f32 %v1350, %v1414
        %v1446 = vadd.f32 %v1351, %v1417
        %v1447 = vadd.f32 %v1352, %v1420
        %v1448 = vadd.f32 %v1353, %v1423
        %v1449 = vadd.f32 %v1354, %v1426
        %v1450 = vadd.f32 %v1355, %v1429
        %v1451 = vadd.f32 %v1356, %v1432
        %v1452 = vadd.f32 %v1357, %v1435
        %s1453 = scalar_lea.vmem %s1, 40
        %v1454 = vld [vmem:[%s1453] sm:$0xf]
        %v1456 = vsel %vm302, %v225, 0
        %v1459 = vsel %vm302, %v226, 0
        %v1462 = vsel %vm335, %v1454, 0
        %1464 = vmatpush.msra.mxu0 0.0
        %1465 = vmatpush.msra.mxu0 0.0
        %1466 = vmatpush.msra.mxu0 0.0
        %1467 = vmatpush.msra.mxu0 0.0
        %1468 = vmatpush.msra.mxu0 0.0
        %1469 = vmatpush.msra.mxu0 0.0
        %1470 = vmatpush.msra.mxu0 0.0
        %1471 = vmatpush.msra.mxu0 0.0
        %1472 = vmatpush.msra.mxu0 0.0
        %1473 = vmatpush.msra.mxu0 0.0
        %1474 = vmatpush.msra.mxu0 0.0
        %1475 = vmatpush.msra.mxu0 0.0
        %1476 = vmatpush.msra.mxu0 0.0
        %1477 = vmatpush.msra.mxu0 0.0
        %1478 = vmatpush.msra.mxu0 0.0
        %1479 = vmatpush.msra.mxu0 %v1462
        %1480 = vmatmul.f32.gmra.mxu0 %v412
        %v1481 = vpop.f32.mrf.mxu0
        %v1482 = vadd.f32 0.0, %v1481
        %1483 = vmatmul.f32.gmra.mxu0 %v414
        %v1484 = vpop.f32.mrf.mxu0
        %v1485 = vadd.f32 0.0, %v1484
        %1486 = vmatmul.f32.gmra.mxu0 %v416
        %v1487 = vpop.f32.mrf.mxu0
        %v1488 = vadd.f32 0.0, %v1487
        %1489 = vmatmul.f32.gmra.mxu0 %v418
        %v1490 = vpop.f32.mrf.mxu0
        %v1491 = vadd.f32 0.0, %v1490
        %1492 = vmatmul.f32.gmra.mxu0 %v420
        %v1493 = vpop.f32.mrf.mxu0
        %v1494 = vadd.f32 0.0, %v1493
        %1495 = vmatmul.f32.gmra.mxu0 %v422
        %v1496 = vpop.f32.mrf.mxu0
        %v1497 = vadd.f32 0.0, %v1496
        %1498 = vmatmul.f32.gmra.mxu0 %v424
        %v1499 = vpop.f32.mrf.mxu0
        %v1500 = vadd.f32 0.0, %v1499
        %1501 = vmatmul.f32.gmra.mxu0 %v426
        %v1502 = vpop.f32.mrf.mxu0
        %v1503 = vadd.f32 0.0, %v1502
        %1504 = vmatmul.f32.gmra.mxu0 %v428
        %v1505 = vpop.f32.mrf.mxu0
        %v1506 = vadd.f32 0.0, %v1505
        %1507 = vmatmul.f32.gmra.mxu0 %v430
        %v1508 = vpop.f32.mrf.mxu0
        %v1509 = vadd.f32 0.0, %v1508
        %1510 = vmatmul.f32.gmra.mxu0 %v432
        %v1511 = vpop.f32.mrf.mxu0
        %v1512 = vadd.f32 0.0, %v1511
        %1513 = vmatmul.f32.gmra.mxu0 %v434
        %v1514 = vpop.f32.mrf.mxu0
        %v1515 = vadd.f32 0.0, %v1514
        %1516 = vmatmul.f32.gmra.mxu0 %v983
        %v1517 = vpop.f32.mrf.mxu0
        %v1518 = vadd.f32 0.0, %v1517
        %1519 = vmatmul.f32.gmra.mxu0 %v986
        %v1520 = vpop.f32.mrf.mxu0
        %v1521 = vadd.f32 0.0, %v1520
        %1522 = vmatmul.f32.gmra.mxu0 %v1456
        %v1523 = vpop.f32.mrf.mxu0
        %v1524 = vadd.f32 0.0, %v1523
        %1525 = vmatmul.f32.gmra.mxu0 %v1459
        %v1526 = vpop.f32.mrf.mxu0
        %v1527 = vadd.f32 0.0, %v1526
        %1528 = vdwg.mxu0
        %v1529 = vadd.f32 %v1437, %v1482
        %v1530 = vadd.f32 %v1438, %v1485
        %v1531 = vadd.f32 %v1439, %v1488
        %v1532 = vadd.f32 %v1440, %v1491
        %v1533 = vadd.f32 %v1441, %v1494
        %v1534 = vadd.f32 %v1442, %v1497
        %v1535 = vadd.f32 %v1443, %v1500
        %v1536 = vadd.f32 %v1444, %v1503
        %v1537 = vadd.f32 %v1445, %v1506
        %v1538 = vadd.f32 %v1446, %v1509
        %v1539 = vadd.f32 %v1447, %v1512
        %v1540 = vadd.f32 %v1448, %v1515
        %v1541 = vadd.f32 %v1449, %v1518
        %v1542 = vadd.f32 %v1450, %v1521
        %v1543 = vadd.f32 %v1451, %v1524
        %v1544 = vadd.f32 %v1452, %v1527
        %v1546 = vrot.slane %v225, 1
        %v1547 = vrot.slane %v226, 1
        %v1548 = vsel %vm259, %v1546, %v1547
        %v1549 = vrot.slane %v227, 1
        %v1550 = vsel %vm259, %v1547, %v1549
        %s1551 = scalar_lea.vmem %s1, 44
        %v1552 = vld [vmem:[%s1551] sm:$0xf]
        %v1553 = vsel %vm302, %v1548, 0
        %v1555 = vsel %vm302, %v1550, 0
        %v1558 = vsel %vm335, %v1552, 0
        %1560 = vmatpush.msra.mxu0 0.0
        %1561 = vmatpush.msra.mxu0 0.0
        %1562 = vmatpush.msra.mxu0 0.0
        %1563 = vmatpush.msra.mxu0 0.0
        %1564 = vmatpush.msra.mxu0 0.0
        %1565 = vmatpush.msra.mxu0 0.0
        %1566 = vmatpush.msra.mxu0 0.0
        %1567 = vmatpush.msra.mxu0 0.0
        %1568 = vmatpush.msra.mxu0 0.0
        %1569 = vmatpush.msra.mxu0 0.0
        %1570 = vmatpush.msra.mxu0 0.0
        %1571 = vmatpush.msra.mxu0 0.0
        %1572 = vmatpush.msra.mxu0 0.0
        %1573 = vmatpush.msra.mxu0 0.0
        %1574 = vmatpush.msra.mxu0 0.0
        %1575 = vmatpush.msra.mxu0 %v1558
        %1576 = vmatmul.f32.gmra.mxu0 %v311
        %v1577 = vpop.f32.mrf.mxu0
        %v1578 = vadd.f32 0.0, %v1577
        %1579 = vmatmul.f32.gmra.mxu0 %v313
        %v1580 = vpop.f32.mrf.mxu0
        %v1581 = vadd.f32 0.0, %v1580
        %1582 = vmatmul.f32.gmra.mxu0 %v315
        %v1583 = vpop.f32.mrf.mxu0
        %v1584 = vadd.f32 0.0, %v1583
        %1585 = vmatmul.f32.gmra.mxu0 %v317
        %v1586 = vpop.f32.mrf.mxu0
        %v1587 = vadd.f32 0.0, %v1586
        %1588 = vmatmul.f32.gmra.mxu0 %v319
        %v1589 = vpop.f32.mrf.mxu0
        %v1590 = vadd.f32 0.0, %v1589
        %1591 = vmatmul.f32.gmra.mxu0 %v321
        %v1592 = vpop.f32.mrf.mxu0
        %v1593 = vadd.f32 0.0, %v1592
        %1594 = vmatmul.f32.gmra.mxu0 %v323
        %v1595 = vpop.f32.mrf.mxu0
        %v1596 = vadd.f32 0.0, %v1595
        %1597 = vmatmul.f32.gmra.mxu0 %v325
        %v1598 = vpop.f32.mrf.mxu0
        %v1599 = vadd.f32 0.0, %v1598
        %1600 = vmatmul.f32.gmra.mxu0 %v327
        %v1601 = vpop.f32.mrf.mxu0
        %v1602 = vadd.f32 0.0, %v1601
        %1603 = vmatmul.f32.gmra.mxu0 %v329
        %v1604 = vpop.f32.mrf.mxu0
        %v1605 = vadd.f32 0.0, %v1604
        %1606 = vmatmul.f32.gmra.mxu0 %v331
        %v1607 = vpop.f32.mrf.mxu0
        %v1608 = vadd.f32 0.0, %v1607
        %1609 = vmatmul.f32.gmra.mxu0 %v333
        %v1610 = vpop.f32.mrf.mxu0
        %v1611 = vadd.f32 0.0, %v1610
        %1612 = vmatmul.f32.gmra.mxu0 %v1080
        %v1613 = vpop.f32.mrf.mxu0
        %v1614 = vadd.f32 0.0, %v1613
        %1615 = vmatmul.f32.gmra.mxu0 %v1082
        %v1616 = vpop.f32.mrf.mxu0
        %v1617 = vadd.f32 0.0, %v1616
        %1618 = vmatmul.f32.gmra.mxu0 %v1553
        %v1619 = vpop.f32.mrf.mxu0
        %v1620 = vadd.f32 0.0, %v1619
        %1621 = vmatmul.f32.gmra.mxu0 %v1555
        %v1622 = vpop.f32.mrf.mxu0
        %v1623 = vadd.f32 0.0, %v1622
        %1624 = vdwg.mxu0
        %v1625 = vadd.f32 %v1529, %v1578
        %v1626 = vadd.f32 %v1530, %v1581
        %v1627 = vadd.f32 %v1531, %v1584
        %v1628 = vadd.f32 %v1532, %v1587
        %v1629 = vadd.f32 %v1533, %v1590
        %v1630 = vadd.f32 %v1534, %v1593
        %v1631 = vadd.f32 %v1535, %v1596
        %v1632 = vadd.f32 %v1536, %v1599
        %v1633 = vadd.f32 %v1537, %v1602
        %v1634 = vadd.f32 %v1538, %v1605
        %v1635 = vadd.f32 %v1539, %v1608
        %v1636 = vadd.f32 %v1540, %v1611
        %v1637 = vadd.f32 %v1541, %v1614
        %v1638 = vadd.f32 %v1542, %v1617
        %v1639 = vadd.f32 %v1543, %v1620
        %v1640 = vadd.f32 %v1544, %v1623
        %v1641 = vrot.slane %v225, 2
        %v1642 = vrot.slane %v226, 2
        %v1643 = vsel %vm504, %v1641, %v1642
        %v1644 = vrot.slane %v227, 2
        %v1645 = vsel %vm504, %v1642, %v1644
        %s1646 = scalar_lea.vmem %s1, 48
        %v1647 = vld [vmem:[%s1646] sm:$0xf]
        %v1648 = vsel %vm302, %v1643, 0
        %v1650 = vsel %vm302, %v1645, 0
        %v1653 = vsel %vm335, %v1647, 0
        %1655 = vmatpush.msra.mxu0 0.0
        %1656 = vmatpush.msra.mxu0 0.0
        %1657 = vmatpush.msra.mxu0 0.0
        %1658 = vmatpush.msra.mxu0 0.0
        %1659 = vmatpush.msra.mxu0 0.0
        %1660 = vmatpush.msra.mxu0 0.0
        %1661 = vmatpush.msra.mxu0 0.0
        %1662 = vmatpush.msra.mxu0 0.0
        %1663 = vmatpush.msra.mxu0 0.0
        %1664 = vmatpush.msra.mxu0 0.0
        %1665 = vmatpush.msra.mxu0 0.0
        %1666 = vmatpush.msra.mxu0 0.0
        %1667 = vmatpush.msra.mxu0 0.0
        %1668 = vmatpush.msra.mxu0 0.0
        %1669 = vmatpush.msra.mxu0 0.0
        %1670 = vmatpush.msra.mxu0 %v1653
        %1671 = vmatmul.f32.gmra.mxu0 %v555
        %v1672 = vpop.f32.mrf.mxu0
        %v1673 = vadd.f32 0.0, %v1672
        %1674 = vmatmul.f32.gmra.mxu0 %v557
        %v1675 = vpop.f32.mrf.mxu0
        %v1676 = vadd.f32 0.0, %v1675
        %1677 = vmatmul.f32.gmra.mxu0 %v559
        %v1678 = vpop.f32.mrf.mxu0
        %v1679 = vadd.f32 0.0, %v1678
        %1680 = vmatmul.f32.gmra.mxu0 %v561
        %v1681 = vpop.f32.mrf.mxu0
        %v1682 = vadd.f32 0.0, %v1681
        %1683 = vmatmul.f32.gmra.mxu0 %v563
        %v1684 = vpop.f32.mrf.mxu0
        %v1685 = vadd.f32 0.0, %v1684
        %1686 = vmatmul.f32.gmra.mxu0 %v565
        %v1687 = vpop.f32.mrf.mxu0
        %v1688 = vadd.f32 0.0, %v1687
        %1689 = vmatmul.f32.gmra.mxu0 %v567
        %v1690 = vpop.f32.mrf.mxu0
        %v1691 = vadd.f32 0.0, %v1690
        %1692 = vmatmul.f32.gmra.mxu0 %v569
        %v1693 = vpop.f32.mrf.mxu0
        %v1694 = vadd.f32 0.0, %v1693
        %1695 = vmatmul.f32.gmra.mxu0 %v571
        %v1696 = vpop.f32.mrf.mxu0
        %v1697 = vadd.f32 0.0, %v1696
        %1698 = vmatmul.f32.gmra.mxu0 %v573
        %v1699 = vpop.f32.mrf.mxu0
        %v1700 = vadd.f32 0.0, %v1699
        %1701 = vmatmul.f32.gmra.mxu0 %v575
        %v1702 = vpop.f32.mrf.mxu0
        %v1703 = vadd.f32 0.0, %v1702
        %1704 = vmatmul.f32.gmra.mxu0 %v577
        %v1705 = vpop.f32.mrf.mxu0
        %v1706 = vadd.f32 0.0, %v1705
        %1707 = vmatmul.f32.gmra.mxu0 %v1175
        %v1708 = vpop.f32.mrf.mxu0
        %v1709 = vadd.f32 0.0, %v1708
        %1710 = vmatmul.f32.gmra.mxu0 %v1177
        %v1711 = vpop.f32.mrf.mxu0
        %v1712 = vadd.f32 0.0, %v1711
        %1713 = vmatmul.f32.gmra.mxu0 %v1648
        %v1714 = vpop.f32.mrf.mxu0
        %v1715 = vadd.f32 0.0, %v1714
        %1716 = vmatmul.f32.gmra.mxu0 %v1650
        %v1717 = vpop.f32.mrf.mxu0
        %v1718 = vadd.f32 0.0, %v1717
        %1719 = vdwg.mxu0
        %v1720 = vadd.f32 %v1625, %v1673
        %v1721 = vadd.f32 %v1626, %v1676
        %v1722 = vadd.f32 %v1627, %v1679
        %v1723 = vadd.f32 %v1628, %v1682
        %v1724 = vadd.f32 %v1629, %v1685
        %v1725 = vadd.f32 %v1630, %v1688
        %v1726 = vadd.f32 %v1631, %v1691
        %v1727 = vadd.f32 %v1632, %v1694
        %v1728 = vadd.f32 %v1633, %v1697
        %v1729 = vadd.f32 %v1634, %v1700
        %v1730 = vadd.f32 %v1635, %v1703
        %v1731 = vadd.f32 %v1636, %v1706
        %v1732 = vadd.f32 %v1637, %v1709
        %v1733 = vadd.f32 %v1638, %v1712
        %v1734 = vadd.f32 %v1639, %v1715
        %v1735 = vadd.f32 %v1640, %v1718
        %v1736 = vrot.slane %v225, 3
        %v1737 = vrot.slane %v226, 3
        %v1738 = vsel %vm663, %v1736, %v1737
        %v1739 = vrot.slane %v227, 3
        %v1740 = vsel %vm663, %v1737, %v1739
        %s1741 = scalar_lea.vmem %s1, 52
        %v1742 = vld [vmem:[%s1741] sm:$0xf]
        %v1743 = vsel %vm302, %v1738, 0
        %v1745 = vsel %vm302, %v1740, 0
        %v1748 = vsel %vm335, %v1742, 0
        %1750 = vmatpush.msra.mxu0 0.0
        %1751 = vmatpush.msra.mxu0 0.0
        %1752 = vmatpush.msra.mxu0 0.0
        %1753 = vmatpush.msra.mxu0 0.0
        %1754 = vmatpush.msra.mxu0 0.0
        %1755 = vmatpush.msra.mxu0 0.0
        %1756 = vmatpush.msra.mxu0 0.0
        %1757 = vmatpush.msra.mxu0 0.0
        %1758 = vmatpush.msra.mxu0 0.0
        %1759 = vmatpush.msra.mxu0 0.0
        %1760 = vmatpush.msra.mxu0 0.0
        %1761 = vmatpush.msra.mxu0 0.0
        %1762 = vmatpush.msra.mxu0 0.0
        %1763 = vmatpush.msra.mxu0 0.0
        %1764 = vmatpush.msra.mxu0 0.0
        %1765 = vmatpush.msra.mxu0 %v1748
        %1766 = vmatmul.f32.gmra.mxu0 %v714
        %v1767 = vpop.f32.mrf.mxu0
        %v1768 = vadd.f32 0.0, %v1767
        %1769 = vmatmul.f32.gmra.mxu0 %v716
        %v1770 = vpop.f32.mrf.mxu0
        %v1771 = vadd.f32 0.0, %v1770
        %1772 = vmatmul.f32.gmra.mxu0 %v718
        %v1773 = vpop.f32.mrf.mxu0
        %v1774 = vadd.f32 0.0, %v1773
        %1775 = vmatmul.f32.gmra.mxu0 %v720
        %v1776 = vpop.f32.mrf.mxu0
        %v1777 = vadd.f32 0.0, %v1776
        %1778 = vmatmul.f32.gmra.mxu0 %v722
        %v1779 = vpop.f32.mrf.mxu0
        %v1780 = vadd.f32 0.0, %v1779
        %1781 = vmatmul.f32.gmra.mxu0 %v724
        %v1782 = vpop.f32.mrf.mxu0
        %v1783 = vadd.f32 0.0, %v1782
        %1784 = vmatmul.f32.gmra.mxu0 %v726
        %v1785 = vpop.f32.mrf.mxu0
        %v1786 = vadd.f32 0.0, %v1785
        %1787 = vmatmul.f32.gmra.mxu0 %v728
        %v1788 = vpop.f32.mrf.mxu0
        %v1789 = vadd.f32 0.0, %v1788
        %1790 = vmatmul.f32.gmra.mxu0 %v730
        %v1791 = vpop.f32.mrf.mxu0
        %v1792 = vadd.f32 0.0, %v1791
        %1793 = vmatmul.f32.gmra.mxu0 %v732
        %v1794 = vpop.f32.mrf.mxu0
        %v1795 = vadd.f32 0.0, %v1794
        %1796 = vmatmul.f32.gmra.mxu0 %v734
        %v1797 = vpop.f32.mrf.mxu0
        %v1798 = vadd.f32 0.0, %v1797
        %1799 = vmatmul.f32.gmra.mxu0 %v736
        %v1800 = vpop.f32.mrf.mxu0
        %v1801 = vadd.f32 0.0, %v1800
        %1802 = vmatmul.f32.gmra.mxu0 %v1270
        %v1803 = vpop.f32.mrf.mxu0
        %v1804 = vadd.f32 0.0, %v1803
        %1805 = vmatmul.f32.gmra.mxu0 %v1272
        %v1806 = vpop.f32.mrf.mxu0
        %v1807 = vadd.f32 0.0, %v1806
        %1808 = vmatmul.f32.gmra.mxu0 %v1743
        %v1809 = vpop.f32.mrf.mxu0
        %v1810 = vadd.f32 0.0, %v1809
        %1811 = vmatmul.f32.gmra.mxu0 %v1745
        %v1812 = vpop.f32.mrf.mxu0
        %v1813 = vadd.f32 0.0, %v1812
        %1814 = vdwg.mxu0
        %v1815 = vadd.f32 %v1720, %v1768
        %v1816 = vadd.f32 %v1721, %v1771
        %v1817 = vadd.f32 %v1722, %v1774
        %v1818 = vadd.f32 %v1723, %v1777
        %v1819 = vadd.f32 %v1724, %v1780
        %v1820 = vadd.f32 %v1725, %v1783
        %v1821 = vadd.f32 %v1726, %v1786
        %v1822 = vadd.f32 %v1727, %v1789
        %v1823 = vadd.f32 %v1728, %v1792
        %v1824 = vadd.f32 %v1729, %v1795
        %v1825 = vadd.f32 %v1730, %v1798
        %v1826 = vadd.f32 %v1731, %v1801
        %v1827 = vadd.f32 %v1732, %v1804
        %v1828 = vadd.f32 %v1733, %v1807
        %v1829 = vadd.f32 %v1734, %v1810
        %v1830 = vadd.f32 %v1735, %v1813
        %v1831 = vrot.slane %v225, 4
        %v1832 = vrot.slane %v226, 4
        %v1833 = vsel %vm335, %v1831, %v1832
        %v1834 = vrot.slane %v227, 4
        %v1835 = vsel %vm335, %v1832, %v1834
        %s1836 = scalar_lea.vmem %s1, 56
        %v1837 = vld [vmem:[%s1836] sm:$0xf]
        %v1838 = vsel %vm302, %v1833, 0
        %v1840 = vsel %vm302, %v1835, 0
        %v1843 = vsel %vm335, %v1837, 0
        %1845 = vmatpush.msra.mxu0 0.0
        %1846 = vmatpush.msra.mxu0 0.0
        %1847 = vmatpush.msra.mxu0 0.0
        %1848 = vmatpush.msra.mxu0 0.0
        %1849 = vmatpush.msra.mxu0 0.0
        %1850 = vmatpush.msra.mxu0 0.0
        %1851 = vmatpush.msra.mxu0 0.0
        %1852 = vmatpush.msra.mxu0 0.0
        %1853 = vmatpush.msra.mxu0 0.0
        %1854 = vmatpush.msra.mxu0 0.0
        %1855 = vmatpush.msra.mxu0 0.0
        %1856 = vmatpush.msra.mxu0 0.0
        %1857 = vmatpush.msra.mxu0 0.0
        %1858 = vmatpush.msra.mxu0 0.0
        %1859 = vmatpush.msra.mxu0 0.0
        %1860 = vmatpush.msra.mxu0 %v1843
        %1861 = vmatmul.f32.gmra.mxu0 %v872
        %v1862 = vpop.f32.mrf.mxu0
        %v1863 = vadd.f32 0.0, %v1862
        %1864 = vmatmul.f32.gmra.mxu0 %v874
        %v1865 = vpop.f32.mrf.mxu0
        %v1866 = vadd.f32 0.0, %v1865
        %1867 = vmatmul.f32.gmra.mxu0 %v876
        %v1868 = vpop.f32.mrf.mxu0
        %v1869 = vadd.f32 0.0, %v1868
        %1870 = vmatmul.f32.gmra.mxu0 %v878
        %v1871 = vpop.f32.mrf.mxu0
        %v1872 = vadd.f32 0.0, %v1871
        %1873 = vmatmul.f32.gmra.mxu0 %v880
        %v1874 = vpop.f32.mrf.mxu0
        %v1875 = vadd.f32 0.0, %v1874
        %1876 = vmatmul.f32.gmra.mxu0 %v882
        %v1877 = vpop.f32.mrf.mxu0
        %v1878 = vadd.f32 0.0, %v1877
        %1879 = vmatmul.f32.gmra.mxu0 %v884
        %v1880 = vpop.f32.mrf.mxu0
        %v1881 = vadd.f32 0.0, %v1880
        %1882 = vmatmul.f32.gmra.mxu0 %v886
        %v1883 = vpop.f32.mrf.mxu0
        %v1884 = vadd.f32 0.0, %v1883
        %1885 = vmatmul.f32.gmra.mxu0 %v888
        %v1886 = vpop.f32.mrf.mxu0
        %v1887 = vadd.f32 0.0, %v1886
        %1888 = vmatmul.f32.gmra.mxu0 %v890
        %v1889 = vpop.f32.mrf.mxu0
        %v1890 = vadd.f32 0.0, %v1889
        %1891 = vmatmul.f32.gmra.mxu0 %v892
        %v1892 = vpop.f32.mrf.mxu0
        %v1893 = vadd.f32 0.0, %v1892
        %1894 = vmatmul.f32.gmra.mxu0 %v894
        %v1895 = vpop.f32.mrf.mxu0
        %v1896 = vadd.f32 0.0, %v1895
        %1897 = vmatmul.f32.gmra.mxu0 %v1365
        %v1898 = vpop.f32.mrf.mxu0
        %v1899 = vadd.f32 0.0, %v1898
        %1900 = vmatmul.f32.gmra.mxu0 %v1367
        %v1901 = vpop.f32.mrf.mxu0
        %v1902 = vadd.f32 0.0, %v1901
        %1903 = vmatmul.f32.gmra.mxu0 %v1838
        %v1904 = vpop.f32.mrf.mxu0
        %v1905 = vadd.f32 0.0, %v1904
        %1906 = vmatmul.f32.gmra.mxu0 %v1840
        %v1907 = vpop.f32.mrf.mxu0
        %v1908 = vadd.f32 0.0, %v1907
        %1909 = vdwg.mxu0
        %v1910 = vadd.f32 %v1815, %v1863
        %v1911 = vadd.f32 %v1816, %v1866
        %v1912 = vadd.f32 %v1817, %v1869
        %v1913 = vadd.f32 %v1818, %v1872
        %v1914 = vadd.f32 %v1819, %v1875
        %v1915 = vadd.f32 %v1820, %v1878
        %v1916 = vadd.f32 %v1821, %v1881
        %v1917 = vadd.f32 %v1822, %v1884
        %v1918 = vadd.f32 %v1823, %v1887
        %v1919 = vadd.f32 %v1824, %v1890
        %v1920 = vadd.f32 %v1825, %v1893
        %v1921 = vadd.f32 %v1826, %v1896
        %v1922 = vadd.f32 %v1827, %v1899
        %v1923 = vadd.f32 %v1828, %v1902
        %v1924 = vadd.f32 %v1829, %v1905
        %v1925 = vadd.f32 %v1830, %v1908
        %s1926 = scalar_lea.vmem %s1, 60
        %v1927 = vld [vmem:[%s1926] sm:$0xf]
        %v1929 = vsel %vm302, %v228, 0
        %v1932 = vsel %vm302, %v229, 0
        %v1935 = vsel %vm335, %v1927, 0
        %1937 = vmatpush.msra.mxu0 0.0
        %1938 = vmatpush.msra.mxu0 0.0
        %1939 = vmatpush.msra.mxu0 0.0
        %1940 = vmatpush.msra.mxu0 0.0
        %1941 = vmatpush.msra.mxu0 0.0
        %1942 = vmatpush.msra.mxu0 0.0
        %1943 = vmatpush.msra.mxu0 0.0
        %1944 = vmatpush.msra.mxu0 0.0
        %1945 = vmatpush.msra.mxu0 0.0
        %1946 = vmatpush.msra.mxu0 0.0
        %1947 = vmatpush.msra.mxu0 0.0
        %1948 = vmatpush.msra.mxu0 0.0
        %1949 = vmatpush.msra.mxu0 0.0
        %1950 = vmatpush.msra.mxu0 0.0
        %1951 = vmatpush.msra.mxu0 0.0
        %1952 = vmatpush.msra.mxu0 %v1935
        %1953 = vmatmul.f32.gmra.mxu0 %v416
        %v1954 = vpop.f32.mrf.mxu0
        %v1955 = vadd.f32 0.0, %v1954
        %1956 = vmatmul.f32.gmra.mxu0 %v418
        %v1957 = vpop.f32.mrf.mxu0
        %v1958 = vadd.f32 0.0, %v1957
        %1959 = vmatmul.f32.gmra.mxu0 %v420
        %v1960 = vpop.f32.mrf.mxu0
        %v1961 = vadd.f32 0.0, %v1960
        %1962 = vmatmul.f32.gmra.mxu0 %v422
        %v1963 = vpop.f32.mrf.mxu0
        %v1964 = vadd.f32 0.0, %v1963
        %1965 = vmatmul.f32.gmra.mxu0 %v424
        %v1966 = vpop.f32.mrf.mxu0
        %v1967 = vadd.f32 0.0, %v1966
        %1968 = vmatmul.f32.gmra.mxu0 %v426
        %v1969 = vpop.f32.mrf.mxu0
        %v1970 = vadd.f32 0.0, %v1969
        %1971 = vmatmul.f32.gmra.mxu0 %v428
        %v1972 = vpop.f32.mrf.mxu0
        %v1973 = vadd.f32 0.0, %v1972
        %1974 = vmatmul.f32.gmra.mxu0 %v430
        %v1975 = vpop.f32.mrf.mxu0
        %v1976 = vadd.f32 0.0, %v1975
        %1977 = vmatmul.f32.gmra.mxu0 %v432
        %v1978 = vpop.f32.mrf.mxu0
        %v1979 = vadd.f32 0.0, %v1978
        %1980 = vmatmul.f32.gmra.mxu0 %v434
        %v1981 = vpop.f32.mrf.mxu0
        %v1982 = vadd.f32 0.0, %v1981
        %1983 = vmatmul.f32.gmra.mxu0 %v983
        %v1984 = vpop.f32.mrf.mxu0
        %v1985 = vadd.f32 0.0, %v1984
        %1986 = vmatmul.f32.gmra.mxu0 %v986
        %v1987 = vpop.f32.mrf.mxu0
        %v1988 = vadd.f32 0.0, %v1987
        %1989 = vmatmul.f32.gmra.mxu0 %v1456
        %v1990 = vpop.f32.mrf.mxu0
        %v1991 = vadd.f32 0.0, %v1990
        %1992 = vmatmul.f32.gmra.mxu0 %v1459
        %v1993 = vpop.f32.mrf.mxu0
        %v1994 = vadd.f32 0.0, %v1993
        %1995 = vmatmul.f32.gmra.mxu0 %v1929
        %v1996 = vpop.f32.mrf.mxu0
        %v1997 = vadd.f32 0.0, %v1996
        %1998 = vmatmul.f32.gmra.mxu0 %v1932
        %v1999 = vpop.f32.mrf.mxu0
        %v2000 = vadd.f32 0.0, %v1999
        %2001 = vdwg.mxu0
        %v2002 = vadd.f32 %v1910, %v1955
        %v2003 = vadd.f32 %v1911, %v1958
        %v2004 = vadd.f32 %v1912, %v1961
        %v2005 = vadd.f32 %v1913, %v1964
        %v2006 = vadd.f32 %v1914, %v1967
        %v2007 = vadd.f32 %v1915, %v1970
        %v2008 = vadd.f32 %v1916, %v1973
        %v2009 = vadd.f32 %v1917, %v1976
        %v2010 = vadd.f32 %v1918, %v1979
        %v2011 = vadd.f32 %v1919, %v1982
        %v2012 = vadd.f32 %v1920, %v1985
        %v2013 = vadd.f32 %v1921, %v1988
        %v2014 = vadd.f32 %v1922, %v1991
        %v2015 = vadd.f32 %v1923, %v1994
        %v2016 = vadd.f32 %v1924, %v1997
        %v2017 = vadd.f32 %v1925, %v2000
        %v2019 = vrot.slane %v228, 1
        %v2020 = vrot.slane %v229, 1
        %v2021 = vsel %vm259, %v2019, %v2020
        %v2022 = vrot.slane %v230, 1
        %v2023 = vsel %vm259, %v2020, %v2022
        %s2024 = scalar_lea.vmem %s1, 64
        %v2025 = vld [vmem:[%s2024] sm:$0xf]
        %v2026 = vsel %vm302, %v2021, 0
        %v2028 = vsel %vm302, %v2023, 0
        %v2031 = vsel %vm335, %v2025, 0
        %2033 = vmatpush.msra.mxu0 0.0
        %2034 = vmatpush.msra.mxu0 0.0
        %2035 = vmatpush.msra.mxu0 0.0
        %2036 = vmatpush.msra.mxu0 0.0
        %2037 = vmatpush.msra.mxu0 0.0
        %2038 = vmatpush.msra.mxu0 0.0
        %2039 = vmatpush.msra.mxu0 0.0
        %2040 = vmatpush.msra.mxu0 0.0
        %2041 = vmatpush.msra.mxu0 0.0
        %2042 = vmatpush.msra.mxu0 0.0
        %2043 = vmatpush.msra.mxu0 0.0
        %2044 = vmatpush.msra.mxu0 0.0
        %2045 = vmatpush.msra.mxu0 0.0
        %2046 = vmatpush.msra.mxu0 0.0
        %2047 = vmatpush.msra.mxu0 0.0
        %2048 = vmatpush.msra.mxu0 %v2031
        %2049 = vmatmul.f32.gmra.mxu0 %v315
        %v2050 = vpop.f32.mrf.mxu0
        %v2051 = vadd.f32 0.0, %v2050
        %2052 = vmatmul.f32.gmra.mxu0 %v317
        %v2053 = vpop.f32.mrf.mxu0
        %v2054 = vadd.f32 0.0, %v2053
        %2055 = vmatmul.f32.gmra.mxu0 %v319
        %v2056 = vpop.f32.mrf.mxu0
        %v2057 = vadd.f32 0.0, %v2056
        %2058 = vmatmul.f32.gmra.mxu0 %v321
        %v2059 = vpop.f32.mrf.mxu0
        %v2060 = vadd.f32 0.0, %v2059
        %2061 = vmatmul.f32.gmra.mxu0 %v323
        %v2062 = vpop.f32.mrf.mxu0
        %v2063 = vadd.f32 0.0, %v2062
        %2064 = vmatmul.f32.gmra.mxu0 %v325
        %v2065 = vpop.f32.mrf.mxu0
        %v2066 = vadd.f32 0.0, %v2065
        %2067 = vmatmul.f32.gmra.mxu0 %v327
        %v2068 = vpop.f32.mrf.mxu0
        %v2069 = vadd.f32 0.0, %v2068
        %2070 = vmatmul.f32.gmra.mxu0 %v329
        %v2071 = vpop.f32.mrf.mxu0
        %v2072 = vadd.f32 0.0, %v2071
        %2073 = vmatmul.f32.gmra.mxu0 %v331
        %v2074 = vpop.f32.mrf.mxu0
        %v2075 = vadd.f32 0.0, %v2074
        %2076 = vmatmul.f32.gmra.mxu0 %v333
        %v2077 = vpop.f32.mrf.mxu0
        %v2078 = vadd.f32 0.0, %v2077
        %2079 = vmatmul.f32.gmra.mxu0 %v1080
        %v2080 = vpop.f32.mrf.mxu0
        %v2081 = vadd.f32 0.0, %v2080
        %2082 = vmatmul.f32.gmra.mxu0 %v1082
        %v2083 = vpop.f32.mrf.mxu0
        %v2084 = vadd.f32 0.0, %v2083
        %2085 = vmatmul.f32.gmra.mxu0 %v1553
        %v2086 = vpop.f32.mrf.mxu0
        %v2087 = vadd.f32 0.0, %v2086
        %2088 = vmatmul.f32.gmra.mxu0 %v1555
        %v2089 = vpop.f32.mrf.mxu0
        %v2090 = vadd.f32 0.0, %v2089
        %2091 = vmatmul.f32.gmra.mxu0 %v2026
        %v2092 = vpop.f32.mrf.mxu0
        %v2093 = vadd.f32 0.0, %v2092
        %2094 = vmatmul.f32.gmra.mxu0 %v2028
        %v2095 = vpop.f32.mrf.mxu0
        %v2096 = vadd.f32 0.0, %v2095
        %2097 = vdwg.mxu0
        %v2098 = vadd.f32 %v2002, %v2051
        %v2099 = vadd.f32 %v2003, %v2054
        %v2100 = vadd.f32 %v2004, %v2057
        %v2101 = vadd.f32 %v2005, %v2060
        %v2102 = vadd.f32 %v2006, %v2063
        %v2103 = vadd.f32 %v2007, %v2066
        %v2104 = vadd.f32 %v2008, %v2069
        %v2105 = vadd.f32 %v2009, %v2072
        %v2106 = vadd.f32 %v2010, %v2075
        %v2107 = vadd.f32 %v2011, %v2078
        %v2108 = vadd.f32 %v2012, %v2081
        %v2109 = vadd.f32 %v2013, %v2084
        %v2110 = vadd.f32 %v2014, %v2087
        %v2111 = vadd.f32 %v2015, %v2090
        %v2112 = vadd.f32 %v2016, %v2093
        %v2113 = vadd.f32 %v2017, %v2096
        %v2114 = vrot.slane %v228, 2
        %v2115 = vrot.slane %v229, 2
        %v2116 = vsel %vm504, %v2114, %v2115
        %v2117 = vrot.slane %v230, 2
        %v2118 = vsel %vm504, %v2115, %v2117
        %s2119 = scalar_lea.vmem %s1, 68
        %v2120 = vld [vmem:[%s2119] sm:$0xf]
        %v2121 = vsel %vm302, %v2116, 0
        %v2123 = vsel %vm302, %v2118, 0
        %v2126 = vsel %vm335, %v2120, 0
        %2128 = vmatpush.msra.mxu0 0.0
        %2129 = vmatpush.msra.mxu0 0.0
        %2130 = vmatpush.msra.mxu0 0.0
        %2131 = vmatpush.msra.mxu0 0.0
        %2132 = vmatpush.msra.mxu0 0.0
        %2133 = vmatpush.msra.mxu0 0.0
        %2134 = vmatpush.msra.mxu0 0.0
        %2135 = vmatpush.msra.mxu0 0.0
        %2136 = vmatpush.msra.mxu0 0.0
        %2137 = vmatpush.msra.mxu0 0.0
        %2138 = vmatpush.msra.mxu0 0.0
        %2139 = vmatpush.msra.mxu0 0.0
        %2140 = vmatpush.msra.mxu0 0.0
        %2141 = vmatpush.msra.mxu0 0.0
        %2142 = vmatpush.msra.mxu0 0.0
        %2143 = vmatpush.msra.mxu0 %v2126
        %2144 = vmatmul.f32.gmra.mxu0 %v559
        %v2145 = vpop.f32.mrf.mxu0
        %v2146 = vadd.f32 0.0, %v2145
        %2147 = vmatmul.f32.gmra.mxu0 %v561
        %v2148 = vpop.f32.mrf.mxu0
        %v2149 = vadd.f32 0.0, %v2148
        %2150 = vmatmul.f32.gmra.mxu0 %v563
        %v2151 = vpop.f32.mrf.mxu0
        %v2152 = vadd.f32 0.0, %v2151
        %2153 = vmatmul.f32.gmra.mxu0 %v565
        %v2154 = vpop.f32.mrf.mxu0
        %v2155 = vadd.f32 0.0, %v2154
        %2156 = vmatmul.f32.gmra.mxu0 %v567
        %v2157 = vpop.f32.mrf.mxu0
        %v2158 = vadd.f32 0.0, %v2157
        %2159 = vmatmul.f32.gmra.mxu0 %v569
        %v2160 = vpop.f32.mrf.mxu0
        %v2161 = vadd.f32 0.0, %v2160
        %2162 = vmatmul.f32.gmra.mxu0 %v571
        %v2163 = vpop.f32.mrf.mxu0
        %v2164 = vadd.f32 0.0, %v2163
        %2165 = vmatmul.f32.gmra.mxu0 %v573
        %v2166 = vpop.f32.mrf.mxu0
        %v2167 = vadd.f32 0.0, %v2166
        %2168 = vmatmul.f32.gmra.mxu0 %v575
        %v2169 = vpop.f32.mrf.mxu0
        %v2170 = vadd.f32 0.0, %v2169
        %2171 = vmatmul.f32.gmra.mxu0 %v577
        %v2172 = vpop.f32.mrf.mxu0
        %v2173 = vadd.f32 0.0, %v2172
        %2174 = vmatmul.f32.gmra.mxu0 %v1175
        %v2175 = vpop.f32.mrf.mxu0
        %v2176 = vadd.f32 0.0, %v2175
        %2177 = vmatmul.f32.gmra.mxu0 %v1177
        %v2178 = vpop.f32.mrf.mxu0
        %v2179 = vadd.f32 0.0, %v2178
        %2180 = vmatmul.f32.gmra.mxu0 %v1648
        %v2181 = vpop.f32.mrf.mxu0
        %v2182 = vadd.f32 0.0, %v2181
        %2183 = vmatmul.f32.gmra.mxu0 %v1650
        %v2184 = vpop.f32.mrf.mxu0
        %v2185 = vadd.f32 0.0, %v2184
        %2186 = vmatmul.f32.gmra.mxu0 %v2121
        %v2187 = vpop.f32.mrf.mxu0
        %v2188 = vadd.f32 0.0, %v2187
        %2189 = vmatmul.f32.gmra.mxu0 %v2123
        %v2190 = vpop.f32.mrf.mxu0
        %v2191 = vadd.f32 0.0, %v2190
        %2192 = vdwg.mxu0
        %v2193 = vadd.f32 %v2098, %v2146
        %v2194 = vadd.f32 %v2099, %v2149
        %v2195 = vadd.f32 %v2100, %v2152
        %v2196 = vadd.f32 %v2101, %v2155
        %v2197 = vadd.f32 %v2102, %v2158
        %v2198 = vadd.f32 %v2103, %v2161
        %v2199 = vadd.f32 %v2104, %v2164
        %v2200 = vadd.f32 %v2105, %v2167
        %v2201 = vadd.f32 %v2106, %v2170
        %v2202 = vadd.f32 %v2107, %v2173
        %v2203 = vadd.f32 %v2108, %v2176
        %v2204 = vadd.f32 %v2109, %v2179
        %v2205 = vadd.f32 %v2110, %v2182
        %v2206 = vadd.f32 %v2111, %v2185
        %v2207 = vadd.f32 %v2112, %v2188
        %v2208 = vadd.f32 %v2113, %v2191
        %v2209 = vrot.slane %v228, 3
        %v2210 = vrot.slane %v229, 3
        %v2211 = vsel %vm663, %v2209, %v2210
        %v2212 = vrot.slane %v230, 3
        %v2213 = vsel %vm663, %v2210, %v2212
        %s2214 = scalar_lea.vmem %s1, 72
        %v2215 = vld [vmem:[%s2214] sm:$0xf]
        %v2216 = vsel %vm302, %v2211, 0
        %v2218 = vsel %vm302, %v2213, 0
        %v2221 = vsel %vm335, %v2215, 0
        %2223 = vmatpush.msra.mxu0 0.0
        %2224 = vmatpush.msra.mxu0 0.0
        %2225 = vmatpush.msra.mxu0 0.0
        %2226 = vmatpush.msra.mxu0 0.0
        %2227 = vmatpush.msra.mxu0 0.0
        %2228 = vmatpush.msra.mxu0 0.0
        %2229 = vmatpush.msra.mxu0 0.0
        %2230 = vmatpush.msra.mxu0 0.0
        %2231 = vmatpush.msra.mxu0 0.0
        %2232 = vmatpush.msra.mxu0 0.0
        %2233 = vmatpush.msra.mxu0 0.0
        %2234 = vmatpush.msra.mxu0 0.0
        %2235 = vmatpush.msra.mxu0 0.0
        %2236 = vmatpush.msra.mxu0 0.0
        %2237 = vmatpush.msra.mxu0 0.0
        %2238 = vmatpush.msra.mxu0 %v2221
        %2239 = vmatmul.f32.gmra.mxu0 %v718
        %v2240 = vpop.f32.mrf.mxu0
        %v2241 = vadd.f32 0.0, %v2240
        %2242 = vmatmul.f32.gmra.mxu0 %v720
        %v2243 = vpop.f32.mrf.mxu0
        %v2244 = vadd.f32 0.0, %v2243
        %2245 = vmatmul.f32.gmra.mxu0 %v722
        %v2246 = vpop.f32.mrf.mxu0
        %v2247 = vadd.f32 0.0, %v2246
        %2248 = vmatmul.f32.gmra.mxu0 %v724
        %v2249 = vpop.f32.mrf.mxu0
        %v2250 = vadd.f32 0.0, %v2249
        %2251 = vmatmul.f32.gmra.mxu0 %v726
        %v2252 = vpop.f32.mrf.mxu0
        %v2253 = vadd.f32 0.0, %v2252
        %2254 = vmatmul.f32.gmra.mxu0 %v728
        %v2255 = vpop.f32.mrf.mxu0
        %v2256 = vadd.f32 0.0, %v2255
        %2257 = vmatmul.f32.gmra.mxu0 %v730
        %v2258 = vpop.f32.mrf.mxu0
        %v2259 = vadd.f32 0.0, %v2258
        %2260 = vmatmul.f32.gmra.mxu0 %v732
        %v2261 = vpop.f32.mrf.mxu0
        %v2262 = vadd.f32 0.0, %v2261
        %2263 = vmatmul.f32.gmra.mxu0 %v734
        %v2264 = vpop.f32.mrf.mxu0
        %v2265 = vadd.f32 0.0, %v2264
        %2266 = vmatmul.f32.gmra.mxu0 %v736
        %v2267 = vpop.f32.mrf.mxu0
        %v2268 = vadd.f32 0.0, %v2267
        %2269 = vmatmul.f32.gmra.mxu0 %v1270
        %v2270 = vpop.f32.mrf.mxu0
        %v2271 = vadd.f32 0.0, %v2270
        %2272 = vmatmul.f32.gmra.mxu0 %v1272
        %v2273 = vpop.f32.mrf.mxu0
        %v2274 = vadd.f32 0.0, %v2273
        %2275 = vmatmul.f32.gmra.mxu0 %v1743
        %v2276 = vpop.f32.mrf.mxu0
        %v2277 = vadd.f32 0.0, %v2276
        %2278 = vmatmul.f32.gmra.mxu0 %v1745
        %v2279 = vpop.f32.mrf.mxu0
        %v2280 = vadd.f32 0.0, %v2279
        %2281 = vmatmul.f32.gmra.mxu0 %v2216
        %v2282 = vpop.f32.mrf.mxu0
        %v2283 = vadd.f32 0.0, %v2282
        %2284 = vmatmul.f32.gmra.mxu0 %v2218
        %v2285 = vpop.f32.mrf.mxu0
        %v2286 = vadd.f32 0.0, %v2285
        %2287 = vdwg.mxu0
        %v2288 = vadd.f32 %v2193, %v2241
        %v2289 = vadd.f32 %v2194, %v2244
        %v2290 = vadd.f32 %v2195, %v2247
        %v2291 = vadd.f32 %v2196, %v2250
        %v2292 = vadd.f32 %v2197, %v2253
        %v2293 = vadd.f32 %v2198, %v2256
        %v2294 = vadd.f32 %v2199, %v2259
        %v2295 = vadd.f32 %v2200, %v2262
        %v2296 = vadd.f32 %v2201, %v2265
        %v2297 = vadd.f32 %v2202, %v2268
        %v2298 = vadd.f32 %v2203, %v2271
        %v2299 = vadd.f32 %v2204, %v2274
        %v2300 = vadd.f32 %v2205, %v2277
        %v2301 = vadd.f32 %v2206, %v2280
        %v2302 = vadd.f32 %v2207, %v2283
        %v2303 = vadd.f32 %v2208, %v2286
        %v2304 = vrot.slane %v228, 4
        %v2305 = vrot.slane %v229, 4
        %v2306 = vsel %vm335, %v2304, %v2305
        %v2307 = vrot.slane %v230, 4
        %v2308 = vsel %vm335, %v2305, %v2307
        %s2309 = scalar_lea.vmem %s1, 76
        %v2310 = vld [vmem:[%s2309] sm:$0xf]
        %v2311 = vsel %vm302, %v2306, 0
        %v2313 = vsel %vm302, %v2308, 0
        %v2316 = vsel %vm335, %v2310, 0
        %2318 = vmatpush.msra.mxu0 0.0
        %2319 = vmatpush.msra.mxu0 0.0
        %2320 = vmatpush.msra.mxu0 0.0
        %2321 = vmatpush.msra.mxu0 0.0
        %2322 = vmatpush.msra.mxu0 0.0
        %2323 = vmatpush.msra.mxu0 0.0
        %2324 = vmatpush.msra.mxu0 0.0
        %2325 = vmatpush.msra.mxu0 0.0
        %2326 = vmatpush.msra.mxu0 0.0
        %2327 = vmatpush.msra.mxu0 0.0
        %2328 = vmatpush.msra.mxu0 0.0
        %2329 = vmatpush.msra.mxu0 0.0
        %2330 = vmatpush.msra.mxu0 0.0
        %2331 = vmatpush.msra.mxu0 0.0
        %2332 = vmatpush.msra.mxu0 0.0
        %2333 = vmatpush.msra.mxu0 %v2316
        %2334 = vmatmul.f32.gmra.mxu0 %v876
        %v2335 = vpop.f32.mrf.mxu0
        %v2336 = vadd.f32 0.0, %v2335
        %2337 = vmatmul.f32.gmra.mxu0 %v878
        %v2338 = vpop.f32.mrf.mxu0
        %v2339 = vadd.f32 0.0, %v2338
        %2340 = vmatmul.f32.gmra.mxu0 %v880
        %v2341 = vpop.f32.mrf.mxu0
        %v2342 = vadd.f32 0.0, %v2341
        %2343 = vmatmul.f32.gmra.mxu0 %v882
        %v2344 = vpop.f32.mrf.mxu0
        %v2345 = vadd.f32 0.0, %v2344
        %2346 = vmatmul.f32.gmra.mxu0 %v884
        %v2347 = vpop.f32.mrf.mxu0
        %v2348 = vadd.f32 0.0, %v2347
        %2349 = vmatmul.f32.gmra.mxu0 %v886
        %v2350 = vpop.f32.mrf.mxu0
        %v2351 = vadd.f32 0.0, %v2350
        %2352 = vmatmul.f32.gmra.mxu0 %v888
        %v2353 = vpop.f32.mrf.mxu0
        %v2354 = vadd.f32 0.0, %v2353
        %2355 = vmatmul.f32.gmra.mxu0 %v890
        %v2356 = vpop.f32.mrf.mxu0
        %v2357 = vadd.f32 0.0, %v2356
        %2358 = vmatmul.f32.gmra.mxu0 %v892
        %v2359 = vpop.f32.mrf.mxu0
        %v2360 = vadd.f32 0.0, %v2359
        %2361 = vmatmul.f32.gmra.mxu0 %v894
        %v2362 = vpop.f32.mrf.mxu0
        %v2363 = vadd.f32 0.0, %v2362
        %2364 = vmatmul.f32.gmra.mxu0 %v1365
        %v2365 = vpop.f32.mrf.mxu0
        %v2366 = vadd.f32 0.0, %v2365
        %2367 = vmatmul.f32.gmra.mxu0 %v1367
        %v2368 = vpop.f32.mrf.mxu0
        %v2369 = vadd.f32 0.0, %v2368
        %2370 = vmatmul.f32.gmra.mxu0 %v1838
        %v2371 = vpop.f32.mrf.mxu0
        %v2372 = vadd.f32 0.0, %v2371
        %2373 = vmatmul.f32.gmra.mxu0 %v1840
        %v2374 = vpop.f32.mrf.mxu0
        %v2375 = vadd.f32 0.0, %v2374
        %2376 = vmatmul.f32.gmra.mxu0 %v2311
        %v2377 = vpop.f32.mrf.mxu0
        %v2378 = vadd.f32 0.0, %v2377
        %2379 = vmatmul.f32.gmra.mxu0 %v2313
        %v2380 = vpop.f32.mrf.mxu0
        %v2381 = vadd.f32 0.0, %v2380
        %2382 = vdwg.mxu0
        %v2383 = vadd.f32 %v2288, %v2336
        %v2384 = vadd.f32 %v2289, %v2339
        %v2385 = vadd.f32 %v2290, %v2342
        %v2386 = vadd.f32 %v2291, %v2345
        %v2387 = vadd.f32 %v2292, %v2348
        %v2388 = vadd.f32 %v2293, %v2351
        %v2389 = vadd.f32 %v2294, %v2354
        %v2390 = vadd.f32 %v2295, %v2357
        %v2391 = vadd.f32 %v2296, %v2360
        %v2392 = vadd.f32 %v2297, %v2363
        %v2393 = vadd.f32 %v2298, %v2366
        %v2394 = vadd.f32 %v2299, %v2369
        %v2395 = vadd.f32 %v2300, %v2372
        %v2396 = vadd.f32 %v2301, %v2375
        %v2397 = vadd.f32 %v2302, %v2378
        %v2398 = vadd.f32 %v2303, %v2381
        %s2399 = scalar_lea.vmem %s1, 80
        %v2400 = vld [vmem:[%s2399] sm:$0xf]
        %v2402 = vsel %vm302, %v231, 0
        %v2405 = vsel %vm302, %v232, 0
        %v2408 = vsel %vm335, %v2400, 0
        %2410 = vmatpush.msra.mxu0 0.0
        %2411 = vmatpush.msra.mxu0 0.0
        %2412 = vmatpush.msra.mxu0 0.0
        %2413 = vmatpush.msra.mxu0 0.0
        %2414 = vmatpush.msra.mxu0 0.0
        %2415 = vmatpush.msra.mxu0 0.0
        %2416 = vmatpush.msra.mxu0 0.0
        %2417 = vmatpush.msra.mxu0 0.0
        %2418 = vmatpush.msra.mxu0 0.0
        %2419 = vmatpush.msra.mxu0 0.0
        %2420 = vmatpush.msra.mxu0 0.0
        %2421 = vmatpush.msra.mxu0 0.0
        %2422 = vmatpush.msra.mxu0 0.0
        %2423 = vmatpush.msra.mxu0 0.0
        %2424 = vmatpush.msra.mxu0 0.0
        %2425 = vmatpush.msra.mxu0 %v2408
        %2426 = vmatmul.f32.gmra.mxu0 %v420
        %v2427 = vpop.f32.mrf.mxu0
        %v2428 = vadd.f32 0.0, %v2427
        %2429 = vmatmul.f32.gmra.mxu0 %v422
        %v2430 = vpop.f32.mrf.mxu0
        %v2431 = vadd.f32 0.0, %v2430
        %2432 = vmatmul.f32.gmra.mxu0 %v424
        %v2433 = vpop.f32.mrf.mxu0
        %v2434 = vadd.f32 0.0, %v2433
        %2435 = vmatmul.f32.gmra.mxu0 %v426
        %v2436 = vpop.f32.mrf.mxu0
        %v2437 = vadd.f32 0.0, %v2436
        %2438 = vmatmul.f32.gmra.mxu0 %v428
        %v2439 = vpop.f32.mrf.mxu0
        %v2440 = vadd.f32 0.0, %v2439
        %2441 = vmatmul.f32.gmra.mxu0 %v430
        %v2442 = vpop.f32.mrf.mxu0
        %v2443 = vadd.f32 0.0, %v2442
        %2444 = vmatmul.f32.gmra.mxu0 %v432
        %v2445 = vpop.f32.mrf.mxu0
        %v2446 = vadd.f32 0.0, %v2445
        %2447 = vmatmul.f32.gmra.mxu0 %v434
        %v2448 = vpop.f32.mrf.mxu0
        %v2449 = vadd.f32 0.0, %v2448
        %2450 = vmatmul.f32.gmra.mxu0 %v983
        %v2451 = vpop.f32.mrf.mxu0
        %v2452 = vadd.f32 0.0, %v2451
        %2453 = vmatmul.f32.gmra.mxu0 %v986
        %v2454 = vpop.f32.mrf.mxu0
        %v2455 = vadd.f32 0.0, %v2454
        %2456 = vmatmul.f32.gmra.mxu0 %v1456
        %v2457 = vpop.f32.mrf.mxu0
        %v2458 = vadd.f32 0.0, %v2457
        %2459 = vmatmul.f32.gmra.mxu0 %v1459
        %v2460 = vpop.f32.mrf.mxu0
        %v2461 = vadd.f32 0.0, %v2460
        %2462 = vmatmul.f32.gmra.mxu0 %v1929
        %v2463 = vpop.f32.mrf.mxu0
        %v2464 = vadd.f32 0.0, %v2463
        %2465 = vmatmul.f32.gmra.mxu0 %v1932
        %v2466 = vpop.f32.mrf.mxu0
        %v2467 = vadd.f32 0.0, %v2466
        %2468 = vmatmul.f32.gmra.mxu0 %v2402
        %v2469 = vpop.f32.mrf.mxu0
        %v2470 = vadd.f32 0.0, %v2469
        %2471 = vmatmul.f32.gmra.mxu0 %v2405
        %v2472 = vpop.f32.mrf.mxu0
        %v2473 = vadd.f32 0.0, %v2472
        %2474 = vdwg.mxu0
        %v2475 = vadd.f32 %v2383, %v2428
        %v2476 = vadd.f32 %v2384, %v2431
        %v2477 = vadd.f32 %v2385, %v2434
        %v2478 = vadd.f32 %v2386, %v2437
        %v2479 = vadd.f32 %v2387, %v2440
        %v2480 = vadd.f32 %v2388, %v2443
        %v2481 = vadd.f32 %v2389, %v2446
        %v2482 = vadd.f32 %v2390, %v2449
        %v2483 = vadd.f32 %v2391, %v2452
        %v2484 = vadd.f32 %v2392, %v2455
        %v2485 = vadd.f32 %v2393, %v2458
        %v2486 = vadd.f32 %v2394, %v2461
        %v2487 = vadd.f32 %v2395, %v2464
        %v2488 = vadd.f32 %v2396, %v2467
        %v2489 = vadd.f32 %v2397, %v2470
        %v2490 = vadd.f32 %v2398, %v2473
        %v2492 = vrot.slane %v231, 1
        %v2493 = vrot.slane %v232, 1
        %v2494 = vsel %vm259, %v2492, %v2493
        %v2495 = vrot.slane %v233, 1
        %v2496 = vsel %vm259, %v2493, %v2495
        %s2497 = scalar_lea.vmem %s1, 84
        %v2498 = vld [vmem:[%s2497] sm:$0xf]
        %v2499 = vsel %vm302, %v2494, 0
        %v2501 = vsel %vm302, %v2496, 0
        %v2504 = vsel %vm335, %v2498, 0
        %2506 = vmatpush.msra.mxu0 0.0
        %2507 = vmatpush.msra.mxu0 0.0
        %2508 = vmatpush.msra.mxu0 0.0
        %2509 = vmatpush.msra.mxu0 0.0
        %2510 = vmatpush.msra.mxu0 0.0
        %2511 = vmatpush.msra.mxu0 0.0
        %2512 = vmatpush.msra.mxu0 0.0
        %2513 = vmatpush.msra.mxu0 0.0
        %2514 = vmatpush.msra.mxu0 0.0
        %2515 = vmatpush.msra.mxu0 0.0
        %2516 = vmatpush.msra.mxu0 0.0
        %2517 = vmatpush.msra.mxu0 0.0
        %2518 = vmatpush.msra.mxu0 0.0
        %2519 = vmatpush.msra.mxu0 0.0
        %2520 = vmatpush.msra.mxu0 0.0
        %2521 = vmatpush.msra.mxu0 %v2504
        %2522 = vmatmul.f32.gmra.mxu0 %v319
        %v2523 = vpop.f32.mrf.mxu0
        %v2524 = vadd.f32 0.0, %v2523
        %2525 = vmatmul.f32.gmra.mxu0 %v321
        %v2526 = vpop.f32.mrf.mxu0
        %v2527 = vadd.f32 0.0, %v2526
        %2528 = vmatmul.f32.gmra.mxu0 %v323
        %v2529 = vpop.f32.mrf.mxu0
        %v2530 = vadd.f32 0.0, %v2529
        %2531 = vmatmul.f32.gmra.mxu0 %v325
        %v2532 = vpop.f32.mrf.mxu0
        %v2533 = vadd.f32 0.0, %v2532
        %2534 = vmatmul.f32.gmra.mxu0 %v327
        %v2535 = vpop.f32.mrf.mxu0
        %v2536 = vadd.f32 0.0, %v2535
        %2537 = vmatmul.f32.gmra.mxu0 %v329
        %v2538 = vpop.f32.mrf.mxu0
        %v2539 = vadd.f32 0.0, %v2538
        %2540 = vmatmul.f32.gmra.mxu0 %v331
        %v2541 = vpop.f32.mrf.mxu0
        %v2542 = vadd.f32 0.0, %v2541
        %2543 = vmatmul.f32.gmra.mxu0 %v333
        %v2544 = vpop.f32.mrf.mxu0
        %v2545 = vadd.f32 0.0, %v2544
        %2546 = vmatmul.f32.gmra.mxu0 %v1080
        %v2547 = vpop.f32.mrf.mxu0
        %v2548 = vadd.f32 0.0, %v2547
        %2549 = vmatmul.f32.gmra.mxu0 %v1082
        %v2550 = vpop.f32.mrf.mxu0
        %v2551 = vadd.f32 0.0, %v2550
        %2552 = vmatmul.f32.gmra.mxu0 %v1553
        %v2553 = vpop.f32.mrf.mxu0
        %v2554 = vadd.f32 0.0, %v2553
        %2555 = vmatmul.f32.gmra.mxu0 %v1555
        %v2556 = vpop.f32.mrf.mxu0
        %v2557 = vadd.f32 0.0, %v2556
        %2558 = vmatmul.f32.gmra.mxu0 %v2026
        %v2559 = vpop.f32.mrf.mxu0
        %v2560 = vadd.f32 0.0, %v2559
        %2561 = vmatmul.f32.gmra.mxu0 %v2028
        %v2562 = vpop.f32.mrf.mxu0
        %v2563 = vadd.f32 0.0, %v2562
        %2564 = vmatmul.f32.gmra.mxu0 %v2499
        %v2565 = vpop.f32.mrf.mxu0
        %v2566 = vadd.f32 0.0, %v2565
        %2567 = vmatmul.f32.gmra.mxu0 %v2501
        %v2568 = vpop.f32.mrf.mxu0
        %v2569 = vadd.f32 0.0, %v2568
        %2570 = vdwg.mxu0
        %v2571 = vadd.f32 %v2475, %v2524
        %v2572 = vadd.f32 %v2476, %v2527
        %v2573 = vadd.f32 %v2477, %v2530
        %v2574 = vadd.f32 %v2478, %v2533
        %v2575 = vadd.f32 %v2479, %v2536
        %v2576 = vadd.f32 %v2480, %v2539
        %v2577 = vadd.f32 %v2481, %v2542
        %v2578 = vadd.f32 %v2482, %v2545
        %v2579 = vadd.f32 %v2483, %v2548
        %v2580 = vadd.f32 %v2484, %v2551
        %v2581 = vadd.f32 %v2485, %v2554
        %v2582 = vadd.f32 %v2486, %v2557
        %v2583 = vadd.f32 %v2487, %v2560
        %v2584 = vadd.f32 %v2488, %v2563
        %v2585 = vadd.f32 %v2489, %v2566
        %v2586 = vadd.f32 %v2490, %v2569
        %v2587 = vrot.slane %v231, 2
        %v2588 = vrot.slane %v232, 2
        %v2589 = vsel %vm504, %v2587, %v2588
        %v2590 = vrot.slane %v233, 2
        %v2591 = vsel %vm504, %v2588, %v2590
        %s2592 = scalar_lea.vmem %s1, 88
        %v2593 = vld [vmem:[%s2592] sm:$0xf]
        %v2594 = vsel %vm302, %v2589, 0
        %v2596 = vsel %vm302, %v2591, 0
        %v2599 = vsel %vm335, %v2593, 0
        %2601 = vmatpush.msra.mxu0 0.0
        %2602 = vmatpush.msra.mxu0 0.0
        %2603 = vmatpush.msra.mxu0 0.0
        %2604 = vmatpush.msra.mxu0 0.0
        %2605 = vmatpush.msra.mxu0 0.0
        %2606 = vmatpush.msra.mxu0 0.0
        %2607 = vmatpush.msra.mxu0 0.0
        %2608 = vmatpush.msra.mxu0 0.0
        %2609 = vmatpush.msra.mxu0 0.0
        %2610 = vmatpush.msra.mxu0 0.0
        %2611 = vmatpush.msra.mxu0 0.0
        %2612 = vmatpush.msra.mxu0 0.0
        %2613 = vmatpush.msra.mxu0 0.0
        %2614 = vmatpush.msra.mxu0 0.0
        %2615 = vmatpush.msra.mxu0 0.0
        %2616 = vmatpush.msra.mxu0 %v2599
        %2617 = vmatmul.f32.gmra.mxu0 %v563
        %v2618 = vpop.f32.mrf.mxu0
        %v2619 = vadd.f32 0.0, %v2618
        %2620 = vmatmul.f32.gmra.mxu0 %v565
        %v2621 = vpop.f32.mrf.mxu0
        %v2622 = vadd.f32 0.0, %v2621
        %2623 = vmatmul.f32.gmra.mxu0 %v567
        %v2624 = vpop.f32.mrf.mxu0
        %v2625 = vadd.f32 0.0, %v2624
        %2626 = vmatmul.f32.gmra.mxu0 %v569
        %v2627 = vpop.f32.mrf.mxu0
        %v2628 = vadd.f32 0.0, %v2627
        %2629 = vmatmul.f32.gmra.mxu0 %v571
        %v2630 = vpop.f32.mrf.mxu0
        %v2631 = vadd.f32 0.0, %v2630
        %2632 = vmatmul.f32.gmra.mxu0 %v573
        %v2633 = vpop.f32.mrf.mxu0
        %v2634 = vadd.f32 0.0, %v2633
        %2635 = vmatmul.f32.gmra.mxu0 %v575
        %v2636 = vpop.f32.mrf.mxu0
        %v2637 = vadd.f32 0.0, %v2636
        %2638 = vmatmul.f32.gmra.mxu0 %v577
        %v2639 = vpop.f32.mrf.mxu0
        %v2640 = vadd.f32 0.0, %v2639
        %2641 = vmatmul.f32.gmra.mxu0 %v1175
        %v2642 = vpop.f32.mrf.mxu0
        %v2643 = vadd.f32 0.0, %v2642
        %2644 = vmatmul.f32.gmra.mxu0 %v1177
        %v2645 = vpop.f32.mrf.mxu0
        %v2646 = vadd.f32 0.0, %v2645
        %2647 = vmatmul.f32.gmra.mxu0 %v1648
        %v2648 = vpop.f32.mrf.mxu0
        %v2649 = vadd.f32 0.0, %v2648
        %2650 = vmatmul.f32.gmra.mxu0 %v1650
        %v2651 = vpop.f32.mrf.mxu0
        %v2652 = vadd.f32 0.0, %v2651
        %2653 = vmatmul.f32.gmra.mxu0 %v2121
        %v2654 = vpop.f32.mrf.mxu0
        %v2655 = vadd.f32 0.0, %v2654
        %2656 = vmatmul.f32.gmra.mxu0 %v2123
        %v2657 = vpop.f32.mrf.mxu0
        %v2658 = vadd.f32 0.0, %v2657
        %2659 = vmatmul.f32.gmra.mxu0 %v2594
        %v2660 = vpop.f32.mrf.mxu0
        %v2661 = vadd.f32 0.0, %v2660
        %2662 = vmatmul.f32.gmra.mxu0 %v2596
        %v2663 = vpop.f32.mrf.mxu0
        %v2664 = vadd.f32 0.0, %v2663
        %2665 = vdwg.mxu0
        %v2666 = vadd.f32 %v2571, %v2619
        %v2667 = vadd.f32 %v2572, %v2622
        %v2668 = vadd.f32 %v2573, %v2625
        %v2669 = vadd.f32 %v2574, %v2628
        %v2670 = vadd.f32 %v2575, %v2631
        %v2671 = vadd.f32 %v2576, %v2634
        %v2672 = vadd.f32 %v2577, %v2637
        %v2673 = vadd.f32 %v2578, %v2640
        %v2674 = vadd.f32 %v2579, %v2643
        %v2675 = vadd.f32 %v2580, %v2646
        %v2676 = vadd.f32 %v2581, %v2649
        %v2677 = vadd.f32 %v2582, %v2652
        %v2678 = vadd.f32 %v2583, %v2655
        %v2679 = vadd.f32 %v2584, %v2658
        %v2680 = vadd.f32 %v2585, %v2661
        %v2681 = vadd.f32 %v2586, %v2664
        %v2682 = vrot.slane %v231, 3
        %v2683 = vrot.slane %v232, 3
        %v2684 = vsel %vm663, %v2682, %v2683
        %v2685 = vrot.slane %v233, 3
        %v2686 = vsel %vm663, %v2683, %v2685
        %s2687 = scalar_lea.vmem %s1, 92
        %v2688 = vld [vmem:[%s2687] sm:$0xf]
        %v2689 = vsel %vm302, %v2684, 0
        %v2691 = vsel %vm302, %v2686, 0
        %v2694 = vsel %vm335, %v2688, 0
        %2696 = vmatpush.msra.mxu0 0.0
        %2697 = vmatpush.msra.mxu0 0.0
        %2698 = vmatpush.msra.mxu0 0.0
        %2699 = vmatpush.msra.mxu0 0.0
        %2700 = vmatpush.msra.mxu0 0.0
        %2701 = vmatpush.msra.mxu0 0.0
        %2702 = vmatpush.msra.mxu0 0.0
        %2703 = vmatpush.msra.mxu0 0.0
        %2704 = vmatpush.msra.mxu0 0.0
        %2705 = vmatpush.msra.mxu0 0.0
        %2706 = vmatpush.msra.mxu0 0.0
        %2707 = vmatpush.msra.mxu0 0.0
        %2708 = vmatpush.msra.mxu0 0.0
        %2709 = vmatpush.msra.mxu0 0.0
        %2710 = vmatpush.msra.mxu0 0.0
        %2711 = vmatpush.msra.mxu0 %v2694
        %2712 = vmatmul.f32.gmra.mxu0 %v722
        %v2713 = vpop.f32.mrf.mxu0
        %v2714 = vadd.f32 0.0, %v2713
        %2715 = vmatmul.f32.gmra.mxu0 %v724
        %v2716 = vpop.f32.mrf.mxu0
        %v2717 = vadd.f32 0.0, %v2716
        %2718 = vmatmul.f32.gmra.mxu0 %v726
        %v2719 = vpop.f32.mrf.mxu0
        %v2720 = vadd.f32 0.0, %v2719
        %2721 = vmatmul.f32.gmra.mxu0 %v728
        %v2722 = vpop.f32.mrf.mxu0
        %v2723 = vadd.f32 0.0, %v2722
        %2724 = vmatmul.f32.gmra.mxu0 %v730
        %v2725 = vpop.f32.mrf.mxu0
        %v2726 = vadd.f32 0.0, %v2725
        %2727 = vmatmul.f32.gmra.mxu0 %v732
        %v2728 = vpop.f32.mrf.mxu0
        %v2729 = vadd.f32 0.0, %v2728
        %2730 = vmatmul.f32.gmra.mxu0 %v734
        %v2731 = vpop.f32.mrf.mxu0
        %v2732 = vadd.f32 0.0, %v2731
        %2733 = vmatmul.f32.gmra.mxu0 %v736
        %v2734 = vpop.f32.mrf.mxu0
        %v2735 = vadd.f32 0.0, %v2734
        %2736 = vmatmul.f32.gmra.mxu0 %v1270
        %v2737 = vpop.f32.mrf.mxu0
        %v2738 = vadd.f32 0.0, %v2737
        %2739 = vmatmul.f32.gmra.mxu0 %v1272
        %v2740 = vpop.f32.mrf.mxu0
        %v2741 = vadd.f32 0.0, %v2740
        %2742 = vmatmul.f32.gmra.mxu0 %v1743
        %v2743 = vpop.f32.mrf.mxu0
        %v2744 = vadd.f32 0.0, %v2743
        %2745 = vmatmul.f32.gmra.mxu0 %v1745
        %v2746 = vpop.f32.mrf.mxu0
        %v2747 = vadd.f32 0.0, %v2746
        %2748 = vmatmul.f32.gmra.mxu0 %v2216
        %v2749 = vpop.f32.mrf.mxu0
        %v2750 = vadd.f32 0.0, %v2749
        %2751 = vmatmul.f32.gmra.mxu0 %v2218
        %v2752 = vpop.f32.mrf.mxu0
        %v2753 = vadd.f32 0.0, %v2752
        %2754 = vmatmul.f32.gmra.mxu0 %v2689
        %v2755 = vpop.f32.mrf.mxu0
        %v2756 = vadd.f32 0.0, %v2755
        %2757 = vmatmul.f32.gmra.mxu0 %v2691
        %v2758 = vpop.f32.mrf.mxu0
        %v2759 = vadd.f32 0.0, %v2758
        %2760 = vdwg.mxu0
        %v2761 = vadd.f32 %v2666, %v2714
        %v2762 = vadd.f32 %v2667, %v2717
        %v2763 = vadd.f32 %v2668, %v2720
        %v2764 = vadd.f32 %v2669, %v2723
        %v2765 = vadd.f32 %v2670, %v2726
        %v2766 = vadd.f32 %v2671, %v2729
        %v2767 = vadd.f32 %v2672, %v2732
        %v2768 = vadd.f32 %v2673, %v2735
        %v2769 = vadd.f32 %v2674, %v2738
        %v2770 = vadd.f32 %v2675, %v2741
        %v2771 = vadd.f32 %v2676, %v2744
        %v2772 = vadd.f32 %v2677, %v2747
        %v2773 = vadd.f32 %v2678, %v2750
        %v2774 = vadd.f32 %v2679, %v2753
        %v2775 = vadd.f32 %v2680, %v2756
        %v2776 = vadd.f32 %v2681, %v2759
        %v2777 = vrot.slane %v231, 4
        %v2778 = vrot.slane %v232, 4
        %v2779 = vsel %vm335, %v2777, %v2778
        %v2780 = vrot.slane %v233, 4
        %v2781 = vsel %vm335, %v2778, %v2780
        %s2782 = scalar_lea.vmem %s1, 96
        %v2783 = vld [vmem:[%s2782] sm:$0xf]
        %v2784 = vsel %vm302, %v2779, 0
        %v2786 = vsel %vm302, %v2781, 0
        %v2789 = vsel %vm335, %v2783, 0
        %2791 = vmatpush.msra.mxu0 0.0
        %2792 = vmatpush.msra.mxu0 0.0
        %2793 = vmatpush.msra.mxu0 0.0
        %2794 = vmatpush.msra.mxu0 0.0
        %2795 = vmatpush.msra.mxu0 0.0
        %2796 = vmatpush.msra.mxu0 0.0
        %2797 = vmatpush.msra.mxu0 0.0
        %2798 = vmatpush.msra.mxu0 0.0
        %2799 = vmatpush.msra.mxu0 0.0
        %2800 = vmatpush.msra.mxu0 0.0
        %2801 = vmatpush.msra.mxu0 0.0
        %2802 = vmatpush.msra.mxu0 0.0
        %2803 = vmatpush.msra.mxu0 0.0
        %2804 = vmatpush.msra.mxu0 0.0
        %2805 = vmatpush.msra.mxu0 0.0
        %2806 = vmatpush.msra.mxu0 %v2789
        %2807 = vmatmul.f32.gmra.mxu0 %v880
        %v2808 = vpop.f32.mrf.mxu0
        %v2809 = vadd.f32 0.0, %v2808
        %2810 = vmatmul.f32.gmra.mxu0 %v882
        %v2811 = vpop.f32.mrf.mxu0
        %v2812 = vadd.f32 0.0, %v2811
        %2813 = vmatmul.f32.gmra.mxu0 %v884
        %v2814 = vpop.f32.mrf.mxu0
        %v2815 = vadd.f32 0.0, %v2814
        %2816 = vmatmul.f32.gmra.mxu0 %v886
        %v2817 = vpop.f32.mrf.mxu0
        %v2818 = vadd.f32 0.0, %v2817
        %2819 = vmatmul.f32.gmra.mxu0 %v888
        %v2820 = vpop.f32.mrf.mxu0
        %v2821 = vadd.f32 0.0, %v2820
        %2822 = vmatmul.f32.gmra.mxu0 %v890
        %v2823 = vpop.f32.mrf.mxu0
        %v2824 = vadd.f32 0.0, %v2823
        %2825 = vmatmul.f32.gmra.mxu0 %v892
        %v2826 = vpop.f32.mrf.mxu0
        %v2827 = vadd.f32 0.0, %v2826
        %2828 = vmatmul.f32.gmra.mxu0 %v894
        %v2829 = vpop.f32.mrf.mxu0
        %v2830 = vadd.f32 0.0, %v2829
        %2831 = vmatmul.f32.gmra.mxu0 %v1365
        %v2832 = vpop.f32.mrf.mxu0
        %v2833 = vadd.f32 0.0, %v2832
        %2834 = vmatmul.f32.gmra.mxu0 %v1367
        %v2835 = vpop.f32.mrf.mxu0
        %v2836 = vadd.f32 0.0, %v2835
        %2837 = vmatmul.f32.gmra.mxu0 %v1838
        %v2838 = vpop.f32.mrf.mxu0
        %v2839 = vadd.f32 0.0, %v2838
        %2840 = vmatmul.f32.gmra.mxu0 %v1840
        %v2841 = vpop.f32.mrf.mxu0
        %v2842 = vadd.f32 0.0, %v2841
        %2843 = vmatmul.f32.gmra.mxu0 %v2311
        %v2844 = vpop.f32.mrf.mxu0
        %v2845 = vadd.f32 0.0, %v2844
        %2846 = vmatmul.f32.gmra.mxu0 %v2313
        %v2847 = vpop.f32.mrf.mxu0
        %v2848 = vadd.f32 0.0, %v2847
        %2849 = vmatmul.f32.gmra.mxu0 %v2784
        %v2850 = vpop.f32.mrf.mxu0
        %v2851 = vadd.f32 0.0, %v2850
        %2852 = vmatmul.f32.gmra.mxu0 %v2786
        %v2853 = vpop.f32.mrf.mxu0
        %v2854 = vadd.f32 0.0, %v2853
        %2855 = vdwg.mxu0
        %v2856 = vadd.f32 %v2761, %v2809
        %v2857 = vadd.f32 %v2762, %v2812
        %v2858 = vadd.f32 %v2763, %v2815
        %v2859 = vadd.f32 %v2764, %v2818
        %v2860 = vadd.f32 %v2765, %v2821
        %v2861 = vadd.f32 %v2766, %v2824
        %v2862 = vadd.f32 %v2767, %v2827
        %v2863 = vadd.f32 %v2768, %v2830
        %v2864 = vadd.f32 %v2769, %v2833
        %v2865 = vadd.f32 %v2770, %v2836
        %v2866 = vadd.f32 %v2771, %v2839
        %v2867 = vadd.f32 %v2772, %v2842
        %v2868 = vadd.f32 %v2773, %v2845
        %v2869 = vadd.f32 %v2774, %v2848
        %v2870 = vadd.f32 %v2775, %v2851
        %v2871 = vadd.f32 %v2776, %v2854
        %v2872 = vld [vmem:[%s2] sm:$0x1]
        %v2874 = vperm.slane %v2872, 0
        %v2876 = vadd.f32 %v2856, %v2874
        %v2877 = vadd.f32 %v2857, %v2874
        %v2878 = vadd.f32 %v2858, %v2874
        %v2879 = vadd.f32 %v2859, %v2874
        %v2880 = vadd.f32 %v2860, %v2874
        %v2881 = vadd.f32 %v2861, %v2874
        %v2882 = vadd.f32 %v2862, %v2874
        %v2883 = vadd.f32 %v2863, %v2874
        %v2884 = vadd.f32 %v2864, %v2874
        %v2885 = vadd.f32 %v2865, %v2874
        %v2886 = vadd.f32 %v2866, %v2874
        %v2887 = vadd.f32 %v2867, %v2874
        %v2888 = vadd.f32 %v2868, %v2874
        %v2889 = vadd.f32 %v2869, %v2874
        %v2890 = vadd.f32 %v2870, %v2874
        %v2891 = vadd.f32 %v2871, %v2874
        %vm2892 = vcmask 261120
        %2893 = vst.msk [vmem:[%s187] sm:$0xff] %vm2892, %v2876
        %2894 = vst.msk [vmem:[%s187 + $0x8] sm:$0xff] %vm2892, %v2877
        %2895 = vst.msk [vmem:[%s187 + $0x10] sm:$0xff] %vm2892, %v2878
        %2896 = vst.msk [vmem:[%s187 + $0x18] sm:$0xff] %vm2892, %v2879
        %2897 = vst.msk [vmem:[%s187 + $0x20] sm:$0xff] %vm2892, %v2880
        %2898 = vst.msk [vmem:[%s187 + $0x28] sm:$0xff] %vm2892, %v2881
        %2899 = vst.msk [vmem:[%s187 + $0x30] sm:$0xff] %vm2892, %v2882
        %2900 = vst.msk [vmem:[%s187 + $0x38] sm:$0xff] %vm2892, %v2883
        %2901 = vst.msk [vmem:[%s187 + $0x40] sm:$0xff] %vm2892, %v2884
        %2902 = vst.msk [vmem:[%s187 + $0x48] sm:$0xff] %vm2892, %v2885
        %2903 = vst.msk [vmem:[%s187 + $0x50] sm:$0xff] %vm2892, %v2886
        %2904 = vst.msk [vmem:[%s187 + $0x58] sm:$0xff] %vm2892, %v2887
        %2905 = vst.msk [vmem:[%s187 + $0x60] sm:$0xff] %vm2892, %v2888
        %2906 = vst.msk [vmem:[%s187 + $0x68] sm:$0xff] %vm2892, %v2889
        %2907 = vst.msk [vmem:[%s187 + $0x70] sm:$0xff] %vm2892, %v2890
        %2908 = vst.msk [vmem:[%s187 + $0x78] sm:$0xff] %vm2892, %v2891
        %s2909 = sand.u32 %s109, 1
        %s2910 = scalar_lea.sflag [#allocation3], %s2909
        %s2911 = sand.u32 %s109, 1
        %s2912 = smul.addr %s2911, 128
        %s2913 = scalar_lea.vmem [#allocation2], %s2912
        // Predicated region
        $region33: #{tpu_custom_call.1} parent=31 // pred_check
          %p2914 = pneg %p119
        $region34: #{tpu_custom_call.1} parent=31 // pred_check_branch
          %2916 = sbr.rel (%p2914) target = $region36
        $region35: #{tpu_custom_call.1} parent=31 // pred_region
          %s2917 = smul.u32 8, %s22
          %2919 = vsyncadd %s2910, 0
          %s2920 = smul.addr %s2917, 2
          %s2921 = smul.addr %s21, 32
          %s2922 = sadd.s32 %s2920, %s2921
          %s2923 = smul.addr %s2922, 8
          %s2924 = scalar_lea.hbm %s3, %s2923
          %s2925 = sshll.u32 %s2913, 4
          %s2926 = int_to_ptr.vmem [resolvable:$true] %s2925
          %s2927 = sshll.u32 %s2924, 4
          %s2928 = int_to_ptr.hbm [resolvable:$true] %s2927
          %2933 = dma.vmem_to_hbm [thread:$0]  %s2926, 2048, %s2928, %s2910, 128, 128, 8
        $region36: #{tpu_custom_call.1} parent=31 // pred_fallthru
          _
      $region32: #{tpu_custom_call.1} parent=5 // pred_fallthru
        _
      %p2934 = scmp.le.s32.totalorder 2, %s12
      // Predicated region
      $region37: #{tpu_custom_call.1} parent=5 // pred_check
        %p2935 = pneg %p2934
      $region38: #{tpu_custom_call.1} parent=5 // pred_check_branch
        %2937 = sbr.rel (%p2935) target = $region40
      $region39: #{tpu_custom_call.1} parent=5 // pred_region
        %s2938 = ssub.s32 %s12, 2
        // Predicated region
        $region41: #{tpu_custom_call.1} parent=39 // pred_check
          %p2939 = pneg %p125
        $region42: #{tpu_custom_call.1} parent=39 // pred_check_branch
          %2941 = sbr.rel (%p2939) target = $region44
        $region43: #{tpu_custom_call.1} parent=39 // pred_region
          %s2942 = sand.u32 %s110, 1
          %s2943 = scalar_lea.sflag [#allocation3], %s2942
          %s2944 = sand.u32 %s110, 1
          %s2945 = smul.addr %s2944, 128
          %s2946 = scalar_lea.vmem [#allocation2], %s2945
          %2948 = dma.done %s2943, 2048
        $region44: #{tpu_custom_call.1} parent=39 // pred_fallthru
          _
      $region40: #{tpu_custom_call.1} parent=5 // pred_fallthru
        _
    $region6: #{tpu_custom_call.1} parent=1 // loop_footer
      %s16 = sadd.s32 1, %s12
    $region7: #{tpu_custom_call.1} parent=1 // loop_footer_branch
      %11 = sbr.rel target = $region3
    $region8: #{tpu_custom_call.1} parent=1 // loop_exit
      _
    %2949 = vsyncpa [#allocation3], 1
    %s2950 = scalar_lea.sflag [#allocation3], 1
    %2951 = vsyncpa %s2950, 1

</llo_original>
